<compile_context>
chip_gen: v7x
topology: tpu7x:2x2x1
jax: 0.10.0
libtpu: 0.0.40
codegen_flags: <defaults>
</compile_context>

<pallas_src>
import functools

import jax
import jax.numpy as jnp
from jax import lax
from jax.experimental import pallas as pl
from jax.experimental.pallas import tpu as pltpu
from jax.scipy.special import erf as _erf_ref

LN_EPS = 1e-5
_INV_SQRT2 = 0.7071067811865476


# -----------------------------------------------------------------------------
# In-kernel helpers
# -----------------------------------------------------------------------------
def _layer_norm(v, w, b):
    """Row-wise LayerNorm over the last (lane) dim.  w, b have shape (1, C)."""
    mu = jnp.mean(v, axis=-1, keepdims=True)
    var = jnp.mean((v - mu) ** 2, axis=-1, keepdims=True)
    return (v - mu) * lax.rsqrt(var + LN_EPS) * w + b


def _erf_poly(x):
    """Abramowitz & Stegun 7.1.26 erf approximation (|err| <= 1.5e-7).
    Uses only mul/add/exp/abs/where, all of which lower cleanly in Mosaic."""
    a1, a2, a3, a4, a5 = (0.254829592, -0.284496736, 1.421413741,
                          -1.453152027, 1.061405429)
    p = 0.3275911
    sgn = jnp.where(x < 0.0, -1.0, 1.0)
    z = jnp.abs(x)
    t = 1.0 / (1.0 + p * z)
    poly = ((((a5 * t + a4) * t + a3) * t + a2) * t + a1) * t
    return sgn * (1.0 - poly * jnp.exp(-z * z))


def _gelu_exact(x):
    """erf-based GELU (matches PyTorch nn.GELU default to ~1e-6)."""
    return 0.5 * x * (1.0 + _erf_poly(x * _INV_SQRT2))


def _shifted_rows(a, off):
    """shifted[l] = a[l + off] along axis 0, zero-filled outside the range."""
    if off == 0:
        return a
    n, c = a.shape
    zeros = jnp.zeros((abs(off), c), jnp.float32)
    if off > 0:
        return jnp.concatenate([a[off:, :], zeros], axis=0)
    return jnp.concatenate([zeros, a[: n + off, :]], axis=0)


# -----------------------------------------------------------------------------
# Kernels
# -----------------------------------------------------------------------------
def _patch_embed_kernel(xc_ref, w_ref, pos_ref, o_ref):
    """One batch element: im2col'd patches @ weight + positional embedding."""
    y = jnp.dot(xc_ref[0], w_ref[...], preferred_element_type=jnp.float32)
    o_ref[0] = (y + pos_ref[...]).astype(o_ref.dtype)


def _encoder_layer_kernel(
    x_ref,
    ln1_w_ref, ln1_b_ref,
    wq_ref, wk_ref, wv_ref,
    lnq_w_ref, lnq_b_ref, lnk_w_ref, lnk_b_ref, lnv_w_ref, lnv_b_ref,
    wo_ref,
    ln2_w_ref, ln2_b_ref,
    w1_ref, b1_ref, wd_ref, bd_ref, w2_ref, b2_ref,
    o_ref,
    *, num_heads, exp_ratio, dw_kernel,
):
    """One fused ViTEncoderMixFFN layer for a single batch element."""
    x = x_ref[0].astype(jnp.float32)                 # (L, E) channels-last
    L, E = x.shape
    dh = E // num_heads
    scale = 1.0 / float(dh) ** 0.5

    # ---------------- MHSA (reduction_ratio == 1 path) ----------------------
    h = _layer_norm(x, ln1_w_ref[...], ln1_b_ref[...])
    q = _layer_norm(jnp.dot(h, wq_ref[...], preferred_element_type=jnp.float32),
                    lnq_w_ref[...], lnq_b_ref[...])
    k = _layer_norm(jnp.dot(h, wk_ref[...], preferred_element_type=jnp.float32),
                    lnk_w_ref[...], lnk_b_ref[...])
    v = _layer_norm(jnp.dot(h, wv_ref[...], preferred_element_type=jnp.float32),
                    lnv_w_ref[...], lnv_b_ref[...])

    wo_t = wo_ref[...]                               # (E, E), y = x @ wo_t
    mhsa = jnp.zeros((L, E), jnp.float32)
    for head in range(num_heads):                    # static unroll (small)
        lo = head * dh
        qh = q[:, lo:lo + dh]
        kh = k[:, lo:lo + dh]
        vh = v[:, lo:lo + dh]
        dots = lax.dot_general(qh, kh, (((1,), (1,)), ((), ())),
                               preferred_element_type=jnp.float32) * scale
        dots = dots - jnp.max(dots, axis=-1, keepdims=True)
        p = jnp.exp(dots)
        attn = p / jnp.sum(p, axis=-1, keepdims=True)
        out_h = jnp.dot(attn, vh, preferred_element_type=jnp.float32)
        mhsa = mhsa + jnp.dot(out_h, wo_t[lo:lo + dh, :],
                              preferred_element_type=jnp.float32)

    x2 = mhsa + x                                    # residual after MHSA

    # ---------------- MixFFN ------------------------------------------------
    f = _layer_norm(x2, ln2_w_ref[...], ln2_b_ref[...])
    g = jnp.dot(f, w1_ref[...], preferred_element_type=jnp.float32) + b1_ref[...]

    wd = wd_ref[...]                                 # (K, exp, 1, E)
    bd = bd_ref[...]                                 # (exp, 1, E)
    w2 = w2_ref[...]                                 # (exp, E, E)
    pad = (dw_kernel - 1) // 2

    # Depthwise expanding conv ('same') as shifted VPU FMAs in channels-last.
    taps = [_shifted_rows(g, kk - pad) for kk in range(dw_kernel)]
    ffn = jnp.zeros((L, E), jnp.float32)
    for e in range(exp_ratio):                       # static unroll (small)
        d = bd[e]                                    # (1, E), broadcasts
        for kk in range(dw_kernel):
            d = d + taps[kk] * wd[kk, e]
        ffn = ffn + jnp.dot(_gelu_exact(d), w2[e],
                            preferred_element_type=jnp.float32)
    ffn = ffn + b2_ref[...]

    o_ref[0] = (ffn + x2).astype(o_ref.dtype)        # residual after FFN


# -----------------------------------------------------------------------------
# Pallas wrappers
# -----------------------------------------------------------------------------
def _const_spec(shape):
    """Full-array block whose index does not change over the batch grid."""
    nd = len(shape)

    def idx(b):
        del b
        return (0,) * nd

    return pl.BlockSpec(shape, idx)


def overlap_patch_merging(x_bcl, conv_w, pos_emb, *, patch_size, stride):
    """x_bcl: (B, C_in, L_in); conv_w: (E, C_in, K); pos_emb: (1, L_out, E)."""
    B, C_in, L_in = x_bcl.shape
    E = conv_w.shape[0]
    P = patch_size // 2
    L_out = (L_in + 2 * P - patch_size) // stride + 1
    KC = patch_size * C_in

    # im2col (layout plumbing) so the strided conv is ONE lane-dense matmul.
    x_pad = jnp.pad(x_bcl.astype(jnp.float32), ((0, 0), (0, 0), (P, P)))
    gather_idx = (jnp.arange(L_out) * stride)[:, None] + jnp.arange(patch_size)[None, :]
    cols = x_pad[:, :, gather_idx]                                   # (B, C_in, L_out, K)
    x_cols = jnp.transpose(cols, (0, 2, 3, 1)).reshape(B, L_out, KC)

    w_r = jnp.transpose(conv_w.astype(jnp.float32), (2, 1, 0)).reshape(KC, E)
    pos = pos_emb.reshape(L_out, E).astype(jnp.float32)

    return pl.pallas_call(
        _patch_embed_kernel,
        out_shape=jax.ShapeDtypeStruct((B, L_out, E), jnp.float32),
        grid_spec=pltpu.PrefetchScalarGridSpec(
            num_scalar_prefetch=0,
            grid=(B,),
            in_specs=[
                pl.BlockSpec((1, L_out, KC), lambda b: (b, 0, 0)),
                _const_spec((KC, E)),
                _const_spec((L_out, E)),
            ],
            out_specs=pl.BlockSpec((1, L_out, E), lambda b: (b, 0, 0)),
        ),
        compiler_params=pltpu.CompilerParams(dimension_semantics=("parallel",)),
    )(x_cols, w_r, pos)


def _encoder_layer(tokens, lp, *, num_heads, exp_ratio):
    """tokens: (B, L, E); lp holds PyTorch-shaped parameters for one layer."""
    B, L, E = tokens.shape
    exp = exp_ratio
    dw_k = lp["wd"].shape[-1]            # == 3 (hard-coded in MixFFN)
    f32 = jnp.float32
    row = lambda a: a.reshape(1, -1).astype(f32)

    args = [
        tokens.astype(f32),
        row(lp["ln1_w"]), row(lp["ln1_b"]),
        lp["wq"].T.astype(f32), lp["wk"].T.astype(f32), lp["wv"].T.astype(f32),
        row(lp["lnq_w"]), row(lp["lnq_b"]),
        row(lp["lnk_w"]), row(lp["lnk_b"]),
        row(lp["lnv_w"]), row(lp["lnv_b"]),
        lp["wo"].T.astype(f32),
        row(lp["ln2_w"]), row(lp["ln2_b"]),
        # linear1 (1x1 conv): (E, E, 1) -> (E_in, E_out)
        lp["w1"][:, :, 0].T.astype(f32), row(lp["b1"]),
        # depthwise conv: weight (E*exp, 1, K) -> (K, exp, 1, E); bias -> (exp, 1, E)
        jnp.transpose(lp["wd"][:, 0, :].reshape(E, exp, dw_k), (2, 1, 0))
           .reshape(dw_k, exp, 1, E).astype(f32),
        lp["bd"].reshape(E, exp).T.reshape(exp, 1, E).astype(f32),
        # linear2 (1x1 conv): (E, E*exp, 1) -> (exp, E_in, E_out)
        jnp.transpose(lp["w2"][:, :, 0].T.reshape(E, exp, E), (1, 0, 2)).astype(f32),
        row(lp["b2"]),
    ]

    in_specs = [pl.BlockSpec((1, L, E), lambda b: (b, 0, 0))]
    in_specs += [_const_spec(a.shape) for a in args[1:]]

    kernel = functools.partial(_encoder_layer_kernel, num_heads=num_heads,
                               exp_ratio=exp, dw_kernel=dw_k)
    return pl.pallas_call(
        kernel,
        out_shape=jax.ShapeDtypeStruct((B, L, E), jnp.float32),
        grid_spec=pltpu.PrefetchScalarGridSpec(
            num_scalar_prefetch=0,
            grid=(B,),
            in_specs=in_specs,
            out_specs=pl.BlockSpec((1, L, E), lambda b: (b, 0, 0)),
        ),
        compiler_params=pltpu.CompilerParams(dimension_semantics=("parallel",)),
    )(*args)


def transformer_block_pallas(x_bcl, params, *, patch_size, stride, num_heads, exp_ratio):
    tokens = overlap_patch_merging(x_bcl, params["olpm_conv_w"], params["pos_emb"],
                                   patch_size=patch_size, stride=stride)
    for lp in params["layers"]:
        tokens = _encoder_layer(tokens, lp, num_heads=num_heads, exp_ratio=exp_ratio)
    return jnp.transpose(tokens, (0, 2, 1))          # B L C -> B C L


# -----------------------------------------------------------------------------
# Pure-JAX reference (mirrors the PyTorch module, f32, HIGHEST precision)
# -----------------------------------------------------------------------------
def transformer_block_reference(x_bcl, params, *, patch_size, stride, num_heads, exp_ratio):
    HI = lax.Precision.HIGHEST
    x = x_bcl.astype(jnp.float32)
    B = x.shape[0]
    P = patch_size // 2

    y = lax.conv_general_dilated(x, params["olpm_conv_w"].astype(jnp.float32),
                                 (stride,), [(P, P)],
                                 dimension_numbers=("NCH", "OIH", "NCH"), precision=HI)
    t = jnp.transpose(y, (0, 2, 1)) + params["pos_emb"]
    L, E = t.shape[1], t.shape[2]
    dh = E // num_heads

    def ln(v, w, b):
        mu = jnp.mean(v, axis=-1, keepdims=True)
        var = jnp.mean((v - mu) ** 2, axis=-1, keepdims=True)
        return (v - mu) * lax.rsqrt(var + LN_EPS) * w + b

    def mm(a, b):
        return jnp.matmul(a, b, precision=HI)

    for lp in params["layers"]:
        res1 = t
        h = ln(t, lp["ln1_w"], lp["ln1_b"])
        q = ln(mm(h, lp["wq"].T), lp["lnq_w"], lp["lnq_b"])
        k = ln(mm(h, lp["wk"].T), lp["lnk_w"], lp["lnk_b"])
        v = ln(mm(h, lp["wv"].T), lp["lnv_w"], lp["lnv_b"])
        qh = q.reshape(B, L, num_heads, dh).transpose(0, 2, 1, 3)
        kh = k.reshape(B, L, num_heads, dh).transpose(0, 2, 1, 3)
        vh = v.reshape(B, L, num_heads, dh).transpose(0, 2, 1, 3)
        dots = jnp.einsum("bhqd,bhkd->bhqk", qh, kh, precision=HI) / (dh ** 0.5)
        attn = jax.nn.softmax(dots, axis=-1)
        out = jnp.einsum("bhqk,bhkd->bhqd", attn, vh, precision=HI)
        out = out.transpose(0, 2, 1, 3).reshape(B, L, E)
        t = mm(out, lp["wo"].T) + res1

        res2 = t
        f = ln(t, lp["ln2_w"], lp["ln2_b"])
        fc = jnp.transpose(f, (0, 2, 1))                                  # B E L
        g = lax.conv_general_dilated(fc, lp["w1"], (1,), [(0, 0)],
                                     dimension_numbers=("NCH", "OIH", "NCH"),
                                     precision=HI) + lp["b1"][None, :, None]
        d = lax.conv_general_dilated(g, lp["wd"], (1,), [(1, 1)],
                                     dimension_numbers=("NCH", "OIH", "NCH"),
                                     feature_group_count=E,
                                     precision=HI) + lp["bd"][None, :, None]
        u = 0.5 * d * (1.0 + _erf_ref(d * _INV_SQRT2))
        o = lax.conv_general_dilated(u, lp["w2"], (1,), [(0, 0)],
                                     dimension_numbers=("NCH", "OIH", "NCH"),
                                     precision=HI) + lp["b2"][None, :, None]
        t = jnp.transpose(o, (0, 2, 1)) + res2

    return jnp.transpose(t, (0, 2, 1))


# -----------------------------------------------------------------------------
# Parameter construction (PyTorch-shaped tensors)
# -----------------------------------------------------------------------------
def init_params(key, *, in_channels, emb_dim, patch_size, stride, in_length,
                exp_ratio, block_num):
    E = emb_dim
    k_olpm, k_pos, *layer_keys = jax.random.split(key, 2 + block_num)

    def make_layer(k):
        ks = jax.random.split(k, 20)
        n = lambda kk, shape, s=1.0: s * jax.random.normal(kk, shape, jnp.float32)
        sE = 1.0 / (E ** 0.5)
        sH = 1.0 / ((E * exp_ratio) ** 0.5)
        return {
            "ln1_w": 1.0 + 0.1 * n(ks[0], (E,)), "ln1_b": 0.1 * n(ks[1], (E,)),
            "wq": n(ks[2], (E, E), sE), "wk": n(ks[3], (E, E), sE), "wv": n(ks[4], (E, E), sE),
            "lnq_w": 1.0 + 0.1 * n(ks[5], (E,)), "lnq_b": 0.1 * n(ks[6], (E,)),
            "lnk_w": 1.0 + 0.1 * n(ks[7], (E,)), "lnk_b": 0.1 * n(ks[8], (E,)),
            "lnv_w": 1.0 + 0.1 * n(ks[9], (E,)), "lnv_b": 0.1 * n(ks[10], (E,)),
            "wo": n(ks[11], (E, E), sE),
            "ln2_w": 1.0 + 0.1 * n(ks[12], (E,)), "ln2_b": 0.1 * n(ks[13], (E,)),
            "w1": n(ks[14], (E, E, 1), sE), "b1": 0.1 * n(ks[15], (E,)),
            "wd": 0.3 * n(ks[16], (E * exp_ratio, 1, 3)),
            "bd": 0.1 * n(ks[17], (E * exp_ratio,)),
            "w2": n(ks[18], (E, E * exp_ratio, 1), sH), "b2": 0.1 * n(ks[19], (E,)),
        }

    return {
        "olpm_conv_w": 0.3 * jax.random.normal(k_olpm, (E, in_channels, patch_size), jnp.float32),
        "pos_emb": 0.5 * jax.random.normal(k_pos, (1, in_length // stride, E), jnp.float32),
        "layers": [make_layer(k) for k in layer_keys],
    }


if __name__ == "__main__":
    # Small config consistent with the module's forward.
    B = 2
    in_length, in_channels = 16, 4
    emb_dim, patch_size, stride = 32, 3, 2
    head_num, reduction_ratio, expantion_ratio, block_num = 2, 1, 2, 2
    assert reduction_ratio == 1  # TODO(synk): rr > 1 reducer path not implemented.

    key = jax.random.PRNGKey(0)
    k_params, k_x = jax.random.split(key)
    params = init_params(k_params, in_channels=in_channels, emb_dim=emb_dim,
                         patch_size=patch_size, stride=stride, in_length=in_length,
                         exp_ratio=expantion_ratio, block_num=block_num)
    x = jax.random.normal(k_x, (B, in_channels, in_length), jnp.float32)

    fwd = jax.jit(functools.partial(transformer_block_pallas,
                                    patch_size=patch_size, stride=stride,
                                    num_heads=head_num, exp_ratio=expantion_ratio))
    out = jax.block_until_ready(fwd(x, params))

    ref = transformer_block_reference(x, params, patch_size=patch_size, stride=stride,
                                      num_heads=head_num, exp_ratio=expantion_ratio)

    assert out.shape == (B, emb_dim, in_length // stride), out.shape
    max_err = float(jnp.max(jnp.abs(out - ref)))
    assert jnp.allclose(out, ref, atol=1e-3, rtol=1e-3), f"max abs err {max_err}"
    print("KERNEL_OK")
</pallas_src>

<mosaic_0001>
module attributes {stable_mosaic.version = 11 : i64} {
  func.func @_patch_embed_kernel(%arg0: i32, %arg1: memref<1x8x12xf32, #tpu.memory_space<vmem>>, %arg2: memref<12x32xf32, #tpu.memory_space<vmem>>, %arg3: memref<8x32xf32, #tpu.memory_space<vmem>>, %arg4: memref<1x8x32xf32, #tpu.memory_space<vmem>>) attributes {dimension_semantics = [#tpu.dimension_semantics<parallel>], iteration_bounds = array<i64: 2>, scalar_prefetch = 0 : i64, scratch_operands = 0 : i64, tpu.core_type = #tpu.core_type<tc>, window_params = [{transform_indices = @transform_0, window_bounds = array<i64: 1, 8, 12>}, {pipeline_mode = #tpu.pipeline_mode<synchronous>, transform_indices = @transform_1, window_bounds = array<i64: 12, 32>}, {pipeline_mode = #tpu.pipeline_mode<synchronous>, transform_indices = @transform_2, window_bounds = array<i64: 8, 32>}, {transform_indices = @transform_3, window_bounds = array<i64: 1, 8, 32>}]} {
    %c0 = arith.constant 0 : index
    %c0_0 = arith.constant 0 : index
    %c0_1 = arith.constant 0 : index
    %0 = vector.load %arg1[%c0, %c0_0, %c0_1] : memref<1x8x12xf32, #tpu.memory_space<vmem>>, vector<1x8x12xf32>
    %1 = vector.shape_cast %0 : vector<1x8x12xf32> to vector<8x12xf32>
    %c0_2 = arith.constant 0 : index
    %c0_3 = arith.constant 0 : index
    %2 = vector.load %arg2[%c0_2, %c0_3] : memref<12x32xf32, #tpu.memory_space<vmem>>, vector<12x32xf32>
    %cst = arith.constant dense<0.000000e+00> : vector<8x32xf32>
    %3 = tpu.matmul %1, %2, %cst {dimension_numbers = #tpu.dot_dimension_numbers<[1], [0], [0], [1], [0, 0, 1, 1], [], []>} : vector<8x12xf32>, vector<12x32xf32>, vector<8x32xf32> -> vector<8x32xf32>
    %c0_4 = arith.constant 0 : index
    %c0_5 = arith.constant 0 : index
    %4 = vector.load %arg3[%c0_4, %c0_5] : memref<8x32xf32, #tpu.memory_space<vmem>>, vector<8x32xf32>
    %5 = arith.addf %3, %4 : vector<8x32xf32>
    %c0_6 = arith.constant 0 : index
    %c0_7 = arith.constant 0 : index
    %c0_8 = arith.constant 0 : index
    %6 = vector.load %arg4[%c0_6, %c0_7, %c0_8] : memref<1x8x32xf32, #tpu.memory_space<vmem>>, vector<1x8x32xf32>
    %7 = vector.shape_cast %6 : vector<1x8x32xf32> to vector<8x32xf32>
    %8 = vector.shape_cast %5 : vector<8x32xf32> to vector<1x8x32xf32>
    tpu.vector_store %arg4[%c0_6, %c0_7, %c0_8], %8 {strides = array<i32>} : memref<1x8x32xf32, #tpu.memory_space<vmem>>, vector<1x8x32xf32>,
    return
  }
  func.func @transform_0(%arg0: i32) -> (i32, i32, i32) {
    %c0_i32 = arith.constant 0 : i32
    %c0_i32_0 = arith.constant 0 : i32
    %c0_i32_1 = arith.constant 0 : i32
    return %arg0, %c0_i32, %c0_i32_0 : i32, i32, i32
  }
  func.func @transform_1(%arg0: i32) -> (i32, i32) {
    %c0_i32 = arith.constant 0 : i32
    %c0_i32_0 = arith.constant 0 : i32
    %c0_i32_1 = arith.constant 0 : i32
    return %c0_i32, %c0_i32_0 : i32, i32
  }
  func.func @transform_2(%arg0: i32) -> (i32, i32) {
    %c0_i32 = arith.constant 0 : i32
    %c0_i32_0 = arith.constant 0 : i32
    %c0_i32_1 = arith.constant 0 : i32
    return %c0_i32, %c0_i32_0 : i32, i32
  }
  func.func @transform_3(%arg0: i32) -> (i32, i32, i32) {
    %c0_i32 = arith.constant 0 : i32
    %c0_i32_0 = arith.constant 0 : i32
    %c0_i32_1 = arith.constant 0 : i32
    return %arg0, %c0_i32, %c0_i32_0 : i32, i32, i32
  }
}

module attributes {stable_mosaic.version = 11 : i64} {
  func.func @_encoder_layer_kernel(%arg0: i32, %arg1: memref<1x8x32xf32, #tpu.memory_space<vmem>>, %arg2: memref<1x32xf32, #tpu.memory_space<vmem>>, %arg3: memref<1x32xf32, #tpu.memory_space<vmem>>, %arg4: memref<32x32xf32, #tpu.memory_space<vmem>>, %arg5: memref<32x32xf32, #tpu.memory_space<vmem>>, %arg6: memref<32x32xf32, #tpu.memory_space<vmem>>, %arg7: memref<1x32xf32, #tpu.memory_space<vmem>>, %arg8: memref<1x32xf32, #tpu.memory_space<vmem>>, %arg9: memref<1x32xf32, #tpu.memory_space<vmem>>, %arg10: memref<1x32xf32, #tpu.memory_space<vmem>>, %arg11: memref<1x32xf32, #tpu.memory_space<vmem>>, %arg12: memref<1x32xf32, #tpu.memory_space<vmem>>, %arg13: memref<32x32xf32, #tpu.memory_space<vmem>>, %arg14: memref<1x32xf32, #tpu.memory_space<vmem>>, %arg15: memref<1x32xf32, #tpu.memory_space<vmem>>, %arg16: memref<32x32xf32, #tpu.memory_space<vmem>>, %arg17: memref<1x32xf32, #tpu.memory_space<vmem>>, %arg18: memref<3x2x1x32xf32, #tpu.memory_space<vmem>>, %arg19: memref<2x1x32xf32, #tpu.memory_space<vmem>>, %arg20: memref<2x32x32xf32, #tpu.memory_space<vmem>>, %arg21: memref<1x32xf32, #tpu.memory_space<vmem>>, %arg22: memref<1x8x32xf32, #tpu.memory_space<vmem>>) attributes {dimension_semantics = [#tpu.dimension_semantics<parallel>], iteration_bounds = array<i64: 2>, scalar_prefetch = 0 : i64, scratch_operands = 0 : i64, tpu.core_type = #tpu.core_type<tc>, window_params = [{transform_indices = @transform_0, window_bounds = array<i64: 1, 8, 32>}, {pipeline_mode = #tpu.pipeline_mode<synchronous>, transform_indices = @transform_1, window_bounds = array<i64: 1, 32>}, {pipeline_mode = #tpu.pipeline_mode<synchronous>, transform_indices = @transform_2, window_bounds = array<i64: 1, 32>}, {pipeline_mode = #tpu.pipeline_mode<synchronous>, transform_indices = @transform_3, window_bounds = array<i64: 32, 32>}, {pipeline_mode = #tpu.pipeline_mode<synchronous>, transform_indices = @transform_4, window_bounds = array<i64: 32, 32>}, {pipeline_mode = #tpu.pipeline_mode<synchronous>, transform_indices = @transform_5, window_bounds = array<i64: 32, 32>}, {pipeline_mode = #tpu.pipeline_mode<synchronous>, transform_indices = @transform_6, window_bounds = array<i64: 1, 32>}, {pipeline_mode = #tpu.pipeline_mode<synchronous>, transform_indices = @transform_7, window_bounds = array<i64: 1, 32>}, {pipeline_mode = #tpu.pipeline_mode<synchronous>, transform_indices = @transform_8, window_bounds = array<i64: 1, 32>}, {pipeline_mode = #tpu.pipeline_mode<synchronous>, transform_indices = @transform_9, window_bounds = array<i64: 1, 32>}, {pipeline_mode = #tpu.pipeline_mode<synchronous>, transform_indices = @transform_10, window_bounds = array<i64: 1, 32>}, {pipeline_mode = #tpu.pipeline_mode<synchronous>, transform_indices = @transform_11, window_bounds = array<i64: 1, 32>}, {pipeline_mode = #tpu.pipeline_mode<synchronous>, transform_indices = @transform_12, window_bounds = array<i64: 32, 32>}, {pipeline_mode = #tpu.pipeline_mode<synchronous>, transform_indices = @transform_13, window_bounds = array<i64: 1, 32>}, {pipeline_mode = #tpu.pipeline_mode<synchronous>, transform_indices = @transform_14, window_bounds = array<i64: 1, 32>}, {pipeline_mode = #tpu.pipeline_mode<synchronous>, transform_indices = @transform_15, window_bounds = array<i64: 32, 32>}, {pipeline_mode = #tpu.pipeline_mode<synchronous>, transform_indices = @transform_16, window_bounds = array<i64: 1, 32>}, {pipeline_mode = #tpu.pipeline_mode<synchronous>, transform_indices = @transform_17, window_bounds = array<i64: 3, 2, 1, 32>}, {pipeline_mode = #tpu.pipeline_mode<synchronous>, transform_indices = @transform_18, window_bounds = array<i64: 2, 1, 32>}, {pipeline_mode = #tpu.pipeline_mode<synchronous>, transform_indices = @transform_19, window_bounds = array<i64: 2, 32, 32>}, {pipeline_mode = #tpu.pipeline_mode<synchronous>, transform_indices = @transform_20, window_bounds = array<i64: 1, 32>}, {transform_indices = @transform_21, window_bounds = array<i64: 1, 8, 32>}]} {
    %c0 = arith.constant 0 : index
    %c0_0 = arith.constant 0 : index
    %c0_1 = arith.constant 0 : index
    %0 = vector.load %arg1[%c0, %c0_0, %c0_1] : memref<1x8x32xf32, #tpu.memory_space<vmem>>, vector<1x8x32xf32>
    %1 = vector.shape_cast %0 : vector<1x8x32xf32> to vector<8x32xf32>
    %c0_2 = arith.constant 0 : index
    %c0_3 = arith.constant 0 : index
    %2 = vector.load %arg2[%c0_2, %c0_3] : memref<1x32xf32, #tpu.memory_space<vmem>>, vector<1x32xf32>
    %c0_4 = arith.constant 0 : index
    %c0_5 = arith.constant 0 : index
    %3 = vector.load %arg3[%c0_4, %c0_5] : memref<1x32xf32, #tpu.memory_space<vmem>>, vector<1x32xf32>
    %cst = arith.constant dense<0.000000e+00> : vector<8xf32>
    %4 = vector.multi_reduction <add>, %1, %cst [1] : vector<8x32xf32> to vector<8xf32>
    %5 = vector.shape_cast %4 : vector<8xf32> to vector<8x1xf32>
    %cst_6 = arith.constant 3.200000e+01 : f32
    %6 = vector.broadcast %cst_6 : f32 to vector<8x1xf32>
    %7 = arith.divf %5, %6 : vector<8x1xf32>
    %8 = vector.broadcast %7 : vector<8x1xf32> to vector<8x32xf32>
    %9 = arith.subf %1, %8 : vector<8x32xf32>
    %10 = arith.mulf %9, %9 : vector<8x32xf32>
    %cst_7 = arith.constant dense<0.000000e+00> : vector<8xf32>
    %11 = vector.multi_reduction <add>, %10, %cst_7 [1] : vector<8x32xf32> to vector<8xf32>
    %12 = vector.shape_cast %11 : vector<8xf32> to vector<8x1xf32>
    %cst_8 = arith.constant 3.200000e+01 : f32
    %13 = vector.broadcast %cst_8 : f32 to vector<8x1xf32>
    %14 = arith.divf %12, %13 : vector<8x1xf32>
    %15 = vector.broadcast %7 : vector<8x1xf32> to vector<8x32xf32>
    %16 = arith.subf %1, %15 : vector<8x32xf32>
    %cst_9 = arith.constant 9.99999974E-6 : f32
    %17 = vector.broadcast %cst_9 : f32 to vector<8x1xf32>
    %18 = arith.addf %14, %17 : vector<8x1xf32>
    %19 = math.rsqrt %18 : vector<8x1xf32>
    %20 = vector.broadcast %19 : vector<8x1xf32> to vector<8x32xf32>
    %21 = arith.mulf %16, %20 : vector<8x32xf32>
    %22 = vector.broadcast %2 : vector<1x32xf32> to vector<8x32xf32>
    %23 = arith.mulf %21, %22 : vector<8x32xf32>
    %24 = vector.broadcast %3 : vector<1x32xf32> to vector<8x32xf32>
    %25 = arith.addf %23, %24 : vector<8x32xf32>
    %c0_10 = arith.constant 0 : index
    %c0_11 = arith.constant 0 : index
    %26 = vector.load %arg4[%c0_10, %c0_11] : memref<32x32xf32, #tpu.memory_space<vmem>>, vector<32x32xf32>
    %cst_12 = arith.constant dense<0.000000e+00> : vector<8x32xf32>
    %27 = tpu.matmul %25, %26, %cst_12 {dimension_numbers = #tpu.dot_dimension_numbers<[1], [0], [0], [1], [0, 0, 1, 1], [], []>} : vector<8x32xf32>, vector<32x32xf32>, vector<8x32xf32> -> vector<8x32xf32>
    %c0_13 = arith.constant 0 : index
    %c0_14 = arith.constant 0 : index
    %28 = vector.load %arg7[%c0_13, %c0_14] : memref<1x32xf32, #tpu.memory_space<vmem>>, vector<1x32xf32>
    %c0_15 = arith.constant 0 : index
    %c0_16 = arith.constant 0 : index
    %29 = vector.load %arg8[%c0_15, %c0_16] : memref<1x32xf32, #tpu.memory_space<vmem>>, vector<1x32xf32>
    %cst_17 = arith.constant dense<0.000000e+00> : vector<8xf32>
    %30 = vector.multi_reduction <add>, %27, %cst_17 [1] : vector<8x32xf32> to vector<8xf32>
    %31 = vector.shape_cast %30 : vector<8xf32> to vector<8x1xf32>
    %cst_18 = arith.constant 3.200000e+01 : f32
    %32 = vector.broadcast %cst_18 : f32 to vector<8x1xf32>
    %33 = arith.divf %31, %32 : vector<8x1xf32>
    %34 = vector.broadcast %33 : vector<8x1xf32> to vector<8x32xf32>
    %35 = arith.subf %27, %34 : vector<8x32xf32>
    %36 = arith.mulf %35, %35 : vector<8x32xf32>
    %cst_19 = arith.constant dense<0.000000e+00> : vector<8xf32>
    %37 = vector.multi_reduction <add>, %36, %cst_19 [1] : vector<8x32xf32> to vector<8xf32>
    %38 = vector.shape_cast %37 : vector<8xf32> to vector<8x1xf32>
    %cst_20 = arith.constant 3.200000e+01 : f32
    %39 = vector.broadcast %cst_20 : f32 to vector<8x1xf32>
    %40 = arith.divf %38, %39 : vector<8x1xf32>
    %41 = vector.broadcast %33 : vector<8x1xf32> to vector<8x32xf32>
    %42 = arith.subf %27, %41 : vector<8x32xf32>
    %cst_21 = arith.constant 9.99999974E-6 : f32
    %43 = vector.broadcast %cst_21 : f32 to vector<8x1xf32>
    %44 = arith.addf %40, %43 : vector<8x1xf32>
    %45 = math.rsqrt %44 : vector<8x1xf32>
    %46 = vector.broadcast %45 : vector<8x1xf32> to vector<8x32xf32>
    %47 = arith.mulf %42, %46 : vector<8x32xf32>
    %48 = vector.broadcast %28 : vector<1x32xf32> to vector<8x32xf32>
    %49 = arith.mulf %47, %48 : vector<8x32xf32>
    %50 = vector.broadcast %29 : vector<1x32xf32> to vector<8x32xf32>
    %51 = arith.addf %49, %50 : vector<8x32xf32>
    %c0_22 = arith.constant 0 : index
    %c0_23 = arith.constant 0 : index
    %52 = vector.load %arg5[%c0_22, %c0_23] : memref<32x32xf32, #tpu.memory_space<vmem>>, vector<32x32xf32>
    %cst_24 = arith.constant dense<0.000000e+00> : vector<8x32xf32>
    %53 = tpu.matmul %25, %52, %cst_24 {dimension_numbers = #tpu.dot_dimension_numbers<[1], [0], [0], [1], [0, 0, 1, 1], [], []>} : vector<8x32xf32>, vector<32x32xf32>, vector<8x32xf32> -> vector<8x32xf32>
    %c0_25 = arith.constant 0 : index
    %c0_26 = arith.constant 0 : index
    %54 = vector.load %arg9[%c0_25, %c0_26] : memref<1x32xf32, #tpu.memory_space<vmem>>, vector<1x32xf32>
    %c0_27 = arith.constant 0 : index
    %c0_28 = arith.constant 0 : index
    %55 = vector.load %arg10[%c0_27, %c0_28] : memref<1x32xf32, #tpu.memory_space<vmem>>, vector<1x32xf32>
    %cst_29 = arith.constant dense<0.000000e+00> : vector<8xf32>
    %56 = vector.multi_reduction <add>, %53, %cst_29 [1] : vector<8x32xf32> to vector<8xf32>
    %57 = vector.shape_cast %56 : vector<8xf32> to vector<8x1xf32>
    %cst_30 = arith.constant 3.200000e+01 : f32
    %58 = vector.broadcast %cst_30 : f32 to vector<8x1xf32>
    %59 = arith.divf %57, %58 : vector<8x1xf32>
    %60 = vector.broadcast %59 : vector<8x1xf32> to vector<8x32xf32>
    %61 = arith.subf %53, %60 : vector<8x32xf32>
    %62 = arith.mulf %61, %61 : vector<8x32xf32>
    %cst_31 = arith.constant dense<0.000000e+00> : vector<8xf32>
    %63 = vector.multi_reduction <add>, %62, %cst_31 [1] : vector<8x32xf32> to vector<8xf32>
    %64 = vector.shape_cast %63 : vector<8xf32> to vector<8x1xf32>
    %cst_32 = arith.constant 3.200000e+01 : f32
    %65 = vector.broadcast %cst_32 : f32 to vector<8x1xf32>
    %66 = arith.divf %64, %65 : vector<8x1xf32>
    %67 = vector.broadcast %59 : vector<8x1xf32> to vector<8x32xf32>
    %68 = arith.subf %53, %67 : vector<8x32xf32>
    %cst_33 = arith.constant 9.99999974E-6 : f32
    %69 = vector.broadcast %cst_33 : f32 to vector<8x1xf32>
    %70 = arith.addf %66, %69 : vector<8x1xf32>
    %71 = math.rsqrt %70 : vector<8x1xf32>
    %72 = vector.broadcast %71 : vector<8x1xf32> to vector<8x32xf32>
    %73 = arith.mulf %68, %72 : vector<8x32xf32>
    %74 = vector.broadcast %54 : vector<1x32xf32> to vector<8x32xf32>
    %75 = arith.mulf %73, %74 : vector<8x32xf32>
    %76 = vector.broadcast %55 : vector<1x32xf32> to vector<8x32xf32>
    %77 = arith.addf %75, %76 : vector<8x32xf32>
    %c0_34 = arith.constant 0 : index
    %c0_35 = arith.constant 0 : index
    %78 = vector.load %arg6[%c0_34, %c0_35] : memref<32x32xf32, #tpu.memory_space<vmem>>, vector<32x32xf32>
    %cst_36 = arith.constant dense<0.000000e+00> : vector<8x32xf32>
    %79 = tpu.matmul %25, %78, %cst_36 {dimension_numbers = #tpu.dot_dimension_numbers<[1], [0], [0], [1], [0, 0, 1, 1], [], []>} : vector<8x32xf32>, vector<32x32xf32>, vector<8x32xf32> -> vector<8x32xf32>
    %c0_37 = arith.constant 0 : index
    %c0_38 = arith.constant 0 : index
    %80 = vector.load %arg11[%c0_37, %c0_38] : memref<1x32xf32, #tpu.memory_space<vmem>>, vector<1x32xf32>
    %c0_39 = arith.constant 0 : index
    %c0_40 = arith.constant 0 : index
    %81 = vector.load %arg12[%c0_39, %c0_40] : memref<1x32xf32, #tpu.memory_space<vmem>>, vector<1x32xf32>
    %cst_41 = arith.constant dense<0.000000e+00> : vector<8xf32>
    %82 = vector.multi_reduction <add>, %79, %cst_41 [1] : vector<8x32xf32> to vector<8xf32>
    %83 = vector.shape_cast %82 : vector<8xf32> to vector<8x1xf32>
    %cst_42 = arith.constant 3.200000e+01 : f32
    %84 = vector.broadcast %cst_42 : f32 to vector<8x1xf32>
    %85 = arith.divf %83, %84 : vector<8x1xf32>
    %86 = vector.broadcast %85 : vector<8x1xf32> to vector<8x32xf32>
    %87 = arith.subf %79, %86 : vector<8x32xf32>
    %88 = arith.mulf %87, %87 : vector<8x32xf32>
    %cst_43 = arith.constant dense<0.000000e+00> : vector<8xf32>
    %89 = vector.multi_reduction <add>, %88, %cst_43 [1] : vector<8x32xf32> to vector<8xf32>
    %90 = vector.shape_cast %89 : vector<8xf32> to vector<8x1xf32>
    %cst_44 = arith.constant 3.200000e+01 : f32
    %91 = vector.broadcast %cst_44 : f32 to vector<8x1xf32>
    %92 = arith.divf %90, %91 : vector<8x1xf32>
    %93 = vector.broadcast %85 : vector<8x1xf32> to vector<8x32xf32>
    %94 = arith.subf %79, %93 : vector<8x32xf32>
    %cst_45 = arith.constant 9.99999974E-6 : f32
    %95 = vector.broadcast %cst_45 : f32 to vector<8x1xf32>
    %96 = arith.addf %92, %95 : vector<8x1xf32>
    %97 = math.rsqrt %96 : vector<8x1xf32>
    %98 = vector.broadcast %97 : vector<8x1xf32> to vector<8x32xf32>
    %99 = arith.mulf %94, %98 : vector<8x32xf32>
    %100 = vector.broadcast %80 : vector<1x32xf32> to vector<8x32xf32>
    %101 = arith.mulf %99, %100 : vector<8x32xf32>
    %102 = vector.broadcast %81 : vector<1x32xf32> to vector<8x32xf32>
    %103 = arith.addf %101, %102 : vector<8x32xf32>
    %c0_46 = arith.constant 0 : index
    %c0_47 = arith.constant 0 : index
    %104 = vector.load %arg13[%c0_46, %c0_47] : memref<32x32xf32, #tpu.memory_space<vmem>>, vector<32x32xf32>
    %cst_48 = arith.constant 0.000000e+00 : f32
    %105 = vector.broadcast %cst_48 : f32 to vector<8x32xf32>
    %106 = vector.extract_strided_slice %51 {offsets = [0, 0], sizes = [8, 16], strides = [1, 1]} : vector<8x32xf32> to vector<8x16xf32>
    %107 = vector.extract_strided_slice %77 {offsets = [0, 0], sizes = [8, 16], strides = [1, 1]} : vector<8x32xf32> to vector<8x16xf32>
    %108 = vector.extract_strided_slice %103 {offsets = [0, 0], sizes = [8, 16], strides = [1, 1]} : vector<8x32xf32> to vector<8x16xf32>
    %cst_49 = arith.constant dense<0.000000e+00> : vector<8x8xf32>
    %109 = tpu.matmul %106, %107, %cst_49 {dimension_numbers = #tpu.dot_dimension_numbers<[1], [1], [0], [0], [0, 0, 1, 0], [], []>} : vector<8x16xf32>, vector<8x16xf32>, vector<8x8xf32> -> vector<8x8xf32>
    %cst_50 = arith.constant 2.500000e-01 : f32
    %110 = vector.broadcast %cst_50 : f32 to vector<8x8xf32>
    %111 = arith.mulf %109, %110 : vector<8x8xf32>
    %cst_51 = arith.constant dense<0xFF800000> : vector<8xf32>
    %112 = vector.multi_reduction <maximumf>, %111, %cst_51 [1] : vector<8x8xf32> to vector<8xf32>
    %113 = vector.shape_cast %112 : vector<8xf32> to vector<8x1xf32>
    %114 = vector.broadcast %113 : vector<8x1xf32> to vector<8x8xf32>
    %115 = arith.subf %111, %114 : vector<8x8xf32>
    %116 = math.exp %115 : vector<8x8xf32>
    %cst_52 = arith.constant dense<0.000000e+00> : vector<8xf32>
    %117 = vector.multi_reduction <add>, %116, %cst_52 [1] : vector<8x8xf32> to vector<8xf32>
    %118 = vector.shape_cast %117 : vector<8xf32> to vector<8x1xf32>
    %119 = vector.broadcast %118 : vector<8x1xf32> to vector<8x8xf32>
    %120 = arith.divf %116, %119 : vector<8x8xf32>
    %cst_53 = arith.constant dense<0.000000e+00> : vector<8x16xf32>
    %121 = tpu.matmul %120, %108, %cst_53 {dimension_numbers = #tpu.dot_dimension_numbers<[1], [0], [0], [1], [0, 0, 1, 1], [], []>} : vector<8x8xf32>, vector<8x16xf32>, vector<8x16xf32> -> vector<8x16xf32>
    %122 = vector.extract_strided_slice %104 {offsets = [0, 0], sizes = [16, 32], strides = [1, 1]} : vector<32x32xf32> to vector<16x32xf32>
    %cst_54 = arith.constant dense<0.000000e+00> : vector<8x32xf32>
    %123 = tpu.matmul %121, %122, %cst_54 {dimension_numbers = #tpu.dot_dimension_numbers<[1], [0], [0], [1], [0, 0, 1, 1], [], []>} : vector<8x16xf32>, vector<16x32xf32>, vector<8x32xf32> -> vector<8x32xf32>
    %124 = arith.addf %105, %123 : vector<8x32xf32>
    %125 = vector.extract_strided_slice %51 {offsets = [0, 16], sizes = [8, 16], strides = [1, 1]} : vector<8x32xf32> to vector<8x16xf32>
    %126 = vector.extract_strided_slice %77 {offsets = [0, 16], sizes = [8, 16], strides = [1, 1]} : vector<8x32xf32> to vector<8x16xf32>
    %127 = vector.extract_strided_slice %103 {offsets = [0, 16], sizes = [8, 16], strides = [1, 1]} : vector<8x32xf32> to vector<8x16xf32>
    %cst_55 = arith.constant dense<0.000000e+00> : vector<8x8xf32>
    %128 = tpu.matmul %125, %126, %cst_55 {dimension_numbers = #tpu.dot_dimension_numbers<[1], [1], [0], [0], [0, 0, 1, 0], [], []>} : vector<8x16xf32>, vector<8x16xf32>, vector<8x8xf32> -> vector<8x8xf32>
    %cst_56 = arith.constant 2.500000e-01 : f32
    %129 = vector.broadcast %cst_56 : f32 to vector<8x8xf32>
    %130 = arith.mulf %128, %129 : vector<8x8xf32>
    %cst_57 = arith.constant dense<0xFF800000> : vector<8xf32>
    %131 = vector.multi_reduction <maximumf>, %130, %cst_57 [1] : vector<8x8xf32> to vector<8xf32>
    %132 = vector.shape_cast %131 : vector<8xf32> to vector<8x1xf32>
    %133 = vector.broadcast %132 : vector<8x1xf32> to vector<8x8xf32>
    %134 = arith.subf %130, %133 : vector<8x8xf32>
    %135 = math.exp %134 : vector<8x8xf32>
    %cst_58 = arith.constant dense<0.000000e+00> : vector<8xf32>
    %136 = vector.multi_reduction <add>, %135, %cst_58 [1] : vector<8x8xf32> to vector<8xf32>
    %137 = vector.shape_cast %136 : vector<8xf32> to vector<8x1xf32>
    %138 = vector.broadcast %137 : vector<8x1xf32> to vector<8x8xf32>
    %139 = arith.divf %135, %138 : vector<8x8xf32>
    %cst_59 = arith.constant dense<0.000000e+00> : vector<8x16xf32>
    %140 = tpu.matmul %139, %127, %cst_59 {dimension_numbers = #tpu.dot_dimension_numbers<[1], [0], [0], [1], [0, 0, 1, 1], [], []>} : vector<8x8xf32>, vector<8x16xf32>, vector<8x16xf32> -> vector<8x16xf32>
    %141 = vector.extract_strided_slice %104 {offsets = [16, 0], sizes = [16, 32], strides = [1, 1]} : vector<32x32xf32> to vector<16x32xf32>
    %cst_60 = arith.constant dense<0.000000e+00> : vector<8x32xf32>
    %142 = tpu.matmul %140, %141, %cst_60 {dimension_numbers = #tpu.dot_dimension_numbers<[1], [0], [0], [1], [0, 0, 1, 1], [], []>} : vector<8x16xf32>, vector<16x32xf32>, vector<8x32xf32> -> vector<8x32xf32>
    %143 = arith.addf %124, %142 : vector<8x32xf32>
    %144 = arith.addf %143, %1 : vector<8x32xf32>
    %c0_61 = arith.constant 0 : index
    %c0_62 = arith.constant 0 : index
    %145 = vector.load %arg14[%c0_61, %c0_62] : memref<1x32xf32, #tpu.memory_space<vmem>>, vector<1x32xf32>
    %c0_63 = arith.constant 0 : index
    %c0_64 = arith.constant 0 : index
    %146 = vector.load %arg15[%c0_63, %c0_64] : memref<1x32xf32, #tpu.memory_space<vmem>>, vector<1x32xf32>
    %cst_65 = arith.constant dense<0.000000e+00> : vector<8xf32>
    %147 = vector.multi_reduction <add>, %144, %cst_65 [1] : vector<8x32xf32> to vector<8xf32>
    %148 = vector.shape_cast %147 : vector<8xf32> to vector<8x1xf32>
    %cst_66 = arith.constant 3.200000e+01 : f32
    %149 = vector.broadcast %cst_66 : f32 to vector<8x1xf32>
    %150 = arith.divf %148, %149 : vector<8x1xf32>
    %151 = vector.broadcast %150 : vector<8x1xf32> to vector<8x32xf32>
    %152 = arith.subf %144, %151 : vector<8x32xf32>
    %153 = arith.mulf %152, %152 : vector<8x32xf32>
    %cst_67 = arith.constant dense<0.000000e+00> : vector<8xf32>
    %154 = vector.multi_reduction <add>, %153, %cst_67 [1] : vector<8x32xf32> to vector<8xf32>
    %155 = vector.shape_cast %154 : vector<8xf32> to vector<8x1xf32>
    %cst_68 = arith.constant 3.200000e+01 : f32
    %156 = vector.broadcast %cst_68 : f32 to vector<8x1xf32>
    %157 = arith.divf %155, %156 : vector<8x1xf32>
    %158 = vector.broadcast %150 : vector<8x1xf32> to vector<8x32xf32>
    %159 = arith.subf %144, %158 : vector<8x32xf32>
    %cst_69 = arith.constant 9.99999974E-6 : f32
    %160 = vector.broadcast %cst_69 : f32 to vector<8x1xf32>
    %161 = arith.addf %157, %160 : vector<8x1xf32>
    %162 = math.rsqrt %161 : vector<8x1xf32>
    %163 = vector.broadcast %162 : vector<8x1xf32> to vector<8x32xf32>
    %164 = arith.mulf %159, %163 : vector<8x32xf32>
    %165 = vector.broadcast %145 : vector<1x32xf32> to vector<8x32xf32>
    %166 = arith.mulf %164, %165 : vector<8x32xf32>
    %167 = vector.broadcast %146 : vector<1x32xf32> to vector<8x32xf32>
    %168 = arith.addf %166, %167 : vector<8x32xf32>
    %c0_70 = arith.constant 0 : index
    %c0_71 = arith.constant 0 : index
    %169 = vector.load %arg16[%c0_70, %c0_71] : memref<32x32xf32, #tpu.memory_space<vmem>>, vector<32x32xf32>
    %cst_72 = arith.constant dense<0.000000e+00> : vector<8x32xf32>
    %170 = tpu.matmul %168, %169, %cst_72 {dimension_numbers = #tpu.dot_dimension_numbers<[1], [0], [0], [1], [0, 0, 1, 1], [], []>} : vector<8x32xf32>, vector<32x32xf32>, vector<8x32xf32> -> vector<8x32xf32>
    %c0_73 = arith.constant 0 : index
    %c0_74 = arith.constant 0 : index
    %171 = vector.load %arg17[%c0_73, %c0_74] : memref<1x32xf32, #tpu.memory_space<vmem>>, vector<1x32xf32>
    %172 = vector.broadcast %171 : vector<1x32xf32> to vector<8x32xf32>
    %173 = arith.addf %170, %172 : vector<8x32xf32>
    %c0_75 = arith.constant 0 : index
    %c0_76 = arith.constant 0 : index
    %c0_77 = arith.constant 0 : index
    %c0_78 = arith.constant 0 : index
    %174 = vector.load %arg18[%c0_75, %c0_76, %c0_77, %c0_78] : memref<3x2x1x32xf32, #tpu.memory_space<vmem>>, vector<3x2x1x32xf32>
    %c0_79 = arith.constant 0 : index
    %c0_80 = arith.constant 0 : index
    %c0_81 = arith.constant 0 : index
    %175 = vector.load %arg19[%c0_79, %c0_80, %c0_81] : memref<2x1x32xf32, #tpu.memory_space<vmem>>, vector<2x1x32xf32>
    %c0_82 = arith.constant 0 : index
    %c0_83 = arith.constant 0 : index
    %c0_84 = arith.constant 0 : index
    %176 = vector.load %arg20[%c0_82, %c0_83, %c0_84] : memref<2x32x32xf32, #tpu.memory_space<vmem>>, vector<2x32x32xf32>
    %cst_85 = arith.constant 0.000000e+00 : f32
    %177 = vector.broadcast %cst_85 : f32 to vector<1x32xf32>
    %178 = vector.extract_strided_slice %173 {offsets = [0, 0], sizes = [7, 32], strides = [1, 1]} : vector<8x32xf32> to vector<7x32xf32>
    %179 = tpu.concatenate %177, %178 in 0 : vector<1x32xf32>, vector<7x32xf32> -> vector<8x32xf32>
    %cst_86 = arith.constant 0.000000e+00 : f32
    %180 = vector.broadcast %cst_86 : f32 to vector<1x32xf32>
    %181 = vector.extract_strided_slice %173 {offsets = [1, 0], sizes = [7, 32], strides = [1, 1]} : vector<8x32xf32> to vector<7x32xf32>
    %182 = tpu.concatenate %181, %180 in 0 : vector<7x32xf32>, vector<1x32xf32> -> vector<8x32xf32>
    %cst_87 = arith.constant 0.000000e+00 : f32
    %183 = vector.broadcast %cst_87 : f32 to vector<8x32xf32>
    %184 = vector.extract_strided_slice %175 {offsets = [0, 0, 0], sizes = [1, 1, 32], strides = [1, 1, 1]} : vector<2x1x32xf32> to vector<1x1x32xf32>
    %185 = vector.shape_cast %184 : vector<1x1x32xf32> to vector<1x32xf32>
    %186 = vector.extract_strided_slice %174 {offsets = [0, 0, 0, 0], sizes = [1, 1, 1, 32], strides = [1, 1, 1, 1]} : vector<3x2x1x32xf32> to vector<1x1x1x32xf32>
    %187 = vector.shape_cast %186 : vector<1x1x1x32xf32> to vector<1x32xf32>
    %188 = vector.broadcast %187 : vector<1x32xf32> to vector<8x32xf32>
    %189 = arith.mulf %179, %188 : vector<8x32xf32>
    %190 = vector.broadcast %185 : vector<1x32xf32> to vector<8x32xf32>
    %191 = arith.addf %190, %189 : vector<8x32xf32>
    %192 = vector.extract_strided_slice %174 {offsets = [1, 0, 0, 0], sizes = [1, 1, 1, 32], strides = [1, 1, 1, 1]} : vector<3x2x1x32xf32> to vector<1x1x1x32xf32>
    %193 = vector.shape_cast %192 : vector<1x1x1x32xf32> to vector<1x32xf32>
    %194 = vector.broadcast %193 : vector<1x32xf32> to vector<8x32xf32>
    %195 = arith.mulf %173, %194 : vector<8x32xf32>
    %196 = arith.addf %191, %195 : vector<8x32xf32>
    %197 = vector.extract_strided_slice %174 {offsets = [2, 0, 0, 0], sizes = [1, 1, 1, 32], strides = [1, 1, 1, 1]} : vector<3x2x1x32xf32> to vector<1x1x1x32xf32>
    %198 = vector.shape_cast %197 : vector<1x1x1x32xf32> to vector<1x32xf32>
    %199 = vector.broadcast %198 : vector<1x32xf32> to vector<8x32xf32>
    %200 = arith.mulf %182, %199 : vector<8x32xf32>
    %201 = arith.addf %196, %200 : vector<8x32xf32>
    %cst_88 = arith.constant 5.000000e-01 : f32
    %202 = vector.broadcast %cst_88 : f32 to vector<8x32xf32>
    %203 = arith.mulf %202, %201 : vector<8x32xf32>
    %cst_89 = arith.constant 0.707106769 : f32
    %204 = vector.broadcast %cst_89 : f32 to vector<8x32xf32>
    %205 = arith.mulf %201, %204 : vector<8x32xf32>
    %cst_90 = arith.constant 0.000000e+00 : f32
    %206 = vector.broadcast %cst_90 : f32 to vector<8x32xf32>
    %207 = arith.cmpf olt, %205, %206 : vector<8x32xf32>
    %cst_91 = arith.constant -1.000000e+00 : f32
    %cst_92 = arith.constant 1.000000e+00 : f32
    %208 = vector.broadcast %cst_91 : f32 to vector<8x32xf32>
    %209 = vector.broadcast %cst_92 : f32 to vector<8x32xf32>
    %210 = arith.select %207, %208, %209 : vector<8x32xi1>, vector<8x32xf32>
    %211 = math.absf %205 : vector<8x32xf32>
    %cst_93 = arith.constant 0.327591091 : f32
    %212 = vector.broadcast %cst_93 : f32 to vector<8x32xf32>
    %213 = arith.mulf %212, %211 : vector<8x32xf32>
    %cst_94 = arith.constant 1.000000e+00 : f32
    %214 = vector.broadcast %cst_94 : f32 to vector<8x32xf32>
    %215 = arith.addf %214, %213 : vector<8x32xf32>
    %cst_95 = arith.constant 1.000000e+00 : f32
    %216 = vector.broadcast %cst_95 : f32 to vector<8x32xf32>
    %217 = arith.divf %216, %215 : vector<8x32xf32>
    %cst_96 = arith.constant 1.06140542 : f32
    %218 = vector.broadcast %cst_96 : f32 to vector<8x32xf32>
    %219 = arith.mulf %218, %217 : vector<8x32xf32>
    %cst_97 = arith.constant -1.45315206 : f32
    %220 = vector.broadcast %cst_97 : f32 to vector<8x32xf32>
    %221 = arith.addf %219, %220 : vector<8x32xf32>
    %222 = arith.mulf %221, %217 : vector<8x32xf32>
    %cst_98 = arith.constant 1.42141378 : f32
    %223 = vector.broadcast %cst_98 : f32 to vector<8x32xf32>
    %224 = arith.addf %222, %223 : vector<8x32xf32>
    %225 = arith.mulf %224, %217 : vector<8x32xf32>
    %cst_99 = arith.constant -0.284496725 : f32
    %226 = vector.broadcast %cst_99 : f32 to vector<8x32xf32>
    %227 = arith.addf %225, %226 : vector<8x32xf32>
    %228 = arith.mulf %227, %217 : vector<8x32xf32>
    %cst_100 = arith.constant 0.254829586 : f32
    %229 = vector.broadcast %cst_100 : f32 to vector<8x32xf32>
    %230 = arith.addf %228, %229 : vector<8x32xf32>
    %231 = arith.mulf %230, %217 : vector<8x32xf32>
    %cst_101 = arith.constant 0.000000e+00 : f32
    %232 = vector.broadcast %cst_101 : f32 to vector<8x32xf32>
    %233 = arith.subf %232, %211 : vector<8x32xf32>
    %234 = arith.mulf %233, %211 : vector<8x32xf32>
    %235 = math.exp %234 : vector<8x32xf32>
    %236 = arith.mulf %231, %235 : vector<8x32xf32>
    %cst_102 = arith.constant 1.000000e+00 : f32
    %237 = vector.broadcast %cst_102 : f32 to vector<8x32xf32>
    %238 = arith.subf %237, %236 : vector<8x32xf32>
    %239 = arith.mulf %210, %238 : vector<8x32xf32>
    %cst_103 = arith.constant 1.000000e+00 : f32
    %240 = vector.broadcast %cst_103 : f32 to vector<8x32xf32>
    %241 = arith.addf %240, %239 : vector<8x32xf32>
    %242 = arith.mulf %203, %241 : vector<8x32xf32>
    %243 = vector.extract_strided_slice %176 {offsets = [0, 0, 0], sizes = [1, 32, 32], strides = [1, 1, 1]} : vector<2x32x32xf32> to vector<1x32x32xf32>
    %244 = vector.shape_cast %243 : vector<1x32x32xf32> to vector<32x32xf32>
    %cst_104 = arith.constant dense<0.000000e+00> : vector<8x32xf32>
    %245 = tpu.matmul %242, %244, %cst_104 {dimension_numbers = #tpu.dot_dimension_numbers<[1], [0], [0], [1], [0, 0, 1, 1], [], []>} : vector<8x32xf32>, vector<32x32xf32>, vector<8x32xf32> -> vector<8x32xf32>
    %246 = arith.addf %183, %245 : vector<8x32xf32>
    %247 = vector.extract_strided_slice %175 {offsets = [1, 0, 0], sizes = [1, 1, 32], strides = [1, 1, 1]} : vector<2x1x32xf32> to vector<1x1x32xf32>
    %248 = vector.shape_cast %247 : vector<1x1x32xf32> to vector<1x32xf32>
    %249 = vector.extract_strided_slice %174 {offsets = [0, 1, 0, 0], sizes = [1, 1, 1, 32], strides = [1, 1, 1, 1]} : vector<3x2x1x32xf32> to vector<1x1x1x32xf32>
    %250 = vector.shape_cast %249 : vector<1x1x1x32xf32> to vector<1x32xf32>
    %251 = vector.broadcast %250 : vector<1x32xf32> to vector<8x32xf32>
    %252 = arith.mulf %179, %251 : vector<8x32xf32>
    %253 = vector.broadcast %248 : vector<1x32xf32> to vector<8x32xf32>
    %254 = arith.addf %253, %252 : vector<8x32xf32>
    %255 = vector.extract_strided_slice %174 {offsets = [1, 1, 0, 0], sizes = [1, 1, 1, 32], strides = [1, 1, 1, 1]} : vector<3x2x1x32xf32> to vector<1x1x1x32xf32>
    %256 = vector.shape_cast %255 : vector<1x1x1x32xf32> to vector<1x32xf32>
    %257 = vector.broadcast %256 : vector<1x32xf32> to vector<8x32xf32>
    %258 = arith.mulf %173, %257 : vector<8x32xf32>
    %259 = arith.addf %254, %258 : vector<8x32xf32>
    %260 = vector.extract_strided_slice %174 {offsets = [2, 1, 0, 0], sizes = [1, 1, 1, 32], strides = [1, 1, 1, 1]} : vector<3x2x1x32xf32> to vector<1x1x1x32xf32>
    %261 = vector.shape_cast %260 : vector<1x1x1x32xf32> to vector<1x32xf32>
    %262 = vector.broadcast %261 : vector<1x32xf32> to vector<8x32xf32>
    %263 = arith.mulf %182, %262 : vector<8x32xf32>
    %264 = arith.addf %259, %263 : vector<8x32xf32>
    %cst_105 = arith.constant 5.000000e-01 : f32
    %265 = vector.broadcast %cst_105 : f32 to vector<8x32xf32>
    %266 = arith.mulf %265, %264 : vector<8x32xf32>
    %cst_106 = arith.constant 0.707106769 : f32
    %267 = vector.broadcast %cst_106 : f32 to vector<8x32xf32>
    %268 = arith.mulf %264, %267 : vector<8x32xf32>
    %cst_107 = arith.constant 0.000000e+00 : f32
    %269 = vector.broadcast %cst_107 : f32 to vector<8x32xf32>
    %270 = arith.cmpf olt, %268, %269 : vector<8x32xf32>
    %cst_108 = arith.constant -1.000000e+00 : f32
    %cst_109 = arith.constant 1.000000e+00 : f32
    %271 = vector.broadcast %cst_108 : f32 to vector<8x32xf32>
    %272 = vector.broadcast %cst_109 : f32 to vector<8x32xf32>
    %273 = arith.select %270, %271, %272 : vector<8x32xi1>, vector<8x32xf32>
    %274 = math.absf %268 : vector<8x32xf32>
    %cst_110 = arith.constant 0.327591091 : f32
    %275 = vector.broadcast %cst_110 : f32 to vector<8x32xf32>
    %276 = arith.mulf %275, %274 : vector<8x32xf32>
    %cst_111 = arith.constant 1.000000e+00 : f32
    %277 = vector.broadcast %cst_111 : f32 to vector<8x32xf32>
    %278 = arith.addf %277, %276 : vector<8x32xf32>
    %cst_112 = arith.constant 1.000000e+00 : f32
    %279 = vector.broadcast %cst_112 : f32 to vector<8x32xf32>
    %280 = arith.divf %279, %278 : vector<8x32xf32>
    %cst_113 = arith.constant 1.06140542 : f32
    %281 = vector.broadcast %cst_113 : f32 to vector<8x32xf32>
    %282 = arith.mulf %281, %280 : vector<8x32xf32>
    %cst_114 = arith.constant -1.45315206 : f32
    %283 = vector.broadcast %cst_114 : f32 to vector<8x32xf32>
    %284 = arith.addf %282, %283 : vector<8x32xf32>
    %285 = arith.mulf %284, %280 : vector<8x32xf32>
    %cst_115 = arith.constant 1.42141378 : f32
    %286 = vector.broadcast %cst_115 : f32 to vector<8x32xf32>
    %287 = arith.addf %285, %286 : vector<8x32xf32>
    %288 = arith.mulf %287, %280 : vector<8x32xf32>
    %cst_116 = arith.constant -0.284496725 : f32
    %289 = vector.broadcast %cst_116 : f32 to vector<8x32xf32>
    %290 = arith.addf %288, %289 : vector<8x32xf32>
    %291 = arith.mulf %290, %280 : vector<8x32xf32>
    %cst_117 = arith.constant 0.254829586 : f32
    %292 = vector.broadcast %cst_117 : f32 to vector<8x32xf32>
    %293 = arith.addf %291, %292 : vector<8x32xf32>
    %294 = arith.mulf %293, %280 : vector<8x32xf32>
    %cst_118 = arith.constant 0.000000e+00 : f32
    %295 = vector.broadcast %cst_118 : f32 to vector<8x32xf32>
    %296 = arith.subf %295, %274 : vector<8x32xf32>
    %297 = arith.mulf %296, %274 : vector<8x32xf32>
    %298 = math.exp %297 : vector<8x32xf32>
    %299 = arith.mulf %294, %298 : vector<8x32xf32>
    %cst_119 = arith.constant 1.000000e+00 : f32
    %300 = vector.broadcast %cst_119 : f32 to vector<8x32xf32>
    %301 = arith.subf %300, %299 : vector<8x32xf32>
    %302 = arith.mulf %273, %301 : vector<8x32xf32>
    %cst_120 = arith.constant 1.000000e+00 : f32
    %303 = vector.broadcast %cst_120 : f32 to vector<8x32xf32>
    %304 = arith.addf %303, %302 : vector<8x32xf32>
    %305 = arith.mulf %266, %304 : vector<8x32xf32>
    %306 = vector.extract_strided_slice %176 {offsets = [1, 0, 0], sizes = [1, 32, 32], strides = [1, 1, 1]} : vector<2x32x32xf32> to vector<1x32x32xf32>
    %307 = vector.shape_cast %306 : vector<1x32x32xf32> to vector<32x32xf32>
    %cst_121 = arith.constant dense<0.000000e+00> : vector<8x32xf32>
    %308 = tpu.matmul %305, %307, %cst_121 {dimension_numbers = #tpu.dot_dimension_numbers<[1], [0], [0], [1], [0, 0, 1, 1], [], []>} : vector<8x32xf32>, vector<32x32xf32>, vector<8x32xf32> -> vector<8x32xf32>
    %309 = arith.addf %246, %308 : vector<8x32xf32>
    %c0_122 = arith.constant 0 : index
    %c0_123 = arith.constant 0 : index
    %310 = vector.load %arg21[%c0_122, %c0_123] : memref<1x32xf32, #tpu.memory_space<vmem>>, vector<1x32xf32>
    %311 = vector.broadcast %310 : vector<1x32xf32> to vector<8x32xf32>
    %312 = arith.addf %309, %311 : vector<8x32xf32>
    %313 = arith.addf %312, %144 : vector<8x32xf32>
    %c0_124 = arith.constant 0 : index
    %c0_125 = arith.constant 0 : index
    %c0_126 = arith.constant 0 : index
    %314 = vector.load %arg22[%c0_124, %c0_125, %c0_126] : memref<1x8x32xf32, #tpu.memory_space<vmem>>, vector<1x8x32xf32>
    %315 = vector.shape_cast %314 : vector<1x8x32xf32> to vector<8x32xf32>
    %316 = vector.shape_cast %313 : vector<8x32xf32> to vector<1x8x32xf32>
    tpu.vector_store %arg22[%c0_124, %c0_125, %c0_126], %316 {strides = array<i32>} : memref<1x8x32xf32, #tpu.memory_space<vmem>>, vector<1x8x32xf32>,
    return
  }
  func.func @transform_0(%arg0: i32) -> (i32, i32, i32) {
    %c0_i32 = arith.constant 0 : i32
    %c0_i32_0 = arith.constant 0 : i32
    %c0_i32_1 = arith.constant 0 : i32
    return %arg0, %c0_i32, %c0_i32_0 : i32, i32, i32
  }
  func.func @transform_1(%arg0: i32) -> (i32, i32) {
    %c0_i32 = arith.constant 0 : i32
    %c0_i32_0 = arith.constant 0 : i32
    %c0_i32_1 = arith.constant 0 : i32
    return %c0_i32, %c0_i32_0 : i32, i32
  }
  func.func @transform_2(%arg0: i32) -> (i32, i32) {
    %c0_i32 = arith.constant 0 : i32
    %c0_i32_0 = arith.constant 0 : i32
    %c0_i32_1 = arith.constant 0 : i32
    return %c0_i32, %c0_i32_0 : i32, i32
  }
  func.func @transform_3(%arg0: i32) -> (i32, i32) {
    %c0_i32 = arith.constant 0 : i32
    %c0_i32_0 = arith.constant 0 : i32
    %c0_i32_1 = arith.constant 0 : i32
    return %c0_i32, %c0_i32_0 : i32, i32
  }
  func.func @transform_4(%arg0: i32) -> (i32, i32) {
    %c0_i32 = arith.constant 0 : i32
    %c0_i32_0 = arith.constant 0 : i32
    %c0_i32_1 = arith.constant 0 : i32
    return %c0_i32, %c0_i32_0 : i32, i32
  }
  func.func @transform_5(%arg0: i32) -> (i32, i32) {
    %c0_i32 = arith.constant 0 : i32
    %c0_i32_0 = arith.constant 0 : i32
    %c0_i32_1 = arith.constant 0 : i32
    return %c0_i32, %c0_i32_0 : i32, i32
  }
  func.func @transform_6(%arg0: i32) -> (i32, i32) {
    %c0_i32 = arith.constant 0 : i32
    %c0_i32_0 = arith.constant 0 : i32
    %c0_i32_1 = arith.constant 0 : i32
    return %c0_i32, %c0_i32_0 : i32, i32
  }
  func.func @transform_7(%arg0: i32) -> (i32, i32) {
    %c0_i32 = arith.constant 0 : i32
    %c0_i32_0 = arith.constant 0 : i32
    %c0_i32_1 = arith.constant 0 : i32
    return %c0_i32, %c0_i32_0 : i32, i32
  }
  func.func @transform_8(%arg0: i32) -> (i32, i32) {
    %c0_i32 = arith.constant 0 : i32
    %c0_i32_0 = arith.constant 0 : i32
    %c0_i32_1 = arith.constant 0 : i32
    return %c0_i32, %c0_i32_0 : i32, i32
  }
  func.func @transform_9(%arg0: i32) -> (i32, i32) {
    %c0_i32 = arith.constant 0 : i32
    %c0_i32_0 = arith.constant 0 : i32
    %c0_i32_1 = arith.constant 0 : i32
    return %c0_i32, %c0_i32_0 : i32, i32
  }
  func.func @transform_10(%arg0: i32) -> (i32, i32) {
    %c0_i32 = arith.constant 0 : i32
    %c0_i32_0 = arith.constant 0 : i32
    %c0_i32_1 = arith.constant 0 : i32
    return %c0_i32, %c0_i32_0 : i32, i32
  }
  func.func @transform_11(%arg0: i32) -> (i32, i32) {
    %c0_i32 = arith.constant 0 : i32
    %c0_i32_0 = arith.constant 0 : i32
    %c0_i32_1 = arith.constant 0 : i32
    return %c0_i32, %c0_i32_0 : i32, i32
  }
  func.func @transform_12(%arg0: i32) -> (i32, i32) {
    %c0_i32 = arith.constant 0 : i32
    %c0_i32_0 = arith.constant 0 : i32
    %c0_i32_1 = arith.constant 0 : i32
    return %c0_i32, %c0_i32_0 : i32, i32
  }
  func.func @transform_13(%arg0: i32) -> (i32, i32) {
    %c0_i32 = arith.constant 0 : i32
    %c0_i32_0 = arith.constant 0 : i32
    %c0_i32_1 = arith.constant 0 : i32
    return %c0_i32, %c0_i32_0 : i32, i32
  }
  func.func @transform_14(%arg0: i32) -> (i32, i32) {
    %c0_i32 = arith.constant 0 : i32
    %c0_i32_0 = arith.constant 0 : i32
    %c0_i32_1 = arith.constant 0 : i32
    return %c0_i32, %c0_i32_0 : i32, i32
  }
  func.func @transform_15(%arg0: i32) -> (i32, i32) {
    %c0_i32 = arith.constant 0 : i32
    %c0_i32_0 = arith.constant 0 : i32
    %c0_i32_1 = arith.constant 0 : i32
    return %c0_i32, %c0_i32_0 : i32, i32
  }
  func.func @transform_16(%arg0: i32) -> (i32, i32) {
    %c0_i32 = arith.constant 0 : i32
    %c0_i32_0 = arith.constant 0 : i32
    %c0_i32_1 = arith.constant 0 : i32
    return %c0_i32, %c0_i32_0 : i32, i32
  }
  func.func @transform_17(%arg0: i32) -> (i32, i32, i32, i32) {
    %c0_i32 = arith.constant 0 : i32
    %c0_i32_0 = arith.constant 0 : i32
    %c0_i32_1 = arith.constant 0 : i32
    %c0_i32_2 = arith.constant 0 : i32
    %c0_i32_3 = arith.constant 0 : i32
    return %c0_i32, %c0_i32_0, %c0_i32_1, %c0_i32_2 : i32, i32, i32, i32
  }
  func.func @transform_18(%arg0: i32) -> (i32, i32, i32) {
    %c0_i32 = arith.constant 0 : i32
    %c0_i32_0 = arith.constant 0 : i32
    %c0_i32_1 = arith.constant 0 : i32
    %c0_i32_2 = arith.constant 0 : i32
    return %c0_i32, %c0_i32_0, %c0_i32_1 : i32, i32, i32
  }
  func.func @transform_19(%arg0: i32) -> (i32, i32, i32) {
    %c0_i32 = arith.constant 0 : i32
    %c0_i32_0 = arith.constant 0 : i32
    %c0_i32_1 = arith.constant 0 : i32
    %c0_i32_2 = arith.constant 0 : i32
    return %c0_i32, %c0_i32_0, %c0_i32_1 : i32, i32, i32
  }
  func.func @transform_20(%arg0: i32) -> (i32, i32) {
    %c0_i32 = arith.constant 0 : i32
    %c0_i32_0 = arith.constant 0 : i32
    %c0_i32_1 = arith.constant 0 : i32
    return %c0_i32, %c0_i32_0 : i32, i32
  }
  func.func @transform_21(%arg0: i32) -> (i32, i32, i32) {
    %c0_i32 = arith.constant 0 : i32
    %c0_i32_0 = arith.constant 0 : i32
    %c0_i32_1 = arith.constant 0 : i32
    return %arg0, %c0_i32, %c0_i32_0 : i32, i32, i32
  }
}

module attributes {stable_mosaic.version = 11 : i64} {
  func.func @_encoder_layer_kernel(%arg0: i32, %arg1: memref<1x8x32xf32, #tpu.memory_space<vmem>>, %arg2: memref<1x32xf32, #tpu.memory_space<vmem>>, %arg3: memref<1x32xf32, #tpu.memory_space<vmem>>, %arg4: memref<32x32xf32, #tpu.memory_space<vmem>>, %arg5: memref<32x32xf32, #tpu.memory_space<vmem>>, %arg6: memref<32x32xf32, #tpu.memory_space<vmem>>, %arg7: memref<1x32xf32, #tpu.memory_space<vmem>>, %arg8: memref<1x32xf32, #tpu.memory_space<vmem>>, %arg9: memref<1x32xf32, #tpu.memory_space<vmem>>, %arg10: memref<1x32xf32, #tpu.memory_space<vmem>>, %arg11: memref<1x32xf32, #tpu.memory_space<vmem>>, %arg12: memref<1x32xf32, #tpu.memory_space<vmem>>, %arg13: memref<32x32xf32, #tpu.memory_space<vmem>>, %arg14: memref<1x32xf32, #tpu.memory_space<vmem>>, %arg15: memref<1x32xf32, #tpu.memory_space<vmem>>, %arg16: memref<32x32xf32, #tpu.memory_space<vmem>>, %arg17: memref<1x32xf32, #tpu.memory_space<vmem>>, %arg18: memref<3x2x1x32xf32, #tpu.memory_space<vmem>>, %arg19: memref<2x1x32xf32, #tpu.memory_space<vmem>>, %arg20: memref<2x32x32xf32, #tpu.memory_space<vmem>>, %arg21: memref<1x32xf32, #tpu.memory_space<vmem>>, %arg22: memref<1x8x32xf32, #tpu.memory_space<vmem>>) attributes {dimension_semantics = [#tpu.dimension_semantics<parallel>], iteration_bounds = array<i64: 2>, scalar_prefetch = 0 : i64, scratch_operands = 0 : i64, tpu.core_type = #tpu.core_type<tc>, window_params = [{transform_indices = @transform_0, window_bounds = array<i64: 1, 8, 32>}, {pipeline_mode = #tpu.pipeline_mode<synchronous>, transform_indices = @transform_1, window_bounds = array<i64: 1, 32>}, {pipeline_mode = #tpu.pipeline_mode<synchronous>, transform_indices = @transform_2, window_bounds = array<i64: 1, 32>}, {pipeline_mode = #tpu.pipeline_mode<synchronous>, transform_indices = @transform_3, window_bounds = array<i64: 32, 32>}, {pipeline_mode = #tpu.pipeline_mode<synchronous>, transform_indices = @transform_4, window_bounds = array<i64: 32, 32>}, {pipeline_mode = #tpu.pipeline_mode<synchronous>, transform_indices = @transform_5, window_bounds = array<i64: 32, 32>}, {pipeline_mode = #tpu.pipeline_mode<synchronous>, transform_indices = @transform_6, window_bounds = array<i64: 1, 32>}, {pipeline_mode = #tpu.pipeline_mode<synchronous>, transform_indices = @transform_7, window_bounds = array<i64: 1, 32>}, {pipeline_mode = #tpu.pipeline_mode<synchronous>, transform_indices = @transform_8, window_bounds = array<i64: 1, 32>}, {pipeline_mode = #tpu.pipeline_mode<synchronous>, transform_indices = @transform_9, window_bounds = array<i64: 1, 32>}, {pipeline_mode = #tpu.pipeline_mode<synchronous>, transform_indices = @transform_10, window_bounds = array<i64: 1, 32>}, {pipeline_mode = #tpu.pipeline_mode<synchronous>, transform_indices = @transform_11, window_bounds = array<i64: 1, 32>}, {pipeline_mode = #tpu.pipeline_mode<synchronous>, transform_indices = @transform_12, window_bounds = array<i64: 32, 32>}, {pipeline_mode = #tpu.pipeline_mode<synchronous>, transform_indices = @transform_13, window_bounds = array<i64: 1, 32>}, {pipeline_mode = #tpu.pipeline_mode<synchronous>, transform_indices = @transform_14, window_bounds = array<i64: 1, 32>}, {pipeline_mode = #tpu.pipeline_mode<synchronous>, transform_indices = @transform_15, window_bounds = array<i64: 32, 32>}, {pipeline_mode = #tpu.pipeline_mode<synchronous>, transform_indices = @transform_16, window_bounds = array<i64: 1, 32>}, {pipeline_mode = #tpu.pipeline_mode<synchronous>, transform_indices = @transform_17, window_bounds = array<i64: 3, 2, 1, 32>}, {pipeline_mode = #tpu.pipeline_mode<synchronous>, transform_indices = @transform_18, window_bounds = array<i64: 2, 1, 32>}, {pipeline_mode = #tpu.pipeline_mode<synchronous>, transform_indices = @transform_19, window_bounds = array<i64: 2, 32, 32>}, {pipeline_mode = #tpu.pipeline_mode<synchronous>, transform_indices = @transform_20, window_bounds = array<i64: 1, 32>}, {transform_indices = @transform_21, window_bounds = array<i64: 1, 8, 32>}]} {
    %c0 = arith.constant 0 : index
    %c0_0 = arith.constant 0 : index
    %c0_1 = arith.constant 0 : index
    %0 = vector.load %arg1[%c0, %c0_0, %c0_1] : memref<1x8x32xf32, #tpu.memory_space<vmem>>, vector<1x8x32xf32>
    %1 = vector.shape_cast %0 : vector<1x8x32xf32> to vector<8x32xf32>
    %c0_2 = arith.constant 0 : index
    %c0_3 = arith.constant 0 : index
    %2 = vector.load %arg2[%c0_2, %c0_3] : memref<1x32xf32, #tpu.memory_space<vmem>>, vector<1x32xf32>
    %c0_4 = arith.constant 0 : index
    %c0_5 = arith.constant 0 : index
    %3 = vector.load %arg3[%c0_4, %c0_5] : memref<1x32xf32, #tpu.memory_space<vmem>>, vector<1x32xf32>
    %cst = arith.constant dense<0.000000e+00> : vector<8xf32>
    %4 = vector.multi_reduction <add>, %1, %cst [1] : vector<8x32xf32> to vector<8xf32>
    %5 = vector.shape_cast %4 : vector<8xf32> to vector<8x1xf32>
    %cst_6 = arith.constant 3.200000e+01 : f32
    %6 = vector.broadcast %cst_6 : f32 to vector<8x1xf32>
    %7 = arith.divf %5, %6 : vector<8x1xf32>
    %8 = vector.broadcast %7 : vector<8x1xf32> to vector<8x32xf32>
    %9 = arith.subf %1, %8 : vector<8x32xf32>
    %10 = arith.mulf %9, %9 : vector<8x32xf32>
    %cst_7 = arith.constant dense<0.000000e+00> : vector<8xf32>
    %11 = vector.multi_reduction <add>, %10, %cst_7 [1] : vector<8x32xf32> to vector<8xf32>
    %12 = vector.shape_cast %11 : vector<8xf32> to vector<8x1xf32>
    %cst_8 = arith.constant 3.200000e+01 : f32
    %13 = vector.broadcast %cst_8 : f32 to vector<8x1xf32>
    %14 = arith.divf %12, %13 : vector<8x1xf32>
    %15 = vector.broadcast %7 : vector<8x1xf32> to vector<8x32xf32>
    %16 = arith.subf %1, %15 : vector<8x32xf32>
    %cst_9 = arith.constant 9.99999974E-6 : f32
    %17 = vector.broadcast %cst_9 : f32 to vector<8x1xf32>
    %18 = arith.addf %14, %17 : vector<8x1xf32>
    %19 = math.rsqrt %18 : vector<8x1xf32>
    %20 = vector.broadcast %19 : vector<8x1xf32> to vector<8x32xf32>
    %21 = arith.mulf %16, %20 : vector<8x32xf32>
    %22 = vector.broadcast %2 : vector<1x32xf32> to vector<8x32xf32>
    %23 = arith.mulf %21, %22 : vector<8x32xf32>
    %24 = vector.broadcast %3 : vector<1x32xf32> to vector<8x32xf32>
    %25 = arith.addf %23, %24 : vector<8x32xf32>
    %c0_10 = arith.constant 0 : index
    %c0_11 = arith.constant 0 : index
    %26 = vector.load %arg4[%c0_10, %c0_11] : memref<32x32xf32, #tpu.memory_space<vmem>>, vector<32x32xf32>
    %cst_12 = arith.constant dense<0.000000e+00> : vector<8x32xf32>
    %27 = tpu.matmul %25, %26, %cst_12 {dimension_numbers = #tpu.dot_dimension_numbers<[1], [0], [0], [1], [0, 0, 1, 1], [], []>} : vector<8x32xf32>, vector<32x32xf32>, vector<8x32xf32> -> vector<8x32xf32>
    %c0_13 = arith.constant 0 : index
    %c0_14 = arith.constant 0 : index
    %28 = vector.load %arg7[%c0_13, %c0_14] : memref<1x32xf32, #tpu.memory_space<vmem>>, vector<1x32xf32>
    %c0_15 = arith.constant 0 : index
    %c0_16 = arith.constant 0 : index
    %29 = vector.load %arg8[%c0_15, %c0_16] : memref<1x32xf32, #tpu.memory_space<vmem>>, vector<1x32xf32>
    %cst_17 = arith.constant dense<0.000000e+00> : vector<8xf32>
    %30 = vector.multi_reduction <add>, %27, %cst_17 [1] : vector<8x32xf32> to vector<8xf32>
    %31 = vector.shape_cast %30 : vector<8xf32> to vector<8x1xf32>
    %cst_18 = arith.constant 3.200000e+01 : f32
    %32 = vector.broadcast %cst_18 : f32 to vector<8x1xf32>
    %33 = arith.divf %31, %32 : vector<8x1xf32>
    %34 = vector.broadcast %33 : vector<8x1xf32> to vector<8x32xf32>
    %35 = arith.subf %27, %34 : vector<8x32xf32>
    %36 = arith.mulf %35, %35 : vector<8x32xf32>
    %cst_19 = arith.constant dense<0.000000e+00> : vector<8xf32>
    %37 = vector.multi_reduction <add>, %36, %cst_19 [1] : vector<8x32xf32> to vector<8xf32>
    %38 = vector.shape_cast %37 : vector<8xf32> to vector<8x1xf32>
    %cst_20 = arith.constant 3.200000e+01 : f32
    %39 = vector.broadcast %cst_20 : f32 to vector<8x1xf32>
    %40 = arith.divf %38, %39 : vector<8x1xf32>
    %41 = vector.broadcast %33 : vector<8x1xf32> to vector<8x32xf32>
    %42 = arith.subf %27, %41 : vector<8x32xf32>
    %cst_21 = arith.constant 9.99999974E-6 : f32
    %43 = vector.broadcast %cst_21 : f32 to vector<8x1xf32>
    %44 = arith.addf %40, %43 : vector<8x1xf32>
    %45 = math.rsqrt %44 : vector<8x1xf32>
    %46 = vector.broadcast %45 : vector<8x1xf32> to vector<8x32xf32>
    %47 = arith.mulf %42, %46 : vector<8x32xf32>
    %48 = vector.broadcast %28 : vector<1x32xf32> to vector<8x32xf32>
    %49 = arith.mulf %47, %48 : vector<8x32xf32>
    %50 = vector.broadcast %29 : vector<1x32xf32> to vector<8x32xf32>
    %51 = arith.addf %49, %50 : vector<8x32xf32>
    %c0_22 = arith.constant 0 : index
    %c0_23 = arith.constant 0 : index
    %52 = vector.load %arg5[%c0_22, %c0_23] : memref<32x32xf32, #tpu.memory_space<vmem>>, vector<32x32xf32>
    %cst_24 = arith.constant dense<0.000000e+00> : vector<8x32xf32>
    %53 = tpu.matmul %25, %52, %cst_24 {dimension_numbers = #tpu.dot_dimension_numbers<[1], [0], [0], [1], [0, 0, 1, 1], [], []>} : vector<8x32xf32>, vector<32x32xf32>, vector<8x32xf32> -> vector<8x32xf32>
    %c0_25 = arith.constant 0 : index
    %c0_26 = arith.constant 0 : index
    %54 = vector.load %arg9[%c0_25, %c0_26] : memref<1x32xf32, #tpu.memory_space<vmem>>, vector<1x32xf32>
    %c0_27 = arith.constant 0 : index
    %c0_28 = arith.constant 0 : index
    %55 = vector.load %arg10[%c0_27, %c0_28] : memref<1x32xf32, #tpu.memory_space<vmem>>, vector<1x32xf32>
    %cst_29 = arith.constant dense<0.000000e+00> : vector<8xf32>
    %56 = vector.multi_reduction <add>, %53, %cst_29 [1] : vector<8x32xf32> to vector<8xf32>
    %57 = vector.shape_cast %56 : vector<8xf32> to vector<8x1xf32>
    %cst_30 = arith.constant 3.200000e+01 : f32
    %58 = vector.broadcast %cst_30 : f32 to vector<8x1xf32>
    %59 = arith.divf %57, %58 : vector<8x1xf32>
    %60 = vector.broadcast %59 : vector<8x1xf32> to vector<8x32xf32>
    %61 = arith.subf %53, %60 : vector<8x32xf32>
    %62 = arith.mulf %61, %61 : vector<8x32xf32>
    %cst_31 = arith.constant dense<0.000000e+00> : vector<8xf32>
    %63 = vector.multi_reduction <add>, %62, %cst_31 [1] : vector<8x32xf32> to vector<8xf32>
    %64 = vector.shape_cast %63 : vector<8xf32> to vector<8x1xf32>
    %cst_32 = arith.constant 3.200000e+01 : f32
    %65 = vector.broadcast %cst_32 : f32 to vector<8x1xf32>
    %66 = arith.divf %64, %65 : vector<8x1xf32>
    %67 = vector.broadcast %59 : vector<8x1xf32> to vector<8x32xf32>
    %68 = arith.subf %53, %67 : vector<8x32xf32>
    %cst_33 = arith.constant 9.99999974E-6 : f32
    %69 = vector.broadcast %cst_33 : f32 to vector<8x1xf32>
    %70 = arith.addf %66, %69 : vector<8x1xf32>
    %71 = math.rsqrt %70 : vector<8x1xf32>
    %72 = vector.broadcast %71 : vector<8x1xf32> to vector<8x32xf32>
    %73 = arith.mulf %68, %72 : vector<8x32xf32>
    %74 = vector.broadcast %54 : vector<1x32xf32> to vector<8x32xf32>
    %75 = arith.mulf %73, %74 : vector<8x32xf32>
    %76 = vector.broadcast %55 : vector<1x32xf32> to vector<8x32xf32>
    %77 = arith.addf %75, %76 : vector<8x32xf32>
    %c0_34 = arith.constant 0 : index
    %c0_35 = arith.constant 0 : index
    %78 = vector.load %arg6[%c0_34, %c0_35] : memref<32x32xf32, #tpu.memory_space<vmem>>, vector<32x32xf32>
    %cst_36 = arith.constant dense<0.000000e+00> : vector<8x32xf32>
    %79 = tpu.matmul %25, %78, %cst_36 {dimension_numbers = #tpu.dot_dimension_numbers<[1], [0], [0], [1], [0, 0, 1, 1], [], []>} : vector<8x32xf32>, vector<32x32xf32>, vector<8x32xf32> -> vector<8x32xf32>
    %c0_37 = arith.constant 0 : index
    %c0_38 = arith.constant 0 : index
    %80 = vector.load %arg11[%c0_37, %c0_38] : memref<1x32xf32, #tpu.memory_space<vmem>>, vector<1x32xf32>
    %c0_39 = arith.constant 0 : index
    %c0_40 = arith.constant 0 : index
    %81 = vector.load %arg12[%c0_39, %c0_40] : memref<1x32xf32, #tpu.memory_space<vmem>>, vector<1x32xf32>
    %cst_41 = arith.constant dense<0.000000e+00> : vector<8xf32>
    %82 = vector.multi_reduction <add>, %79, %cst_41 [1] : vector<8x32xf32> to vector<8xf32>
    %83 = vector.shape_cast %82 : vector<8xf32> to vector<8x1xf32>
    %cst_42 = arith.constant 3.200000e+01 : f32
    %84 = vector.broadcast %cst_42 : f32 to vector<8x1xf32>
    %85 = arith.divf %83, %84 : vector<8x1xf32>
    %86 = vector.broadcast %85 : vector<8x1xf32> to vector<8x32xf32>
    %87 = arith.subf %79, %86 : vector<8x32xf32>
    %88 = arith.mulf %87, %87 : vector<8x32xf32>
    %cst_43 = arith.constant dense<0.000000e+00> : vector<8xf32>
    %89 = vector.multi_reduction <add>, %88, %cst_43 [1] : vector<8x32xf32> to vector<8xf32>
    %90 = vector.shape_cast %89 : vector<8xf32> to vector<8x1xf32>
    %cst_44 = arith.constant 3.200000e+01 : f32
    %91 = vector.broadcast %cst_44 : f32 to vector<8x1xf32>
    %92 = arith.divf %90, %91 : vector<8x1xf32>
    %93 = vector.broadcast %85 : vector<8x1xf32> to vector<8x32xf32>
    %94 = arith.subf %79, %93 : vector<8x32xf32>
    %cst_45 = arith.constant 9.99999974E-6 : f32
    %95 = vector.broadcast %cst_45 : f32 to vector<8x1xf32>
    %96 = arith.addf %92, %95 : vector<8x1xf32>
    %97 = math.rsqrt %96 : vector<8x1xf32>
    %98 = vector.broadcast %97 : vector<8x1xf32> to vector<8x32xf32>
    %99 = arith.mulf %94, %98 : vector<8x32xf32>
    %100 = vector.broadcast %80 : vector<1x32xf32> to vector<8x32xf32>
    %101 = arith.mulf %99, %100 : vector<8x32xf32>
    %102 = vector.broadcast %81 : vector<1x32xf32> to vector<8x32xf32>
    %103 = arith.addf %101, %102 : vector<8x32xf32>
    %c0_46 = arith.constant 0 : index
    %c0_47 = arith.constant 0 : index
    %104 = vector.load %arg13[%c0_46, %c0_47] : memref<32x32xf32, #tpu.memory_space<vmem>>, vector<32x32xf32>
    %cst_48 = arith.constant 0.000000e+00 : f32
    %105 = vector.broadcast %cst_48 : f32 to vector<8x32xf32>
    %106 = vector.extract_strided_slice %51 {offsets = [0, 0], sizes = [8, 16], strides = [1, 1]} : vector<8x32xf32> to vector<8x16xf32>
    %107 = vector.extract_strided_slice %77 {offsets = [0, 0], sizes = [8, 16], strides = [1, 1]} : vector<8x32xf32> to vector<8x16xf32>
    %108 = vector.extract_strided_slice %103 {offsets = [0, 0], sizes = [8, 16], strides = [1, 1]} : vector<8x32xf32> to vector<8x16xf32>
    %cst_49 = arith.constant dense<0.000000e+00> : vector<8x8xf32>
    %109 = tpu.matmul %106, %107, %cst_49 {dimension_numbers = #tpu.dot_dimension_numbers<[1], [1], [0], [0], [0, 0, 1, 0], [], []>} : vector<8x16xf32>, vector<8x16xf32>, vector<8x8xf32> -> vector<8x8xf32>
    %cst_50 = arith.constant 2.500000e-01 : f32
    %110 = vector.broadcast %cst_50 : f32 to vector<8x8xf32>
    %111 = arith.mulf %109, %110 : vector<8x8xf32>
    %cst_51 = arith.constant dense<0xFF800000> : vector<8xf32>
    %112 = vector.multi_reduction <maximumf>, %111, %cst_51 [1] : vector<8x8xf32> to vector<8xf32>
    %113 = vector.shape_cast %112 : vector<8xf32> to vector<8x1xf32>
    %114 = vector.broadcast %113 : vector<8x1xf32> to vector<8x8xf32>
    %115 = arith.subf %111, %114 : vector<8x8xf32>
    %116 = math.exp %115 : vector<8x8xf32>
    %cst_52 = arith.constant dense<0.000000e+00> : vector<8xf32>
    %117 = vector.multi_reduction <add>, %116, %cst_52 [1] : vector<8x8xf32> to vector<8xf32>
    %118 = vector.shape_cast %117 : vector<8xf32> to vector<8x1xf32>
    %119 = vector.broadcast %118 : vector<8x1xf32> to vector<8x8xf32>
    %120 = arith.divf %116, %119 : vector<8x8xf32>
    %cst_53 = arith.constant dense<0.000000e+00> : vector<8x16xf32>
    %121 = tpu.matmul %120, %108, %cst_53 {dimension_numbers = #tpu.dot_dimension_numbers<[1], [0], [0], [1], [0, 0, 1, 1], [], []>} : vector<8x8xf32>, vector<8x16xf32>, vector<8x16xf32> -> vector<8x16xf32>
    %122 = vector.extract_strided_slice %104 {offsets = [0, 0], sizes = [16, 32], strides = [1, 1]} : vector<32x32xf32> to vector<16x32xf32>
    %cst_54 = arith.constant dense<0.000000e+00> : vector<8x32xf32>
    %123 = tpu.matmul %121, %122, %cst_54 {dimension_numbers = #tpu.dot_dimension_numbers<[1], [0], [0], [1], [0, 0, 1, 1], [], []>} : vector<8x16xf32>, vector<16x32xf32>, vector<8x32xf32> -> vector<8x32xf32>
    %124 = arith.addf %105, %123 : vector<8x32xf32>
    %125 = vector.extract_strided_slice %51 {offsets = [0, 16], sizes = [8, 16], strides = [1, 1]} : vector<8x32xf32> to vector<8x16xf32>
    %126 = vector.extract_strided_slice %77 {offsets = [0, 16], sizes = [8, 16], strides = [1, 1]} : vector<8x32xf32> to vector<8x16xf32>
    %127 = vector.extract_strided_slice %103 {offsets = [0, 16], sizes = [8, 16], strides = [1, 1]} : vector<8x32xf32> to vector<8x16xf32>
    %cst_55 = arith.constant dense<0.000000e+00> : vector<8x8xf32>
    %128 = tpu.matmul %125, %126, %cst_55 {dimension_numbers = #tpu.dot_dimension_numbers<[1], [1], [0], [0], [0, 0, 1, 0], [], []>} : vector<8x16xf32>, vector<8x16xf32>, vector<8x8xf32> -> vector<8x8xf32>
    %cst_56 = arith.constant 2.500000e-01 : f32
    %129 = vector.broadcast %cst_56 : f32 to vector<8x8xf32>
    %130 = arith.mulf %128, %129 : vector<8x8xf32>
    %cst_57 = arith.constant dense<0xFF800000> : vector<8xf32>
    %131 = vector.multi_reduction <maximumf>, %130, %cst_57 [1] : vector<8x8xf32> to vector<8xf32>
    %132 = vector.shape_cast %131 : vector<8xf32> to vector<8x1xf32>
    %133 = vector.broadcast %132 : vector<8x1xf32> to vector<8x8xf32>
    %134 = arith.subf %130, %133 : vector<8x8xf32>
    %135 = math.exp %134 : vector<8x8xf32>
    %cst_58 = arith.constant dense<0.000000e+00> : vector<8xf32>
    %136 = vector.multi_reduction <add>, %135, %cst_58 [1] : vector<8x8xf32> to vector<8xf32>
    %137 = vector.shape_cast %136 : vector<8xf32> to vector<8x1xf32>
    %138 = vector.broadcast %137 : vector<8x1xf32> to vector<8x8xf32>
    %139 = arith.divf %135, %138 : vector<8x8xf32>
    %cst_59 = arith.constant dense<0.000000e+00> : vector<8x16xf32>
    %140 = tpu.matmul %139, %127, %cst_59 {dimension_numbers = #tpu.dot_dimension_numbers<[1], [0], [0], [1], [0, 0, 1, 1], [], []>} : vector<8x8xf32>, vector<8x16xf32>, vector<8x16xf32> -> vector<8x16xf32>
    %141 = vector.extract_strided_slice %104 {offsets = [16, 0], sizes = [16, 32], strides = [1, 1]} : vector<32x32xf32> to vector<16x32xf32>
    %cst_60 = arith.constant dense<0.000000e+00> : vector<8x32xf32>
    %142 = tpu.matmul %140, %141, %cst_60 {dimension_numbers = #tpu.dot_dimension_numbers<[1], [0], [0], [1], [0, 0, 1, 1], [], []>} : vector<8x16xf32>, vector<16x32xf32>, vector<8x32xf32> -> vector<8x32xf32>
    %143 = arith.addf %124, %142 : vector<8x32xf32>
    %144 = arith.addf %143, %1 : vector<8x32xf32>
    %c0_61 = arith.constant 0 : index
    %c0_62 = arith.constant 0 : index
    %145 = vector.load %arg14[%c0_61, %c0_62] : memref<1x32xf32, #tpu.memory_space<vmem>>, vector<1x32xf32>
    %c0_63 = arith.constant 0 : index
    %c0_64 = arith.constant 0 : index
    %146 = vector.load %arg15[%c0_63, %c0_64] : memref<1x32xf32, #tpu.memory_space<vmem>>, vector<1x32xf32>
    %cst_65 = arith.constant dense<0.000000e+00> : vector<8xf32>
    %147 = vector.multi_reduction <add>, %144, %cst_65 [1] : vector<8x32xf32> to vector<8xf32>
    %148 = vector.shape_cast %147 : vector<8xf32> to vector<8x1xf32>
    %cst_66 = arith.constant 3.200000e+01 : f32
    %149 = vector.broadcast %cst_66 : f32 to vector<8x1xf32>
    %150 = arith.divf %148, %149 : vector<8x1xf32>
    %151 = vector.broadcast %150 : vector<8x1xf32> to vector<8x32xf32>
    %152 = arith.subf %144, %151 : vector<8x32xf32>
    %153 = arith.mulf %152, %152 : vector<8x32xf32>
    %cst_67 = arith.constant dense<0.000000e+00> : vector<8xf32>
    %154 = vector.multi_reduction <add>, %153, %cst_67 [1] : vector<8x32xf32> to vector<8xf32>
    %155 = vector.shape_cast %154 : vector<8xf32> to vector<8x1xf32>
    %cst_68 = arith.constant 3.200000e+01 : f32
    %156 = vector.broadcast %cst_68 : f32 to vector<8x1xf32>
    %157 = arith.divf %155, %156 : vector<8x1xf32>
    %158 = vector.broadcast %150 : vector<8x1xf32> to vector<8x32xf32>
    %159 = arith.subf %144, %158 : vector<8x32xf32>
    %cst_69 = arith.constant 9.99999974E-6 : f32
    %160 = vector.broadcast %cst_69 : f32 to vector<8x1xf32>
    %161 = arith.addf %157, %160 : vector<8x1xf32>
    %162 = math.rsqrt %161 : vector<8x1xf32>
    %163 = vector.broadcast %162 : vector<8x1xf32> to vector<8x32xf32>
    %164 = arith.mulf %159, %163 : vector<8x32xf32>
    %165 = vector.broadcast %145 : vector<1x32xf32> to vector<8x32xf32>
    %166 = arith.mulf %164, %165 : vector<8x32xf32>
    %167 = vector.broadcast %146 : vector<1x32xf32> to vector<8x32xf32>
    %168 = arith.addf %166, %167 : vector<8x32xf32>
    %c0_70 = arith.constant 0 : index
    %c0_71 = arith.constant 0 : index
    %169 = vector.load %arg16[%c0_70, %c0_71] : memref<32x32xf32, #tpu.memory_space<vmem>>, vector<32x32xf32>
    %cst_72 = arith.constant dense<0.000000e+00> : vector<8x32xf32>
    %170 = tpu.matmul %168, %169, %cst_72 {dimension_numbers = #tpu.dot_dimension_numbers<[1], [0], [0], [1], [0, 0, 1, 1], [], []>} : vector<8x32xf32>, vector<32x32xf32>, vector<8x32xf32> -> vector<8x32xf32>
    %c0_73 = arith.constant 0 : index
    %c0_74 = arith.constant 0 : index
    %171 = vector.load %arg17[%c0_73, %c0_74] : memref<1x32xf32, #tpu.memory_space<vmem>>, vector<1x32xf32>
    %172 = vector.broadcast %171 : vector<1x32xf32> to vector<8x32xf32>
    %173 = arith.addf %170, %172 : vector<8x32xf32>
    %c0_75 = arith.constant 0 : index
    %c0_76 = arith.constant 0 : index
    %c0_77 = arith.constant 0 : index
    %c0_78 = arith.constant 0 : index
    %174 = vector.load %arg18[%c0_75, %c0_76, %c0_77, %c0_78] : memref<3x2x1x32xf32, #tpu.memory_space<vmem>>, vector<3x2x1x32xf32>
    %c0_79 = arith.constant 0 : index
    %c0_80 = arith.constant 0 : index
    %c0_81 = arith.constant 0 : index
    %175 = vector.load %arg19[%c0_79, %c0_80, %c0_81] : memref<2x1x32xf32, #tpu.memory_space<vmem>>, vector<2x1x32xf32>
    %c0_82 = arith.constant 0 : index
    %c0_83 = arith.constant 0 : index
    %c0_84 = arith.constant 0 : index
    %176 = vector.load %arg20[%c0_82, %c0_83, %c0_84] : memref<2x32x32xf32, #tpu.memory_space<vmem>>, vector<2x32x32xf32>
    %cst_85 = arith.constant 0.000000e+00 : f32
    %177 = vector.broadcast %cst_85 : f32 to vector<1x32xf32>
    %178 = vector.extract_strided_slice %173 {offsets = [0, 0], sizes = [7, 32], strides = [1, 1]} : vector<8x32xf32> to vector<7x32xf32>
    %179 = tpu.concatenate %177, %178 in 0 : vector<1x32xf32>, vector<7x32xf32> -> vector<8x32xf32>
    %cst_86 = arith.constant 0.000000e+00 : f32
    %180 = vector.broadcast %cst_86 : f32 to vector<1x32xf32>
    %181 = vector.extract_strided_slice %173 {offsets = [1, 0], sizes = [7, 32], strides = [1, 1]} : vector<8x32xf32> to vector<7x32xf32>
    %182 = tpu.concatenate %181, %180 in 0 : vector<7x32xf32>, vector<1x32xf32> -> vector<8x32xf32>
    %cst_87 = arith.constant 0.000000e+00 : f32
    %183 = vector.broadcast %cst_87 : f32 to vector<8x32xf32>
    %184 = vector.extract_strided_slice %175 {offsets = [0, 0, 0], sizes = [1, 1, 32], strides = [1, 1, 1]} : vector<2x1x32xf32> to vector<1x1x32xf32>
    %185 = vector.shape_cast %184 : vector<1x1x32xf32> to vector<1x32xf32>
    %186 = vector.extract_strided_slice %174 {offsets = [0, 0, 0, 0], sizes = [1, 1, 1, 32], strides = [1, 1, 1, 1]} : vector<3x2x1x32xf32> to vector<1x1x1x32xf32>
    %187 = vector.shape_cast %186 : vector<1x1x1x32xf32> to vector<1x32xf32>
    %188 = vector.broadcast %187 : vector<1x32xf32> to vector<8x32xf32>
    %189 = arith.mulf %179, %188 : vector<8x32xf32>
    %190 = vector.broadcast %185 : vector<1x32xf32> to vector<8x32xf32>
    %191 = arith.addf %190, %189 : vector<8x32xf32>
    %192 = vector.extract_strided_slice %174 {offsets = [1, 0, 0, 0], sizes = [1, 1, 1, 32], strides = [1, 1, 1, 1]} : vector<3x2x1x32xf32> to vector<1x1x1x32xf32>
    %193 = vector.shape_cast %192 : vector<1x1x1x32xf32> to vector<1x32xf32>
    %194 = vector.broadcast %193 : vector<1x32xf32> to vector<8x32xf32>
    %195 = arith.mulf %173, %194 : vector<8x32xf32>
    %196 = arith.addf %191, %195 : vector<8x32xf32>
    %197 = vector.extract_strided_slice %174 {offsets = [2, 0, 0, 0], sizes = [1, 1, 1, 32], strides = [1, 1, 1, 1]} : vector<3x2x1x32xf32> to vector<1x1x1x32xf32>
    %198 = vector.shape_cast %197 : vector<1x1x1x32xf32> to vector<1x32xf32>
    %199 = vector.broadcast %198 : vector<1x32xf32> to vector<8x32xf32>
    %200 = arith.mulf %182, %199 : vector<8x32xf32>
    %201 = arith.addf %196, %200 : vector<8x32xf32>
    %cst_88 = arith.constant 5.000000e-01 : f32
    %202 = vector.broadcast %cst_88 : f32 to vector<8x32xf32>
    %203 = arith.mulf %202, %201 : vector<8x32xf32>
    %cst_89 = arith.constant 0.707106769 : f32
    %204 = vector.broadcast %cst_89 : f32 to vector<8x32xf32>
    %205 = arith.mulf %201, %204 : vector<8x32xf32>
    %cst_90 = arith.constant 0.000000e+00 : f32
    %206 = vector.broadcast %cst_90 : f32 to vector<8x32xf32>
    %207 = arith.cmpf olt, %205, %206 : vector<8x32xf32>
    %cst_91 = arith.constant -1.000000e+00 : f32
    %cst_92 = arith.constant 1.000000e+00 : f32
    %208 = vector.broadcast %cst_91 : f32 to vector<8x32xf32>
    %209 = vector.broadcast %cst_92 : f32 to vector<8x32xf32>
    %210 = arith.select %207, %208, %209 : vector<8x32xi1>, vector<8x32xf32>
    %211 = math.absf %205 : vector<8x32xf32>
    %cst_93 = arith.constant 0.327591091 : f32
    %212 = vector.broadcast %cst_93 : f32 to vector<8x32xf32>
    %213 = arith.mulf %212, %211 : vector<8x32xf32>
    %cst_94 = arith.constant 1.000000e+00 : f32
    %214 = vector.broadcast %cst_94 : f32 to vector<8x32xf32>
    %215 = arith.addf %214, %213 : vector<8x32xf32>
    %cst_95 = arith.constant 1.000000e+00 : f32
    %216 = vector.broadcast %cst_95 : f32 to vector<8x32xf32>
    %217 = arith.divf %216, %215 : vector<8x32xf32>
    %cst_96 = arith.constant 1.06140542 : f32
    %218 = vector.broadcast %cst_96 : f32 to vector<8x32xf32>
    %219 = arith.mulf %218, %217 : vector<8x32xf32>
    %cst_97 = arith.constant -1.45315206 : f32
    %220 = vector.broadcast %cst_97 : f32 to vector<8x32xf32>
    %221 = arith.addf %219, %220 : vector<8x32xf32>
    %222 = arith.mulf %221, %217 : vector<8x32xf32>
    %cst_98 = arith.constant 1.42141378 : f32
    %223 = vector.broadcast %cst_98 : f32 to vector<8x32xf32>
    %224 = arith.addf %222, %223 : vector<8x32xf32>
    %225 = arith.mulf %224, %217 : vector<8x32xf32>
    %cst_99 = arith.constant -0.284496725 : f32
    %226 = vector.broadcast %cst_99 : f32 to vector<8x32xf32>
    %227 = arith.addf %225, %226 : vector<8x32xf32>
    %228 = arith.mulf %227, %217 : vector<8x32xf32>
    %cst_100 = arith.constant 0.254829586 : f32
    %229 = vector.broadcast %cst_100 : f32 to vector<8x32xf32>
    %230 = arith.addf %228, %229 : vector<8x32xf32>
    %231 = arith.mulf %230, %217 : vector<8x32xf32>
    %cst_101 = arith.constant 0.000000e+00 : f32
    %232 = vector.broadcast %cst_101 : f32 to vector<8x32xf32>
    %233 = arith.subf %232, %211 : vector<8x32xf32>
    %234 = arith.mulf %233, %211 : vector<8x32xf32>
    %235 = math.exp %234 : vector<8x32xf32>
    %236 = arith.mulf %231, %235 : vector<8x32xf32>
    %cst_102 = arith.constant 1.000000e+00 : f32
    %237 = vector.broadcast %cst_102 : f32 to vector<8x32xf32>
    %238 = arith.subf %237, %236 : vector<8x32xf32>
    %239 = arith.mulf %210, %238 : vector<8x32xf32>
    %cst_103 = arith.constant 1.000000e+00 : f32
    %240 = vector.broadcast %cst_103 : f32 to vector<8x32xf32>
    %241 = arith.addf %240, %239 : vector<8x32xf32>
    %242 = arith.mulf %203, %241 : vector<8x32xf32>
    %243 = vector.extract_strided_slice %176 {offsets = [0, 0, 0], sizes = [1, 32, 32], strides = [1, 1, 1]} : vector<2x32x32xf32> to vector<1x32x32xf32>
    %244 = vector.shape_cast %243 : vector<1x32x32xf32> to vector<32x32xf32>
    %cst_104 = arith.constant dense<0.000000e+00> : vector<8x32xf32>
    %245 = tpu.matmul %242, %244, %cst_104 {dimension_numbers = #tpu.dot_dimension_numbers<[1], [0], [0], [1], [0, 0, 1, 1], [], []>} : vector<8x32xf32>, vector<32x32xf32>, vector<8x32xf32> -> vector<8x32xf32>
    %246 = arith.addf %183, %245 : vector<8x32xf32>
    %247 = vector.extract_strided_slice %175 {offsets = [1, 0, 0], sizes = [1, 1, 32], strides = [1, 1, 1]} : vector<2x1x32xf32> to vector<1x1x32xf32>
    %248 = vector.shape_cast %247 : vector<1x1x32xf32> to vector<1x32xf32>
    %249 = vector.extract_strided_slice %174 {offsets = [0, 1, 0, 0], sizes = [1, 1, 1, 32], strides = [1, 1, 1, 1]} : vector<3x2x1x32xf32> to vector<1x1x1x32xf32>
    %250 = vector.shape_cast %249 : vector<1x1x1x32xf32> to vector<1x32xf32>
    %251 = vector.broadcast %250 : vector<1x32xf32> to vector<8x32xf32>
    %252 = arith.mulf %179, %251 : vector<8x32xf32>
    %253 = vector.broadcast %248 : vector<1x32xf32> to vector<8x32xf32>
    %254 = arith.addf %253, %252 : vector<8x32xf32>
    %255 = vector.extract_strided_slice %174 {offsets = [1, 1, 0, 0], sizes = [1, 1, 1, 32], strides = [1, 1, 1, 1]} : vector<3x2x1x32xf32> to vector<1x1x1x32xf32>
    %256 = vector.shape_cast %255 : vector<1x1x1x32xf32> to vector<1x32xf32>
    %257 = vector.broadcast %256 : vector<1x32xf32> to vector<8x32xf32>
    %258 = arith.mulf %173, %257 : vector<8x32xf32>
    %259 = arith.addf %254, %258 : vector<8x32xf32>
    %260 = vector.extract_strided_slice %174 {offsets = [2, 1, 0, 0], sizes = [1, 1, 1, 32], strides = [1, 1, 1, 1]} : vector<3x2x1x32xf32> to vector<1x1x1x32xf32>
    %261 = vector.shape_cast %260 : vector<1x1x1x32xf32> to vector<1x32xf32>
    %262 = vector.broadcast %261 : vector<1x32xf32> to vector<8x32xf32>
    %263 = arith.mulf %182, %262 : vector<8x32xf32>
    %264 = arith.addf %259, %263 : vector<8x32xf32>
    %cst_105 = arith.constant 5.000000e-01 : f32
    %265 = vector.broadcast %cst_105 : f32 to vector<8x32xf32>
    %266 = arith.mulf %265, %264 : vector<8x32xf32>
    %cst_106 = arith.constant 0.707106769 : f32
    %267 = vector.broadcast %cst_106 : f32 to vector<8x32xf32>
    %268 = arith.mulf %264, %267 : vector<8x32xf32>
    %cst_107 = arith.constant 0.000000e+00 : f32
    %269 = vector.broadcast %cst_107 : f32 to vector<8x32xf32>
    %270 = arith.cmpf olt, %268, %269 : vector<8x32xf32>
    %cst_108 = arith.constant -1.000000e+00 : f32
    %cst_109 = arith.constant 1.000000e+00 : f32
    %271 = vector.broadcast %cst_108 : f32 to vector<8x32xf32>
    %272 = vector.broadcast %cst_109 : f32 to vector<8x32xf32>
    %273 = arith.select %270, %271, %272 : vector<8x32xi1>, vector<8x32xf32>
    %274 = math.absf %268 : vector<8x32xf32>
    %cst_110 = arith.constant 0.327591091 : f32
    %275 = vector.broadcast %cst_110 : f32 to vector<8x32xf32>
    %276 = arith.mulf %275, %274 : vector<8x32xf32>
    %cst_111 = arith.constant 1.000000e+00 : f32
    %277 = vector.broadcast %cst_111 : f32 to vector<8x32xf32>
    %278 = arith.addf %277, %276 : vector<8x32xf32>
    %cst_112 = arith.constant 1.000000e+00 : f32
    %279 = vector.broadcast %cst_112 : f32 to vector<8x32xf32>
    %280 = arith.divf %279, %278 : vector<8x32xf32>
    %cst_113 = arith.constant 1.06140542 : f32
    %281 = vector.broadcast %cst_113 : f32 to vector<8x32xf32>
    %282 = arith.mulf %281, %280 : vector<8x32xf32>
    %cst_114 = arith.constant -1.45315206 : f32
    %283 = vector.broadcast %cst_114 : f32 to vector<8x32xf32>
    %284 = arith.addf %282, %283 : vector<8x32xf32>
    %285 = arith.mulf %284, %280 : vector<8x32xf32>
    %cst_115 = arith.constant 1.42141378 : f32
    %286 = vector.broadcast %cst_115 : f32 to vector<8x32xf32>
    %287 = arith.addf %285, %286 : vector<8x32xf32>
    %288 = arith.mulf %287, %280 : vector<8x32xf32>
    %cst_116 = arith.constant -0.284496725 : f32
    %289 = vector.broadcast %cst_116 : f32 to vector<8x32xf32>
    %290 = arith.addf %288, %289 : vector<8x32xf32>
    %291 = arith.mulf %290, %280 : vector<8x32xf32>
    %cst_117 = arith.constant 0.254829586 : f32
    %292 = vector.broadcast %cst_117 : f32 to vector<8x32xf32>
    %293 = arith.addf %291, %292 : vector<8x32xf32>
    %294 = arith.mulf %293, %280 : vector<8x32xf32>
    %cst_118 = arith.constant 0.000000e+00 : f32
    %295 = vector.broadcast %cst_118 : f32 to vector<8x32xf32>
    %296 = arith.subf %295, %274 : vector<8x32xf32>
    %297 = arith.mulf %296, %274 : vector<8x32xf32>
    %298 = math.exp %297 : vector<8x32xf32>
    %299 = arith.mulf %294, %298 : vector<8x32xf32>
    %cst_119 = arith.constant 1.000000e+00 : f32
    %300 = vector.broadcast %cst_119 : f32 to vector<8x32xf32>
    %301 = arith.subf %300, %299 : vector<8x32xf32>
    %302 = arith.mulf %273, %301 : vector<8x32xf32>
    %cst_120 = arith.constant 1.000000e+00 : f32
    %303 = vector.broadcast %cst_120 : f32 to vector<8x32xf32>
    %304 = arith.addf %303, %302 : vector<8x32xf32>
    %305 = arith.mulf %266, %304 : vector<8x32xf32>
    %306 = vector.extract_strided_slice %176 {offsets = [1, 0, 0], sizes = [1, 32, 32], strides = [1, 1, 1]} : vector<2x32x32xf32> to vector<1x32x32xf32>
    %307 = vector.shape_cast %306 : vector<1x32x32xf32> to vector<32x32xf32>
    %cst_121 = arith.constant dense<0.000000e+00> : vector<8x32xf32>
    %308 = tpu.matmul %305, %307, %cst_121 {dimension_numbers = #tpu.dot_dimension_numbers<[1], [0], [0], [1], [0, 0, 1, 1], [], []>} : vector<8x32xf32>, vector<32x32xf32>, vector<8x32xf32> -> vector<8x32xf32>
    %309 = arith.addf %246, %308 : vector<8x32xf32>
    %c0_122 = arith.constant 0 : index
    %c0_123 = arith.constant 0 : index
    %310 = vector.load %arg21[%c0_122, %c0_123] : memref<1x32xf32, #tpu.memory_space<vmem>>, vector<1x32xf32>
    %311 = vector.broadcast %310 : vector<1x32xf32> to vector<8x32xf32>
    %312 = arith.addf %309, %311 : vector<8x32xf32>
    %313 = arith.addf %312, %144 : vector<8x32xf32>
    %c0_124 = arith.constant 0 : index
    %c0_125 = arith.constant 0 : index
    %c0_126 = arith.constant 0 : index
    %314 = vector.load %arg22[%c0_124, %c0_125, %c0_126] : memref<1x8x32xf32, #tpu.memory_space<vmem>>, vector<1x8x32xf32>
    %315 = vector.shape_cast %314 : vector<1x8x32xf32> to vector<8x32xf32>
    %316 = vector.shape_cast %313 : vector<8x32xf32> to vector<1x8x32xf32>
    tpu.vector_store %arg22[%c0_124, %c0_125, %c0_126], %316 {strides = array<i32>} : memref<1x8x32xf32, #tpu.memory_space<vmem>>, vector<1x8x32xf32>,
    return
  }
  func.func @transform_0(%arg0: i32) -> (i32, i32, i32) {
    %c0_i32 = arith.constant 0 : i32
    %c0_i32_0 = arith.constant 0 : i32
    %c0_i32_1 = arith.constant 0 : i32
    return %arg0, %c0_i32, %c0_i32_0 : i32, i32, i32
  }
  func.func @transform_1(%arg0: i32) -> (i32, i32) {
    %c0_i32 = arith.constant 0 : i32
    %c0_i32_0 = arith.constant 0 : i32
    %c0_i32_1 = arith.constant 0 : i32
    return %c0_i32, %c0_i32_0 : i32, i32
  }
  func.func @transform_2(%arg0: i32) -> (i32, i32) {
    %c0_i32 = arith.constant 0 : i32
    %c0_i32_0 = arith.constant 0 : i32
    %c0_i32_1 = arith.constant 0 : i32
    return %c0_i32, %c0_i32_0 : i32, i32
  }
  func.func @transform_3(%arg0: i32) -> (i32, i32) {
    %c0_i32 = arith.constant 0 : i32
    %c0_i32_0 = arith.constant 0 : i32
    %c0_i32_1 = arith.constant 0 : i32
    return %c0_i32, %c0_i32_0 : i32, i32
  }
  func.func @transform_4(%arg0: i32) -> (i32, i32) {
    %c0_i32 = arith.constant 0 : i32
    %c0_i32_0 = arith.constant 0 : i32
    %c0_i32_1 = arith.constant 0 : i32
    return %c0_i32, %c0_i32_0 : i32, i32
  }
  func.func @transform_5(%arg0: i32) -> (i32, i32) {
    %c0_i32 = arith.constant 0 : i32
    %c0_i32_0 = arith.constant 0 : i32
    %c0_i32_1 = arith.constant 0 : i32
    return %c0_i32, %c0_i32_0 : i32, i32
  }
  func.func @transform_6(%arg0: i32) -> (i32, i32) {
    %c0_i32 = arith.constant 0 : i32
    %c0_i32_0 = arith.constant 0 : i32
    %c0_i32_1 = arith.constant 0 : i32
    return %c0_i32, %c0_i32_0 : i32, i32
  }
  func.func @transform_7(%arg0: i32) -> (i32, i32) {
    %c0_i32 = arith.constant 0 : i32
    %c0_i32_0 = arith.constant 0 : i32
    %c0_i32_1 = arith.constant 0 : i32
    return %c0_i32, %c0_i32_0 : i32, i32
  }
  func.func @transform_8(%arg0: i32) -> (i32, i32) {
    %c0_i32 = arith.constant 0 : i32
    %c0_i32_0 = arith.constant 0 : i32
    %c0_i32_1 = arith.constant 0 : i32
    return %c0_i32, %c0_i32_0 : i32, i32
  }
  func.func @transform_9(%arg0: i32) -> (i32, i32) {
    %c0_i32 = arith.constant 0 : i32
    %c0_i32_0 = arith.constant 0 : i32
    %c0_i32_1 = arith.constant 0 : i32
    return %c0_i32, %c0_i32_0 : i32, i32
  }
  func.func @transform_10(%arg0: i32) -> (i32, i32) {
    %c0_i32 = arith.constant 0 : i32
    %c0_i32_0 = arith.constant 0 : i32
    %c0_i32_1 = arith.constant 0 : i32
    return %c0_i32, %c0_i32_0 : i32, i32
  }
  func.func @transform_11(%arg0: i32) -> (i32, i32) {
    %c0_i32 = arith.constant 0 : i32
    %c0_i32_0 = arith.constant 0 : i32
    %c0_i32_1 = arith.constant 0 : i32
    return %c0_i32, %c0_i32_0 : i32, i32
  }
  func.func @transform_12(%arg0: i32) -> (i32, i32) {
    %c0_i32 = arith.constant 0 : i32
    %c0_i32_0 = arith.constant 0 : i32
    %c0_i32_1 = arith.constant 0 : i32
    return %c0_i32, %c0_i32_0 : i32, i32
  }
  func.func @transform_13(%arg0: i32) -> (i32, i32) {
    %c0_i32 = arith.constant 0 : i32
    %c0_i32_0 = arith.constant 0 : i32
    %c0_i32_1 = arith.constant 0 : i32
    return %c0_i32, %c0_i32_0 : i32, i32
  }
  func.func @transform_14(%arg0: i32) -> (i32, i32) {
    %c0_i32 = arith.constant 0 : i32
    %c0_i32_0 = arith.constant 0 : i32
    %c0_i32_1 = arith.constant 0 : i32
    return %c0_i32, %c0_i32_0 : i32, i32
  }
  func.func @transform_15(%arg0: i32) -> (i32, i32) {
    %c0_i32 = arith.constant 0 : i32
    %c0_i32_0 = arith.constant 0 : i32
    %c0_i32_1 = arith.constant 0 : i32
    return %c0_i32, %c0_i32_0 : i32, i32
  }
  func.func @transform_16(%arg0: i32) -> (i32, i32) {
    %c0_i32 = arith.constant 0 : i32
    %c0_i32_0 = arith.constant 0 : i32
    %c0_i32_1 = arith.constant 0 : i32
    return %c0_i32, %c0_i32_0 : i32, i32
  }
  func.func @transform_17(%arg0: i32) -> (i32, i32, i32, i32) {
    %c0_i32 = arith.constant 0 : i32
    %c0_i32_0 = arith.constant 0 : i32
    %c0_i32_1 = arith.constant 0 : i32
    %c0_i32_2 = arith.constant 0 : i32
    %c0_i32_3 = arith.constant 0 : i32
    return %c0_i32, %c0_i32_0, %c0_i32_1, %c0_i32_2 : i32, i32, i32, i32
  }
  func.func @transform_18(%arg0: i32) -> (i32, i32, i32) {
    %c0_i32 = arith.constant 0 : i32
    %c0_i32_0 = arith.constant 0 : i32
    %c0_i32_1 = arith.constant 0 : i32
    %c0_i32_2 = arith.constant 0 : i32
    return %c0_i32, %c0_i32_0, %c0_i32_1 : i32, i32, i32
  }
  func.func @transform_19(%arg0: i32) -> (i32, i32, i32) {
    %c0_i32 = arith.constant 0 : i32
    %c0_i32_0 = arith.constant 0 : i32
    %c0_i32_1 = arith.constant 0 : i32
    %c0_i32_2 = arith.constant 0 : i32
    return %c0_i32, %c0_i32_0, %c0_i32_1 : i32, i32, i32
  }
  func.func @transform_20(%arg0: i32) -> (i32, i32) {
    %c0_i32 = arith.constant 0 : i32
    %c0_i32_0 = arith.constant 0 : i32
    %c0_i32_1 = arith.constant 0 : i32
    return %c0_i32, %c0_i32_0 : i32, i32
  }
  func.func @transform_21(%arg0: i32) -> (i32, i32, i32) {
    %c0_i32 = arith.constant 0 : i32
    %c0_i32_0 = arith.constant 0 : i32
    %c0_i32_1 = arith.constant 0 : i32
    return %arg0, %c0_i32, %c0_i32_0 : i32, i32, i32
  }
}

</mosaic_0001>

<llo_original>
// kernel: squeeze.7
$region0: #{squeeze.7}
  %s0 = inlined_call_operand.vmem [shape: f32[64,3], index: 0, kind: input, shape index: {}]
  %s1 = inlined_call_operand.vmem [shape: f32[32,2,3], index: 1, kind: output, shape index: {}]
  $region1: #{squeeze.7} parent=0
    #allocation0 [shape = 'u8[4096]{0}', space=vmem, size = 0x1000, scoped, tag = 'scoped mem for input reshape']
    %s3 = sshllo.u32 0, 4
    %v4 = vld [vmem:[%s0] sm:%s3]
    %5 = vst [vmem:[#allocation0] sm:%s3] %v4
    %v6 = vld [vmem:[#allocation0] sm:$0x7]
    %vm7 = vcmask 15360
    %8 = vst.msk [vmem:[%s1] sm:$0x1] %vm7, %v6
    %s9 = scalar_lea.vmem %s1, 31
    %10 = vst.msk [vmem:[%s9] sm:$0x2] %vm7, %v6
    %s11 = scalar_lea.vmem %s1, 62
    %12 = vst.msk [vmem:[%s11] sm:$0x4] %vm7, %v6
    %v13 = vld [vmem:[#allocation0] sm:$0x7]
    %14 = vrot.lane.b32.xlu0 %v13, 126
    %v15 = vpop.permute.xlu0 %14
    %vm16 = vcmask 15360
    %s17 = scalar_lea.vmem %s1, 1
    %18 = vst.msk [vmem:[%s17] sm:$0x1] %vm16, %v15
    %s19 = scalar_lea.vmem %s1, 32
    %20 = vst.msk [vmem:[%s19] sm:$0x2] %vm16, %v15
    %s21 = scalar_lea.vmem %s1, 63
    %22 = vst.msk [vmem:[%s21] sm:$0x4] %vm16, %v15
    %v23 = vld [vmem:[#allocation0] sm:$0x7]
    %24 = vrot.lane.b32.xlu0 %v23, 124
    %v25 = vpop.permute.xlu0 %24
    %vm26 = vcmask 15360
    %s27 = scalar_lea.vmem %s1, 2
    %28 = vst.msk [vmem:[%s27] sm:$0x1] %vm26, %v25
    %s29 = scalar_lea.vmem %s1, 33
    %30 = vst.msk [vmem:[%s29] sm:$0x2] %vm26, %v25
    %s31 = scalar_lea.vmem %s1, 64
    %32 = vst.msk [vmem:[%s31] sm:$0x4] %vm26, %v25
    %v33 = vld [vmem:[#allocation0] sm:$0x7]
    %34 = vrot.lane.b32.xlu0 %v33, 122
    %v35 = vpop.permute.xlu0 %34
    %vm36 = vcmask 15360
    %s37 = scalar_lea.vmem %s1, 3
    %38 = vst.msk [vmem:[%s37] sm:$0x1] %vm36, %v35
    %s39 = scalar_lea.vmem %s1, 34
    %40 = vst.msk [vmem:[%s39] sm:$0x2] %vm36, %v35
    %s41 = scalar_lea.vmem %s1, 65
    %42 = vst.msk [vmem:[%s41] sm:$0x4] %vm36, %v35
    %v43 = vld [vmem:[#allocation0] sm:$0x7]
    %44 = vrot.lane.b32.xlu0 %v43, 120
    %v45 = vpop.permute.xlu0 %44
    %vm46 = vcmask 15360
    %s47 = scalar_lea.vmem %s1, 4
    %48 = vst.msk [vmem:[%s47] sm:$0x1] %vm46, %v45
    %s49 = scalar_lea.vmem %s1, 35
    %50 = vst.msk [vmem:[%s49] sm:$0x2] %vm46, %v45
    %s51 = scalar_lea.vmem %s1, 66
    %52 = vst.msk [vmem:[%s51] sm:$0x4] %vm46, %v45
    %v53 = vld [vmem:[#allocation0] sm:$0x7]
    %54 = vrot.lane.b32.xlu0 %v53, 118
    %v55 = vpop.permute.xlu0 %54
    %vm56 = vcmask 15360
    %s57 = scalar_lea.vmem %s1, 5
    %58 = vst.msk [vmem:[%s57] sm:$0x1] %vm56, %v55
    %s59 = scalar_lea.vmem %s1, 36
    %60 = vst.msk [vmem:[%s59] sm:$0x2] %vm56, %v55
    %s61 = scalar_lea.vmem %s1, 67
    %62 = vst.msk [vmem:[%s61] sm:$0x4] %vm56, %v55
    %v63 = vld [vmem:[#allocation0] sm:$0x7]
    %64 = vrot.lane.b32.xlu0 %v63, 116
    %v65 = vpop.permute.xlu0 %64
    %vm66 = vcmask 15360
    %s67 = scalar_lea.vmem %s1, 6
    %68 = vst.msk [vmem:[%s67] sm:$0x1] %vm66, %v65
    %s69 = scalar_lea.vmem %s1, 37
    %70 = vst.msk [vmem:[%s69] sm:$0x2] %vm66, %v65
    %s71 = scalar_lea.vmem %s1, 68
    %72 = vst.msk [vmem:[%s71] sm:$0x4] %vm66, %v65
    %v73 = vld [vmem:[#allocation0] sm:$0x7]
    %74 = vrot.lane.b32.xlu0 %v73, 114
    %v75 = vpop.permute.xlu0 %74
    %vm76 = vcmask 15360
    %s77 = scalar_lea.vmem %s1, 7
    %78 = vst.msk [vmem:[%s77] sm:$0x1] %vm76, %v75
    %s79 = scalar_lea.vmem %s1, 38
    %80 = vst.msk [vmem:[%s79] sm:$0x2] %vm76, %v75
    %s81 = scalar_lea.vmem %s1, 69
    %82 = vst.msk [vmem:[%s81] sm:$0x4] %vm76, %v75
    %v83 = vld [vmem:[#allocation0] sm:$0x7]
    %84 = vrot.lane.b32.xlu0 %v83, 112
    %v85 = vpop.permute.xlu0 %84
    %vm86 = vcmask 15360
    %s87 = scalar_lea.vmem %s1, 8
    %88 = vst.msk [vmem:[%s87] sm:$0x1] %vm86, %v85
    %s89 = scalar_lea.vmem %s1, 39
    %90 = vst.msk [vmem:[%s89] sm:$0x2] %vm86, %v85
    %s91 = scalar_lea.vmem %s1, 70
    %92 = vst.msk [vmem:[%s91] sm:$0x4] %vm86, %v85
    %v93 = vld [vmem:[#allocation0] sm:$0x7]
    %94 = vrot.lane.b32.xlu0 %v93, 110
    %v95 = vpop.permute.xlu0 %94
    %vm96 = vcmask 15360
    %s97 = scalar_lea.vmem %s1, 9
    %98 = vst.msk [vmem:[%s97] sm:$0x1] %vm96, %v95
    %s99 = scalar_lea.vmem %s1, 40
    %100 = vst.msk [vmem:[%s99] sm:$0x2] %vm96, %v95
    %s101 = scalar_lea.vmem %s1, 71
    %102 = vst.msk [vmem:[%s101] sm:$0x4] %vm96, %v95
    %v103 = vld [vmem:[#allocation0] sm:$0x7]
    %104 = vrot.lane.b32.xlu0 %v103, 108
    %v105 = vpop.permute.xlu0 %104
    %vm106 = vcmask 15360
    %s107 = scalar_lea.vmem %s1, 10
    %108 = vst.msk [vmem:[%s107] sm:$0x1] %vm106, %v105
    %s109 = scalar_lea.vmem %s1, 41
    %110 = vst.msk [vmem:[%s109] sm:$0x2] %vm106, %v105
    %s111 = scalar_lea.vmem %s1, 72
    %112 = vst.msk [vmem:[%s111] sm:$0x4] %vm106, %v105
    %v113 = vld [vmem:[#allocation0] sm:$0x7]
    %114 = vrot.lane.b32.xlu0 %v113, 106
    %v115 = vpop.permute.xlu0 %114
    %vm116 = vcmask 15360
    %s117 = scalar_lea.vmem %s1, 11
    %118 = vst.msk [vmem:[%s117] sm:$0x1] %vm116, %v115
    %s119 = scalar_lea.vmem %s1, 42
    %120 = vst.msk [vmem:[%s119] sm:$0x2] %vm116, %v115
    %s121 = scalar_lea.vmem %s1, 73
    %122 = vst.msk [vmem:[%s121] sm:$0x4] %vm116, %v115
    %v123 = vld [vmem:[#allocation0] sm:$0x7]
    %124 = vrot.lane.b32.xlu0 %v123, 104
    %v125 = vpop.permute.xlu0 %124
    %vm126 = vcmask 15360
    %s127 = scalar_lea.vmem %s1, 12
    %128 = vst.msk [vmem:[%s127] sm:$0x1] %vm126, %v125
    %s129 = scalar_lea.vmem %s1, 43
    %130 = vst.msk [vmem:[%s129] sm:$0x2] %vm126, %v125
    %s131 = scalar_lea.vmem %s1, 74
    %132 = vst.msk [vmem:[%s131] sm:$0x4] %vm126, %v125
    %v133 = vld [vmem:[#allocation0] sm:$0x7]
    %134 = vrot.lane.b32.xlu0 %v133, 102
    %v135 = vpop.permute.xlu0 %134
    %vm136 = vcmask 15360
    %s137 = scalar_lea.vmem %s1, 13
    %138 = vst.msk [vmem:[%s137] sm:$0x1] %vm136, %v135
    %s139 = scalar_lea.vmem %s1, 44
    %140 = vst.msk [vmem:[%s139] sm:$0x2] %vm136, %v135
    %s141 = scalar_lea.vmem %s1, 75
    %142 = vst.msk [vmem:[%s141] sm:$0x4] %vm136, %v135
    %v143 = vld [vmem:[#allocation0] sm:$0x7]
    %144 = vrot.lane.b32.xlu0 %v143, 100
    %v145 = vpop.permute.xlu0 %144
    %vm146 = vcmask 15360
    %s147 = scalar_lea.vmem %s1, 14
    %148 = vst.msk [vmem:[%s147] sm:$0x1] %vm146, %v145
    %s149 = scalar_lea.vmem %s1, 45
    %150 = vst.msk [vmem:[%s149] sm:$0x2] %vm146, %v145
    %s151 = scalar_lea.vmem %s1, 76
    %152 = vst.msk [vmem:[%s151] sm:$0x4] %vm146, %v145
    %v153 = vld [vmem:[#allocation0] sm:$0x7]
    %154 = vrot.lane.b32.xlu0 %v153, 98
    %v155 = vpop.permute.xlu0 %154
    %vm156 = vcmask 15360
    %s157 = scalar_lea.vmem %s1, 15
    %158 = vst.msk [vmem:[%s157] sm:$0x1] %vm156, %v155
    %s159 = scalar_lea.vmem %s1, 46
    %160 = vst.msk [vmem:[%s159] sm:$0x2] %vm156, %v155
    %s161 = scalar_lea.vmem %s1, 77
    %162 = vst.msk [vmem:[%s161] sm:$0x4] %vm156, %v155
    %v163 = vld [vmem:[#allocation0] sm:$0x7]
    %164 = vrot.lane.b32.xlu0 %v163, 96
    %v165 = vpop.permute.xlu0 %164
    %vm166 = vcmask 15360
    %s167 = scalar_lea.vmem %s1, 16
    %168 = vst.msk [vmem:[%s167] sm:$0x1] %vm166, %v165
    %s169 = scalar_lea.vmem %s1, 47
    %170 = vst.msk [vmem:[%s169] sm:$0x2] %vm166, %v165
    %s171 = scalar_lea.vmem %s1, 78
    %172 = vst.msk [vmem:[%s171] sm:$0x4] %vm166, %v165
    %v173 = vld [vmem:[#allocation0] sm:$0x7]
    %174 = vrot.lane.b32.xlu0 %v173, 94
    %v175 = vpop.permute.xlu0 %174
    %vm176 = vcmask 15360
    %s177 = scalar_lea.vmem %s1, 17
    %178 = vst.msk [vmem:[%s177] sm:$0x1] %vm176, %v175
    %s179 = scalar_lea.vmem %s1, 48
    %180 = vst.msk [vmem:[%s179] sm:$0x2] %vm176, %v175
    %s181 = scalar_lea.vmem %s1, 79
    %182 = vst.msk [vmem:[%s181] sm:$0x4] %vm176, %v175
    %v183 = vld [vmem:[#allocation0] sm:$0x7]
    %184 = vrot.lane.b32.xlu0 %v183, 92
    %v185 = vpop.permute.xlu0 %184
    %vm186 = vcmask 15360
    %s187 = scalar_lea.vmem %s1, 18
    %188 = vst.msk [vmem:[%s187] sm:$0x1] %vm186, %v185
    %s189 = scalar_lea.vmem %s1, 49
    %190 = vst.msk [vmem:[%s189] sm:$0x2] %vm186, %v185
    %s191 = scalar_lea.vmem %s1, 80
    %192 = vst.msk [vmem:[%s191] sm:$0x4] %vm186, %v185
    %v193 = vld [vmem:[#allocation0] sm:$0x7]
    %194 = vrot.lane.b32.xlu0 %v193, 90
    %v195 = vpop.permute.xlu0 %194
    %vm196 = vcmask 15360
    %s197 = scalar_lea.vmem %s1, 19
    %198 = vst.msk [vmem:[%s197] sm:$0x1] %vm196, %v195
    %s199 = scalar_lea.vmem %s1, 50
    %200 = vst.msk [vmem:[%s199] sm:$0x2] %vm196, %v195
    %s201 = scalar_lea.vmem %s1, 81
    %202 = vst.msk [vmem:[%s201] sm:$0x4] %vm196, %v195
    %v203 = vld [vmem:[#allocation0] sm:$0x7]
    %204 = vrot.lane.b32.xlu0 %v203, 88
    %v205 = vpop.permute.xlu0 %204
    %vm206 = vcmask 15360
    %s207 = scalar_lea.vmem %s1, 20
    %208 = vst.msk [vmem:[%s207] sm:$0x1] %vm206, %v205
    %s209 = scalar_lea.vmem %s1, 51
    %210 = vst.msk [vmem:[%s209] sm:$0x2] %vm206, %v205
    %s211 = scalar_lea.vmem %s1, 82
    %212 = vst.msk [vmem:[%s211] sm:$0x4] %vm206, %v205
    %v213 = vld [vmem:[#allocation0] sm:$0x7]
    %214 = vrot.lane.b32.xlu0 %v213, 86
    %v215 = vpop.permute.xlu0 %214
    %vm216 = vcmask 15360
    %s217 = scalar_lea.vmem %s1, 21
    %218 = vst.msk [vmem:[%s217] sm:$0x1] %vm216, %v215
    %s219 = scalar_lea.vmem %s1, 52
    %220 = vst.msk [vmem:[%s219] sm:$0x2] %vm216, %v215
    %s221 = scalar_lea.vmem %s1, 83
    %222 = vst.msk [vmem:[%s221] sm:$0x4] %vm216, %v215
    %v223 = vld [vmem:[#allocation0] sm:$0x7]
    %224 = vrot.lane.b32.xlu0 %v223, 84
    %v225 = vpop.permute.xlu0 %224
    %vm226 = vcmask 15360
    %s227 = scalar_lea.vmem %s1, 22
    %228 = vst.msk [vmem:[%s227] sm:$0x1] %vm226, %v225
    %s229 = scalar_lea.vmem %s1, 53
    %230 = vst.msk [vmem:[%s229] sm:$0x2] %vm226, %v225
    %s231 = scalar_lea.vmem %s1, 84
    %232 = vst.msk [vmem:[%s231] sm:$0x4] %vm226, %v225
    %v233 = vld [vmem:[#allocation0] sm:$0x7]
    %234 = vrot.lane.b32.xlu0 %v233, 82
    %v235 = vpop.permute.xlu0 %234
    %vm236 = vcmask 15360
    %s237 = scalar_lea.vmem %s1, 23
    %238 = vst.msk [vmem:[%s237] sm:$0x1] %vm236, %v235
    %s239 = scalar_lea.vmem %s1, 54
    %240 = vst.msk [vmem:[%s239] sm:$0x2] %vm236, %v235
    %s241 = scalar_lea.vmem %s1, 85
    %242 = vst.msk [vmem:[%s241] sm:$0x4] %vm236, %v235
    %v243 = vld [vmem:[#allocation0] sm:$0x7]
    %244 = vrot.lane.b32.xlu0 %v243, 80
    %v245 = vpop.permute.xlu0 %244
    %vm246 = vcmask 15360
    %s247 = scalar_lea.vmem %s1, 24
    %248 = vst.msk [vmem:[%s247] sm:$0x1] %vm246, %v245
    %s249 = scalar_lea.vmem %s1, 55
    %250 = vst.msk [vmem:[%s249] sm:$0x2] %vm246, %v245
    %s251 = scalar_lea.vmem %s1, 86
    %252 = vst.msk [vmem:[%s251] sm:$0x4] %vm246, %v245
    %v253 = vld [vmem:[#allocation0] sm:$0x7]
    %254 = vrot.lane.b32.xlu0 %v253, 78
    %v255 = vpop.permute.xlu0 %254
    %vm256 = vcmask 15360
    %s257 = scalar_lea.vmem %s1, 25
    %258 = vst.msk [vmem:[%s257] sm:$0x1] %vm256, %v255
    %s259 = scalar_lea.vmem %s1, 56
    %260 = vst.msk [vmem:[%s259] sm:$0x2] %vm256, %v255
    %s261 = scalar_lea.vmem %s1, 87
    %262 = vst.msk [vmem:[%s261] sm:$0x4] %vm256, %v255
    %v263 = vld [vmem:[#allocation0] sm:$0x7]
    %264 = vrot.lane.b32.xlu0 %v263, 76
    %v265 = vpop.permute.xlu0 %264
    %vm266 = vcmask 15360
    %s267 = scalar_lea.vmem %s1, 26
    %268 = vst.msk [vmem:[%s267] sm:$0x1] %vm266, %v265
    %s269 = scalar_lea.vmem %s1, 57
    %270 = vst.msk [vmem:[%s269] sm:$0x2] %vm266, %v265
    %s271 = scalar_lea.vmem %s1, 88
    %272 = vst.msk [vmem:[%s271] sm:$0x4] %vm266, %v265
    %v273 = vld [vmem:[#allocation0] sm:$0x7]
    %274 = vrot.lane.b32.xlu0 %v273, 74
    %v275 = vpop.permute.xlu0 %274
    %vm276 = vcmask 15360
    %s277 = scalar_lea.vmem %s1, 27
    %278 = vst.msk [vmem:[%s277] sm:$0x1] %vm276, %v275
    %s279 = scalar_lea.vmem %s1, 58
    %280 = vst.msk [vmem:[%s279] sm:$0x2] %vm276, %v275
    %s281 = scalar_lea.vmem %s1, 89
    %282 = vst.msk [vmem:[%s281] sm:$0x4] %vm276, %v275
    %v283 = vld [vmem:[#allocation0] sm:$0x7]
    %284 = vrot.lane.b32.xlu0 %v283, 72
    %v285 = vpop.permute.xlu0 %284
    %vm286 = vcmask 15360
    %s287 = scalar_lea.vmem %s1, 28
    %288 = vst.msk [vmem:[%s287] sm:$0x1] %vm286, %v285
    %s289 = scalar_lea.vmem %s1, 59
    %290 = vst.msk [vmem:[%s289] sm:$0x2] %vm286, %v285
    %s291 = scalar_lea.vmem %s1, 90
    %292 = vst.msk [vmem:[%s291] sm:$0x4] %vm286, %v285
    %v293 = vld [vmem:[#allocation0] sm:$0x7]
    %294 = vrot.lane.b32.xlu0 %v293, 70
    %v295 = vpop.permute.xlu0 %294
    %vm296 = vcmask 15360
    %s297 = scalar_lea.vmem %s1, 29
    %298 = vst.msk [vmem:[%s297] sm:$0x1] %vm296, %v295
    %s299 = scalar_lea.vmem %s1, 60
    %300 = vst.msk [vmem:[%s299] sm:$0x2] %vm296, %v295
    %s301 = scalar_lea.vmem %s1, 91
    %302 = vst.msk [vmem:[%s301] sm:$0x4] %vm296, %v295
    %v303 = vld [vmem:[#allocation0] sm:$0x7]
    %304 = vrot.lane.b32.xlu0 %v303, 68
    %v305 = vpop.permute.xlu0 %304
    %vm306 = vcmask 15360
    %s307 = scalar_lea.vmem %s1, 30
    %308 = vst.msk [vmem:[%s307] sm:$0x1] %vm306, %v305
    %s309 = scalar_lea.vmem %s1, 61
    %310 = vst.msk [vmem:[%s309] sm:$0x2] %vm306, %v305
    %s311 = scalar_lea.vmem %s1, 92
    %312 = vst.msk [vmem:[%s311] sm:$0x4] %vm306, %v305
    %v313 = vld [vmem:[#allocation0] sm:$0x7]
    %314 = vrot.lane.b32.xlu0 %v313, 66
    %v315 = vpop.permute.xlu0 %314
    %vm316 = vcmask 15360
    %s317 = scalar_lea.vmem %s1, 31
    %318 = vst.msk [vmem:[%s317] sm:$0x1] %vm316, %v315
    %s319 = scalar_lea.vmem %s1, 62
    %320 = vst.msk [vmem:[%s319] sm:$0x2] %vm316, %v315
    %s321 = scalar_lea.vmem %s1, 93
    %322 = vst.msk [vmem:[%s321] sm:$0x4] %vm316, %v315

// kernel: transformer_block_pallas.3
$region0: #{transformer_block_pallas.3}
  #allocation0 [shape = 'u32[]', space=smem, size = 0x4, offset = 0x4, fixed_abs, tag = 'smem constant byte address 0x4 - core index']
  #allocation1 [shape = 'u32[144,128]{1,0:T(1,128)}', space=vmem, size = 0x12000, scoped, tag = 'internal scratch']
  %s0 = inlined_call_operand.vmem [shape: f32[2,8,12], index: 0, kind: input, shape index: {}]
  %s1 = inlined_call_operand.vmem [shape: f32[12,32], index: 1, kind: input, shape index: {}]
  %s2 = inlined_call_operand.vmem [shape: f32[8,32], index: 2, kind: input, shape index: {}]
  %s3 = inlined_call_operand.vmem [shape: f32[2,8,32], index: 3, kind: output, shape index: {}]
  %s4 = sld [smem:[#allocation0]]
  $region45: #{transformer_block_pallas.3} parent=0
    _
  %s6 = ssub.s32 1, %s4
  %s7 = scalar_select 0, %s6, %s4
  loop: start=0, step=1, limit=4
  $region2: #{transformer_block_pallas.3} parent=0 // loop_pre_header
    _
  $region3: #{transformer_block_pallas.3} parent=0 // loop_header
    %s9 = sphi 0, %s13
    %p10 = scmp.ge.s32.totalorder %s9, 4
    %s19 = sphi 0, %s21
    %s22 = sphi 0, %s19
    %s23 = sphi 0, %s22
    %s39 = sphi 0, %s23
    %s43 = sphi 0, %s43
    %s45 = sphi 0, %s43
    %s46 = sphi 0, %s45
    %s60 = sphi 0, %s46
    %s64 = sphi 0, %s64
    %s66 = sphi 0, %s64
    %s67 = sphi 0, %s66
    %s81 = sphi 0, %s67
    %s87 = sphi 0, %s89
    %s90 = sphi 0, %s87
    %s91 = sphi 0, %s90
    %s107 = sphi 0, %s91
  $region4: #{transformer_block_pallas.3} parent=0 // loop_header_branch
    %12 = sbr.rel (%p10) target = $region8
  $region5: #{transformer_block_pallas.3} parent=0 // loop_body
    %s14 = ssub.s32 %s9, 1
    %s15 = ssub.s32 %s9, 2
    %s16 = sadd.s32 %s9, 1
    %s17 = ssub.s32 %s9, %s16
    %p18 = scmp.eq.s32.totalorder %s17, 0
    %s20 = sadd.s32 %s19, 1
    %s21 = scalar_select %p18, %s19, %s20
    %p24 = pneg %p18
    %p25 = scmp.eq.s32.totalorder %s9, 1
    %p26 = por %p24, %p25
    %p27 = scmp.ne.s32.totalorder %s19, %s22
    %p28 = scmp.eq.s32.totalorder %s9, 0
    %p29 = por %p27, %p28
    %p30 = scmp.ne.s32.totalorder %s19, %s22
    %p31 = scmp.eq.s32.totalorder %s14, 1
    %p32 = por %p30, %p31
    %p33 = scmp.ne.s32.totalorder %s22, %s23
    %p34 = scmp.eq.s32.totalorder %s14, 0
    %p35 = por %p33, %p34
    %p36 = scmp.ne.s32.totalorder %s22, %s23
    %p37 = scmp.eq.s32.totalorder %s15, 1
    %p38 = por %p36, %p37
    %p40 = scmp.ne.s32.totalorder %s23, %s39
    %p41 = scmp.eq.s32.totalorder %s15, 0
    %p42 = por %p40, %p41
    %s44 = sadd.s32 %s43, 1
    %p47 = scmp.eq.s32.totalorder %s9, 1
    %p48 = scmp.ne.s32.totalorder %s43, %s45
    %p49 = scmp.eq.s32.totalorder %s9, 0
    %p50 = por %p48, %p49
    %p51 = scmp.ne.s32.totalorder %s43, %s45
    %p52 = scmp.eq.s32.totalorder %s14, 1
    %p53 = por %p51, %p52
    %p54 = scmp.ne.s32.totalorder %s45, %s46
    %p55 = scmp.eq.s32.totalorder %s14, 0
    %p56 = por %p54, %p55
    %p57 = scmp.ne.s32.totalorder %s45, %s46
    %p58 = scmp.eq.s32.totalorder %s15, 1
    %p59 = por %p57, %p58
    %p61 = scmp.ne.s32.totalorder %s46, %s60
    %p62 = scmp.eq.s32.totalorder %s15, 0
    %p63 = por %p61, %p62
    %s65 = sadd.s32 %s64, 1
    %p68 = scmp.eq.s32.totalorder %s9, 1
    %p69 = scmp.ne.s32.totalorder %s64, %s66
    %p70 = scmp.eq.s32.totalorder %s9, 0
    %p71 = por %p69, %p70
    %p72 = scmp.ne.s32.totalorder %s64, %s66
    %p73 = scmp.eq.s32.totalorder %s14, 1
    %p74 = por %p72, %p73
    %p75 = scmp.ne.s32.totalorder %s66, %s67
    %p76 = scmp.eq.s32.totalorder %s14, 0
    %p77 = por %p75, %p76
    %p78 = scmp.ne.s32.totalorder %s66, %s67
    %p79 = scmp.eq.s32.totalorder %s15, 1
    %p80 = por %p78, %p79
    %p82 = scmp.ne.s32.totalorder %s67, %s81
    %p83 = scmp.eq.s32.totalorder %s15, 0
    %p84 = por %p82, %p83
    %s85 = ssub.s32 %s9, %s16
    %p86 = scmp.eq.s32.totalorder %s85, 0
    %s88 = sadd.s32 %s87, 1
    %s89 = scalar_select %p86, %s87, %s88
    %p92 = pneg %p86
    %p93 = scmp.eq.s32.totalorder %s9, 1
    %p94 = por %p92, %p93
    %p95 = scmp.ne.s32.totalorder %s87, %s90
    %p96 = scmp.eq.s32.totalorder %s9, 0
    %p97 = por %p95, %p96
    %p98 = scmp.ne.s32.totalorder %s87, %s90
    %p99 = scmp.eq.s32.totalorder %s14, 1
    %p100 = por %p98, %p99
    %p101 = scmp.ne.s32.totalorder %s90, %s91
    %p102 = scmp.eq.s32.totalorder %s14, 0
    %p103 = por %p101, %p102
    %p104 = scmp.ne.s32.totalorder %s90, %s91
    %p105 = scmp.eq.s32.totalorder %s15, 1
    %p106 = por %p104, %p105
    %p108 = scmp.ne.s32.totalorder %s91, %s107
    %p109 = scmp.eq.s32.totalorder %s15, 0
    %p110 = por %p108, %p109
    %p111 = scmp.le.s32.totalorder 1, %s9
    %p112 = scmp.lt.s32.totalorder %s9, 3
    %p113 = pnand %p111, %p112
    %p114 = pneg %p113
    // Predicated region
    $region9: #{transformer_block_pallas.3} parent=5 // pred_check
      _
    $region10: #{transformer_block_pallas.3} parent=5 // pred_check_branch
      %116 = sbr.rel (%p113) target = $region12
    $region11: #{transformer_block_pallas.3} parent=5 // pred_region
      %s117 = ssub.s32 %s9, 1
      // Predicated region
      $region13: #{transformer_block_pallas.3} parent=11 // pred_check
        %p118 = pneg %p56
      $region14: #{transformer_block_pallas.3} parent=11 // pred_check_branch
        %120 = sbr.rel (%p118) target = $region16
      $region15: #{transformer_block_pallas.3} parent=11 // pred_region
        _
      $region16: #{transformer_block_pallas.3} parent=11 // pred_fallthru
        _
      // Predicated region
      $region17: #{transformer_block_pallas.3} parent=11 // pred_check
        %p121 = pneg %p77
      $region18: #{transformer_block_pallas.3} parent=11 // pred_check_branch
        %123 = sbr.rel (%p121) target = $region20
      $region19: #{transformer_block_pallas.3} parent=11 // pred_region
        _
      $region20: #{transformer_block_pallas.3} parent=11 // pred_fallthru
        _
    $region12: #{transformer_block_pallas.3} parent=5 // pred_fallthru
      _
    %p124 = scmp.lt.s32.totalorder %s9, 2
    // Predicated region
    $region21: #{transformer_block_pallas.3} parent=5 // pred_check
      %p125 = pneg %p124
    $region22: #{transformer_block_pallas.3} parent=5 // pred_check_branch
      %127 = sbr.rel (%p125) target = $region24
    $region23: #{transformer_block_pallas.3} parent=5 // pred_region
      // Predicated region
      $region25: #{transformer_block_pallas.3} parent=23 // pred_check
        %p128 = pneg %p29
      $region26: #{transformer_block_pallas.3} parent=23 // pred_check_branch
        %130 = sbr.rel (%p128) target = $region28
      $region27: #{transformer_block_pallas.3} parent=23 // pred_region
        %p131 = scmp.lt.s32.totalorder %s9, 1
        %s132 = scalar_select %p131, %s9, 1
        %s133 = smul.addr %s132, 8
        %s134 = scalar_lea.vmem %s0, %s133
      $region28: #{transformer_block_pallas.3} parent=23 // pred_fallthru
        _
    $region24: #{transformer_block_pallas.3} parent=5 // pred_fallthru
      _
    %p135 = scmp.le.s32.totalorder 1, %s9
    %p136 = scmp.lt.s32.totalorder %s9, 3
    %p137 = pnand %p135, %p136
    %p138 = pneg %p137
    // Predicated region
    $region29: #{transformer_block_pallas.3} parent=5 // pred_check
      _
    $region30: #{transformer_block_pallas.3} parent=5 // pred_check_branch
      %140 = sbr.rel (%p137) target = $region32
    $region31: #{transformer_block_pallas.3} parent=5 // pred_region
      %s141 = ssub.s32 %s9, 1
      %p142 = scmp.lt.s32.totalorder %s14, 1
      %s143 = scalar_select %p142, %s14, 1
      %s144 = smul.addr %s143, 8
      %s145 = scalar_lea.vmem %s0, %s144
      %p146 = pneg %p35
      %p147 = pneg %p32
      %p148 = pneg %p56
      %p149 = pneg %p53
      %p150 = pneg %p77
      %p151 = pneg %p74
      %p152 = pneg %p103
      %p153 = pneg %p100
      %p154 = scmp.lt.s32.totalorder %s14, 1
      %s155 = scalar_select %p154, %s14, 1
      %s156 = smul.addr %s155, 8
      %s157 = scalar_lea.vmem %s3, %s156
      %p158 = scmp.lt.s32.totalorder %s14, 1
      %s159 = scalar_select %p158, %s14, 1
      %s160 = smul.addr %s159, 8
      %s161 = scalar_lea.vmem %s0, %s160
      %p162 = scmp.lt.s32.totalorder %s14, 1
      %s163 = scalar_select %p162, %s14, 1
      %s164 = smul.addr %s163, 8
      %s165 = scalar_lea.vmem %s3, %s164
      %v166 = vld [vmem:[%s161] sm:$0xff]
      %v167 = vld [vmem:[%s1] sm:$0xff]
      %v168 = vld [vmem:[%s1 + $0x8] sm:$0xf]
      %v169 = vld [vmem:[%s2] sm:$0xff]
      %vm170 = vcmask 97280
      %v172 = vsel %vm170, %v166, 0
      %vm174 = vcmask 1043456
      %v176 = vsel %vm174, %v168, 0
      %178 = vmatprep.subr.mxu0 0.0
      %179 = vmatpush1.msra.mxu0 %v167
      %180 = vmatprep.subr.mxu0 0.0
      %181 = vmatpush1.msra.mxu0 %v176
      %182 = vmatprep.subr.mxu0 0.0
      %183 = vmatpush1.msra.mxu0 0.0
      %184 = vmatprep.subr.mxu0 0.0
      %185 = vmatpush1.msra.mxu0 0.0
      %186 = vmatprep.subr.mxu0 0.0
      %187 = vmatpush1.msra.mxu0 0.0
      %188 = vmatprep.subr.mxu0 0.0
      %189 = vmatpush1.msra.mxu0 0.0
      %190 = vmatprep.subr.mxu0 0.0
      %191 = vmatpush1.msra.mxu0 0.0
      %192 = vmatprep.subr.mxu0 0.0
      %193 = vmatpush1.msra.mxu0 0.0
      %194 = vmatprep.subr.mxu0 0.0
      %195 = vmatpush1.msra.mxu0 0.0
      %196 = vmatprep.subr.mxu0 0.0
      %197 = vmatpush1.msra.mxu0 0.0
      %198 = vmatprep.subr.mxu0 0.0
      %199 = vmatpush1.msra.mxu0 0.0
      %200 = vmatprep.subr.mxu0 0.0
      %201 = vmatpush1.msra.mxu0 0.0
      %202 = vmatprep.subr.mxu0 0.0
      %203 = vmatpush1.msra.mxu0 0.0
      %204 = vmatprep.subr.mxu0 0.0
      %205 = vmatpush1.msra.mxu0 0.0
      %206 = vmatprep.subr.mxu0 0.0
      %207 = vmatpush1.msra.mxu0 0.0
      %208 = vmatprep.subr.mxu0 0.0
      %209 = vmatpush1.msra.mxu0 0.0
      %210 = vmatprep.subr.mxu0 0.0
      %211 = vmatpush1.msra.mxu0 0.0
      %212 = vmatprep.subr.mxu0 0.0
      %213 = vmatpush1.msra.mxu0 0.0
      %214 = vmatprep.subr.mxu0 0.0
      %215 = vmatpush1.msra.mxu0 0.0
      %216 = vmatprep.subr.mxu0 0.0
      %217 = vmatpush1.msra.mxu0 0.0
      %218 = vmatprep.subr.mxu0 0.0
      %219 = vmatpush1.msra.mxu0 0.0
      %220 = vmatprep.subr.mxu0 0.0
      %221 = vmatpush1.msra.mxu0 0.0
      %222 = vmatprep.subr.mxu0 0.0
      %223 = vmatpush1.msra.mxu0 0.0
      %224 = vmatprep.subr.mxu0 0.0
      %225 = vmatpush1.msra.mxu0 0.0
      %226 = vmatprep.subr.mxu0 0.0
      %227 = vmatpush1.msra.mxu0 0.0
      %228 = vmatprep.subr.mxu0 0.0
      %229 = vmatpush1.msra.mxu0 0.0
      %230 = vmatprep.subr.mxu0 0.0
      %231 = vmatpush1.msra.mxu0 0.0
      %232 = vmatprep.subr.mxu0 0.0
      %233 = vmatpush1.msra.mxu0 0.0
      %234 = vmatprep.subr.mxu0 0.0
      %235 = vmatpush1.msra.mxu0 0.0
      %236 = vmatprep.subr.mxu0 0.0
      %237 = vmatpush1.msra.mxu0 0.0
      %238 = vmatprep.subr.mxu0 0.0
      %239 = vmatpush1.msra.mxu0 0.0
      %240 = vmatprep.subr.mxu0 0.0
      %241 = vmatpush1.msra.mxu0 0.0
      %242 = vmatprep.mubr.f32.mxu0 0.0
      %243 = vmatmul.mubr.f32.gmra.mrb[0].mxu0 %v172
      %v244 = vpop.f32.mrb[0].mxu0
      %v245 = vadd.f32 %v169, %v244
      %v246 = vpop.f32.mrb[0].mxu0
      %247 = vdwg.mxu0
      %vm248 = vcmask 261120
      %249 = vst.msk [vmem:[%s165] sm:$0xff] %vm248, %v245
      %p250 = scmp.lt.s32.totalorder %s14, 1
      %s251 = scalar_select %p250, %s14, 1
      %s252 = smul.addr %s251, 8
      %s253 = scalar_lea.vmem %s3, %s252
      // Predicated region
      $region33: #{transformer_block_pallas.3} parent=31 // pred_check
        %p254 = pneg %p100
      $region34: #{transformer_block_pallas.3} parent=31 // pred_check_branch
        %256 = sbr.rel (%p254) target = $region36
      $region35: #{transformer_block_pallas.3} parent=31 // pred_region
        _
      $region36: #{transformer_block_pallas.3} parent=31 // pred_fallthru
        _
    $region32: #{transformer_block_pallas.3} parent=5 // pred_fallthru
      _
    %p257 = scmp.le.s32.totalorder 2, %s9
    // Predicated region
    $region37: #{transformer_block_pallas.3} parent=5 // pred_check
      %p258 = pneg %p257
    $region38: #{transformer_block_pallas.3} parent=5 // pred_check_branch
      %260 = sbr.rel (%p258) target = $region40
    $region39: #{transformer_block_pallas.3} parent=5 // pred_region
      %s261 = ssub.s32 %s9, 2
      // Predicated region
      $region41: #{transformer_block_pallas.3} parent=39 // pred_check
        %p262 = pneg %p106
      $region42: #{transformer_block_pallas.3} parent=39 // pred_check_branch
        %264 = sbr.rel (%p262) target = $region44
      $region43: #{transformer_block_pallas.3} parent=39 // pred_region
        %p265 = scmp.lt.s32.totalorder %s15, 1
        %s266 = scalar_select %p265, %s15, 1
        %s267 = smul.addr %s266, 8
        %s268 = scalar_lea.vmem %s3, %s267
      $region44: #{transformer_block_pallas.3} parent=39 // pred_fallthru
        _
    $region40: #{transformer_block_pallas.3} parent=5 // pred_fallthru
      _
  $region6: #{transformer_block_pallas.3} parent=0 // loop_footer
    %s13 = sadd.s32 1, %s9
  $region7: #{transformer_block_pallas.3} parent=0 // loop_footer_branch
    %8 = sbr.rel target = $region3
  $region8: #{transformer_block_pallas.3} parent=0 // loop_exit
    _

// kernel: transformer_block_pallas.5
$region0: #{transformer_block_pallas.5}
  #allocation0 [shape = 'u32[]', space=smem, size = 0x4, offset = 0x4, fixed_abs, tag = 'smem constant byte address 0x4 - core index']
  #allocation1 [shape = 'u32[144,128]{1,0:T(1,128)}', space=vmem, size = 0x12000, scoped, tag = 'internal scratch']
  %s0 = inlined_call_operand.vmem [shape: f32[2,8,32], index: 0, kind: input, shape index: {}]
  %s1 = inlined_call_operand.vmem [shape: f32[1,32], index: 1, kind: input, shape index: {}]
  %s2 = inlined_call_operand.vmem [shape: f32[1,32], index: 2, kind: input, shape index: {}]
  %s3 = inlined_call_operand.vmem [shape: f32[32,32], index: 3, kind: input, shape index: {}]
  %s4 = inlined_call_operand.vmem [shape: f32[32,32], index: 4, kind: input, shape index: {}]
  %s5 = inlined_call_operand.vmem [shape: f32[32,32], index: 5, kind: input, shape index: {}]
  %s6 = inlined_call_operand.vmem [shape: f32[1,32], index: 6, kind: input, shape index: {}]
  %s7 = inlined_call_operand.vmem [shape: f32[1,32], index: 7, kind: input, shape index: {}]
  %s8 = inlined_call_operand.vmem [shape: f32[1,32], index: 8, kind: input, shape index: {}]
  %s9 = inlined_call_operand.vmem [shape: f32[1,32], index: 9, kind: input, shape index: {}]
  %s10 = inlined_call_operand.vmem [shape: f32[1,32], index: 10, kind: input, shape index: {}]
  %s11 = inlined_call_operand.vmem [shape: f32[1,32], index: 11, kind: input, shape index: {}]
  %s12 = inlined_call_operand.vmem [shape: f32[32,32], index: 12, kind: input, shape index: {}]
  %s13 = inlined_call_operand.vmem [shape: f32[1,32], index: 13, kind: input, shape index: {}]
  %s14 = inlined_call_operand.vmem [shape: f32[1,32], index: 14, kind: input, shape index: {}]
  %s15 = inlined_call_operand.vmem [shape: f32[32,32], index: 15, kind: input, shape index: {}]
  %s16 = inlined_call_operand.vmem [shape: f32[1,32], index: 16, kind: input, shape index: {}]
  %s17 = inlined_call_operand.vmem [shape: f32[3,2,1,32], index: 17, kind: input, shape index: {}]
  %s18 = inlined_call_operand.vmem [shape: f32[2,1,32], index: 18, kind: input, shape index: {}]
  %s19 = inlined_call_operand.vmem [shape: f32[2,32,32], index: 19, kind: input, shape index: {}]
  %s20 = inlined_call_operand.vmem [shape: f32[1,32], index: 20, kind: input, shape index: {}]
  %s21 = inlined_call_operand.hbm [shape: f32[2,8,32], index: 21, kind: output, shape index: {}]
  %s22 = sld [smem:[#allocation0]]
  $region117: #{transformer_block_pallas.5} parent=0
    _
  %s24 = ssub.s32 1, %s22
  %s25 = scalar_select 0, %s24, %s22
  $region1: #{transformer_block_pallas.5} parent=0
    #allocation2 [shape = 'u8[8192]{0}', space=vmem, size = 0x2000, scoped, tag = 'output window, operand 0']
    #allocation3 [shape = 's32[2]{0}', space=sflag, size = 0x8, scoped, tag = 'scoped memory for transformer_block_pallas.5']
    %26 = vsyncpa [#allocation3], 0
    %s27 = scalar_lea.sflag [#allocation3], 1
    %28 = vsyncpa %s27, 0
    loop: start=0, step=1, limit=4
    $region2: #{transformer_block_pallas.5} parent=1 // loop_pre_header
      _
    $region3: #{transformer_block_pallas.5} parent=1 // loop_header
      %s30 = sphi 0, %s34
      %p31 = scmp.ge.s32.totalorder %s30, 4
      %s40 = sphi 0, %s42
      %s43 = sphi 0, %s40
      %s44 = sphi 0, %s43
      %s60 = sphi 0, %s44
      %s64 = sphi 0, %s64
      %s66 = sphi 0, %s64
      %s67 = sphi 0, %s66
      %s81 = sphi 0, %s67
      %s85 = sphi 0, %s85
      %s87 = sphi 0, %s85
      %s88 = sphi 0, %s87
      %s102 = sphi 0, %s88
      %s106 = sphi 0, %s106
      %s108 = sphi 0, %s106
      %s109 = sphi 0, %s108
      %s123 = sphi 0, %s109
      %s127 = sphi 0, %s127
      %s129 = sphi 0, %s127
      %s130 = sphi 0, %s129
      %s144 = sphi 0, %s130
      %s148 = sphi 0, %s148
      %s150 = sphi 0, %s148
      %s151 = sphi 0, %s150
      %s165 = sphi 0, %s151
      %s169 = sphi 0, %s169
      %s171 = sphi 0, %s169
      %s172 = sphi 0, %s171
      %s186 = sphi 0, %s172
      %s190 = sphi 0, %s190
      %s192 = sphi 0, %s190
      %s193 = sphi 0, %s192
      %s207 = sphi 0, %s193
      %s211 = sphi 0, %s211
      %s213 = sphi 0, %s211
      %s214 = sphi 0, %s213
      %s228 = sphi 0, %s214
      %s232 = sphi 0, %s232
      %s234 = sphi 0, %s232
      %s235 = sphi 0, %s234
      %s249 = sphi 0, %s235
      %s253 = sphi 0, %s253
      %s255 = sphi 0, %s253
      %s256 = sphi 0, %s255
      %s270 = sphi 0, %s256
      %s274 = sphi 0, %s274
      %s276 = sphi 0, %s274
      %s277 = sphi 0, %s276
      %s291 = sphi 0, %s277
      %s295 = sphi 0, %s295
      %s297 = sphi 0, %s295
      %s298 = sphi 0, %s297
      %s312 = sphi 0, %s298
      %s316 = sphi 0, %s316
      %s318 = sphi 0, %s316
      %s319 = sphi 0, %s318
      %s333 = sphi 0, %s319
      %s337 = sphi 0, %s337
      %s339 = sphi 0, %s337
      %s340 = sphi 0, %s339
      %s354 = sphi 0, %s340
      %s358 = sphi 0, %s358
      %s360 = sphi 0, %s358
      %s361 = sphi 0, %s360
      %s375 = sphi 0, %s361
      %s379 = sphi 0, %s379
      %s381 = sphi 0, %s379
      %s382 = sphi 0, %s381
      %s396 = sphi 0, %s382
      %s400 = sphi 0, %s400
      %s402 = sphi 0, %s400
      %s403 = sphi 0, %s402
      %s417 = sphi 0, %s403
      %s421 = sphi 0, %s421
      %s423 = sphi 0, %s421
      %s424 = sphi 0, %s423
      %s438 = sphi 0, %s424
      %s442 = sphi 0, %s442
      %s444 = sphi 0, %s442
      %s445 = sphi 0, %s444
      %s459 = sphi 0, %s445
      %s463 = sphi 0, %s463
      %s465 = sphi 0, %s463
      %s466 = sphi 0, %s465
      %s480 = sphi 0, %s466
      %s486 = sphi 0, %s488
      %s489 = sphi 0, %s486
      %s490 = sphi 0, %s489
      %s506 = sphi 0, %s490
    $region4: #{transformer_block_pallas.5} parent=1 // loop_header_branch
      %33 = sbr.rel (%p31) target = $region8
    $region5: #{transformer_block_pallas.5} parent=1 // loop_body
      %s35 = ssub.s32 %s30, 1
      %s36 = ssub.s32 %s30, 2
      %s37 = sadd.s32 %s30, 1
      %s38 = ssub.s32 %s30, %s37
      %p39 = scmp.eq.s32.totalorder %s38, 0
      %s41 = sadd.s32 %s40, 1
      %s42 = scalar_select %p39, %s40, %s41
      %p45 = pneg %p39
      %p46 = scmp.eq.s32.totalorder %s30, 1
      %p47 = por %p45, %p46
      %p48 = scmp.ne.s32.totalorder %s40, %s43
      %p49 = scmp.eq.s32.totalorder %s30, 0
      %p50 = por %p48, %p49
      %p51 = scmp.ne.s32.totalorder %s40, %s43
      %p52 = scmp.eq.s32.totalorder %s35, 1
      %p53 = por %p51, %p52
      %p54 = scmp.ne.s32.totalorder %s43, %s44
      %p55 = scmp.eq.s32.totalorder %s35, 0
      %p56 = por %p54, %p55
      %p57 = scmp.ne.s32.totalorder %s43, %s44
      %p58 = scmp.eq.s32.totalorder %s36, 1
      %p59 = por %p57, %p58
      %p61 = scmp.ne.s32.totalorder %s44, %s60
      %p62 = scmp.eq.s32.totalorder %s36, 0
      %p63 = por %p61, %p62
      %s65 = sadd.s32 %s64, 1
      %p68 = scmp.eq.s32.totalorder %s30, 1
      %p69 = scmp.ne.s32.totalorder %s64, %s66
      %p70 = scmp.eq.s32.totalorder %s30, 0
      %p71 = por %p69, %p70
      %p72 = scmp.ne.s32.totalorder %s64, %s66
      %p73 = scmp.eq.s32.totalorder %s35, 1
      %p74 = por %p72, %p73
      %p75 = scmp.ne.s32.totalorder %s66, %s67
      %p76 = scmp.eq.s32.totalorder %s35, 0
      %p77 = por %p75, %p76
      %p78 = scmp.ne.s32.totalorder %s66, %s67
      %p79 = scmp.eq.s32.totalorder %s36, 1
      %p80 = por %p78, %p79
      %p82 = scmp.ne.s32.totalorder %s67, %s81
      %p83 = scmp.eq.s32.totalorder %s36, 0
      %p84 = por %p82, %p83
      %s86 = sadd.s32 %s85, 1
      %p89 = scmp.eq.s32.totalorder %s30, 1
      %p90 = scmp.ne.s32.totalorder %s85, %s87
      %p91 = scmp.eq.s32.totalorder %s30, 0
      %p92 = por %p90, %p91
      %p93 = scmp.ne.s32.totalorder %s85, %s87
      %p94 = scmp.eq.s32.totalorder %s35, 1
      %p95 = por %p93, %p94
      %p96 = scmp.ne.s32.totalorder %s87, %s88
      %p97 = scmp.eq.s32.totalorder %s35, 0
      %p98 = por %p96, %p97
      %p99 = scmp.ne.s32.totalorder %s87, %s88
      %p100 = scmp.eq.s32.totalorder %s36, 1
      %p101 = por %p99, %p100
      %p103 = scmp.ne.s32.totalorder %s88, %s102
      %p104 = scmp.eq.s32.totalorder %s36, 0
      %p105 = por %p103, %p104
      %s107 = sadd.s32 %s106, 1
      %p110 = scmp.eq.s32.totalorder %s30, 1
      %p111 = scmp.ne.s32.totalorder %s106, %s108
      %p112 = scmp.eq.s32.totalorder %s30, 0
      %p113 = por %p111, %p112
      %p114 = scmp.ne.s32.totalorder %s106, %s108
      %p115 = scmp.eq.s32.totalorder %s35, 1
      %p116 = por %p114, %p115
      %p117 = scmp.ne.s32.totalorder %s108, %s109
      %p118 = scmp.eq.s32.totalorder %s35, 0
      %p119 = por %p117, %p118
      %p120 = scmp.ne.s32.totalorder %s108, %s109
      %p121 = scmp.eq.s32.totalorder %s36, 1
      %p122 = por %p120, %p121
      %p124 = scmp.ne.s32.totalorder %s109, %s123
      %p125 = scmp.eq.s32.totalorder %s36, 0
      %p126 = por %p124, %p125
      %s128 = sadd.s32 %s127, 1
      %p131 = scmp.eq.s32.totalorder %s30, 1
      %p132 = scmp.ne.s32.totalorder %s127, %s129
      %p133 = scmp.eq.s32.totalorder %s30, 0
      %p134 = por %p132, %p133
      %p135 = scmp.ne.s32.totalorder %s127, %s129
      %p136 = scmp.eq.s32.totalorder %s35, 1
      %p137 = por %p135, %p136
      %p138 = scmp.ne.s32.totalorder %s129, %s130
      %p139 = scmp.eq.s32.totalorder %s35, 0
      %p140 = por %p138, %p139
      %p141 = scmp.ne.s32.totalorder %s129, %s130
      %p142 = scmp.eq.s32.totalorder %s36, 1
      %p143 = por %p141, %p142
      %p145 = scmp.ne.s32.totalorder %s130, %s144
      %p146 = scmp.eq.s32.totalorder %s36, 0
      %p147 = por %p145, %p146
      %s149 = sadd.s32 %s148, 1
      %p152 = scmp.eq.s32.totalorder %s30, 1
      %p153 = scmp.ne.s32.totalorder %s148, %s150
      %p154 = scmp.eq.s32.totalorder %s30, 0
      %p155 = por %p153, %p154
      %p156 = scmp.ne.s32.totalorder %s148, %s150
      %p157 = scmp.eq.s32.totalorder %s35, 1
      %p158 = por %p156, %p157
      %p159 = scmp.ne.s32.totalorder %s150, %s151
      %p160 = scmp.eq.s32.totalorder %s35, 0
      %p161 = por %p159, %p160
      %p162 = scmp.ne.s32.totalorder %s150, %s151
      %p163 = scmp.eq.s32.totalorder %s36, 1
      %p164 = por %p162, %p163
      %p166 = scmp.ne.s32.totalorder %s151, %s165
      %p167 = scmp.eq.s32.totalorder %s36, 0
      %p168 = por %p166, %p167
      %s170 = sadd.s32 %s169, 1
      %p173 = scmp.eq.s32.totalorder %s30, 1
      %p174 = scmp.ne.s32.totalorder %s169, %s171
      %p175 = scmp.eq.s32.totalorder %s30, 0
      %p176 = por %p174, %p175
      %p177 = scmp.ne.s32.totalorder %s169, %s171
      %p178 = scmp.eq.s32.totalorder %s35, 1
      %p179 = por %p177, %p178
      %p180 = scmp.ne.s32.totalorder %s171, %s172
      %p181 = scmp.eq.s32.totalorder %s35, 0
      %p182 = por %p180, %p181
      %p183 = scmp.ne.s32.totalorder %s171, %s172
      %p184 = scmp.eq.s32.totalorder %s36, 1
      %p185 = por %p183, %p184
      %p187 = scmp.ne.s32.totalorder %s172, %s186
      %p188 = scmp.eq.s32.totalorder %s36, 0
      %p189 = por %p187, %p188
      %s191 = sadd.s32 %s190, 1
      %p194 = scmp.eq.s32.totalorder %s30, 1
      %p195 = scmp.ne.s32.totalorder %s190, %s192
      %p196 = scmp.eq.s32.totalorder %s30, 0
      %p197 = por %p195, %p196
      %p198 = scmp.ne.s32.totalorder %s190, %s192
      %p199 = scmp.eq.s32.totalorder %s35, 1
      %p200 = por %p198, %p199
      %p201 = scmp.ne.s32.totalorder %s192, %s193
      %p202 = scmp.eq.s32.totalorder %s35, 0
      %p203 = por %p201, %p202
      %p204 = scmp.ne.s32.totalorder %s192, %s193
      %p205 = scmp.eq.s32.totalorder %s36, 1
      %p206 = por %p204, %p205
      %p208 = scmp.ne.s32.totalorder %s193, %s207
      %p209 = scmp.eq.s32.totalorder %s36, 0
      %p210 = por %p208, %p209
      %s212 = sadd.s32 %s211, 1
      %p215 = scmp.eq.s32.totalorder %s30, 1
      %p216 = scmp.ne.s32.totalorder %s211, %s213
      %p217 = scmp.eq.s32.totalorder %s30, 0
      %p218 = por %p216, %p217
      %p219 = scmp.ne.s32.totalorder %s211, %s213
      %p220 = scmp.eq.s32.totalorder %s35, 1
      %p221 = por %p219, %p220
      %p222 = scmp.ne.s32.totalorder %s213, %s214
      %p223 = scmp.eq.s32.totalorder %s35, 0
      %p224 = por %p222, %p223
      %p225 = scmp.ne.s32.totalorder %s213, %s214
      %p226 = scmp.eq.s32.totalorder %s36, 1
      %p227 = por %p225, %p226
      %p229 = scmp.ne.s32.totalorder %s214, %s228
      %p230 = scmp.eq.s32.totalorder %s36, 0
      %p231 = por %p229, %p230
      %s233 = sadd.s32 %s232, 1
      %p236 = scmp.eq.s32.totalorder %s30, 1
      %p237 = scmp.ne.s32.totalorder %s232, %s234
      %p238 = scmp.eq.s32.totalorder %s30, 0
      %p239 = por %p237, %p238
      %p240 = scmp.ne.s32.totalorder %s232, %s234
      %p241 = scmp.eq.s32.totalorder %s35, 1
      %p242 = por %p240, %p241
      %p243 = scmp.ne.s32.totalorder %s234, %s235
      %p244 = scmp.eq.s32.totalorder %s35, 0
      %p245 = por %p243, %p244
      %p246 = scmp.ne.s32.totalorder %s234, %s235
      %p247 = scmp.eq.s32.totalorder %s36, 1
      %p248 = por %p246, %p247
      %p250 = scmp.ne.s32.totalorder %s235, %s249
      %p251 = scmp.eq.s32.totalorder %s36, 0
      %p252 = por %p250, %p251
      %s254 = sadd.s32 %s253, 1
      %p257 = scmp.eq.s32.totalorder %s30, 1
      %p258 = scmp.ne.s32.totalorder %s253, %s255
      %p259 = scmp.eq.s32.totalorder %s30, 0
      %p260 = por %p258, %p259
      %p261 = scmp.ne.s32.totalorder %s253, %s255
      %p262 = scmp.eq.s32.totalorder %s35, 1
      %p263 = por %p261, %p262
      %p264 = scmp.ne.s32.totalorder %s255, %s256
      %p265 = scmp.eq.s32.totalorder %s35, 0
      %p266 = por %p264, %p265
      %p267 = scmp.ne.s32.totalorder %s255, %s256
      %p268 = scmp.eq.s32.totalorder %s36, 1
      %p269 = por %p267, %p268
      %p271 = scmp.ne.s32.totalorder %s256, %s270
      %p272 = scmp.eq.s32.totalorder %s36, 0
      %p273 = por %p271, %p272
      %s275 = sadd.s32 %s274, 1
      %p278 = scmp.eq.s32.totalorder %s30, 1
      %p279 = scmp.ne.s32.totalorder %s274, %s276
      %p280 = scmp.eq.s32.totalorder %s30, 0
      %p281 = por %p279, %p280
      %p282 = scmp.ne.s32.totalorder %s274, %s276
      %p283 = scmp.eq.s32.totalorder %s35, 1
      %p284 = por %p282, %p283
      %p285 = scmp.ne.s32.totalorder %s276, %s277
      %p286 = scmp.eq.s32.totalorder %s35, 0
      %p287 = por %p285, %p286
      %p288 = scmp.ne.s32.totalorder %s276, %s277
      %p289 = scmp.eq.s32.totalorder %s36, 1
      %p290 = por %p288, %p289
      %p292 = scmp.ne.s32.totalorder %s277, %s291
      %p293 = scmp.eq.s32.totalorder %s36, 0
      %p294 = por %p292, %p293
      %s296 = sadd.s32 %s295, 1
      %p299 = scmp.eq.s32.totalorder %s30, 1
      %p300 = scmp.ne.s32.totalorder %s295, %s297
      %p301 = scmp.eq.s32.totalorder %s30, 0
      %p302 = por %p300, %p301
      %p303 = scmp.ne.s32.totalorder %s295, %s297
      %p304 = scmp.eq.s32.totalorder %s35, 1
      %p305 = por %p303, %p304
      %p306 = scmp.ne.s32.totalorder %s297, %s298
      %p307 = scmp.eq.s32.totalorder %s35, 0
      %p308 = por %p306, %p307
      %p309 = scmp.ne.s32.totalorder %s297, %s298
      %p310 = scmp.eq.s32.totalorder %s36, 1
      %p311 = por %p309, %p310
      %p313 = scmp.ne.s32.totalorder %s298, %s312
      %p314 = scmp.eq.s32.totalorder %s36, 0
      %p315 = por %p313, %p314
      %s317 = sadd.s32 %s316, 1
      %p320 = scmp.eq.s32.totalorder %s30, 1
      %p321 = scmp.ne.s32.totalorder %s316, %s318
      %p322 = scmp.eq.s32.totalorder %s30, 0
      %p323 = por %p321, %p322
      %p324 = scmp.ne.s32.totalorder %s316, %s318
      %p325 = scmp.eq.s32.totalorder %s35, 1
      %p326 = por %p324, %p325
      %p327 = scmp.ne.s32.totalorder %s318, %s319
      %p328 = scmp.eq.s32.totalorder %s35, 0
      %p329 = por %p327, %p328
      %p330 = scmp.ne.s32.totalorder %s318, %s319
      %p331 = scmp.eq.s32.totalorder %s36, 1
      %p332 = por %p330, %p331
      %p334 = scmp.ne.s32.totalorder %s319, %s333
      %p335 = scmp.eq.s32.totalorder %s36, 0
      %p336 = por %p334, %p335
      %s338 = sadd.s32 %s337, 1
      %p341 = scmp.eq.s32.totalorder %s30, 1
      %p342 = scmp.ne.s32.totalorder %s337, %s339
      %p343 = scmp.eq.s32.totalorder %s30, 0
      %p344 = por %p342, %p343
      %p345 = scmp.ne.s32.totalorder %s337, %s339
      %p346 = scmp.eq.s32.totalorder %s35, 1
      %p347 = por %p345, %p346
      %p348 = scmp.ne.s32.totalorder %s339, %s340
      %p349 = scmp.eq.s32.totalorder %s35, 0
      %p350 = por %p348, %p349
      %p351 = scmp.ne.s32.totalorder %s339, %s340
      %p352 = scmp.eq.s32.totalorder %s36, 1
      %p353 = por %p351, %p352
      %p355 = scmp.ne.s32.totalorder %s340, %s354
      %p356 = scmp.eq.s32.totalorder %s36, 0
      %p357 = por %p355, %p356
      %s359 = sadd.s32 %s358, 1
      %p362 = scmp.eq.s32.totalorder %s30, 1
      %p363 = scmp.ne.s32.totalorder %s358, %s360
      %p364 = scmp.eq.s32.totalorder %s30, 0
      %p365 = por %p363, %p364
      %p366 = scmp.ne.s32.totalorder %s358, %s360
      %p367 = scmp.eq.s32.totalorder %s35, 1
      %p368 = por %p366, %p367
      %p369 = scmp.ne.s32.totalorder %s360, %s361
      %p370 = scmp.eq.s32.totalorder %s35, 0
      %p371 = por %p369, %p370
      %p372 = scmp.ne.s32.totalorder %s360, %s361
      %p373 = scmp.eq.s32.totalorder %s36, 1
      %p374 = por %p372, %p373
      %p376 = scmp.ne.s32.totalorder %s361, %s375
      %p377 = scmp.eq.s32.totalorder %s36, 0
      %p378 = por %p376, %p377
      %s380 = sadd.s32 %s379, 1
      %p383 = scmp.eq.s32.totalorder %s30, 1
      %p384 = scmp.ne.s32.totalorder %s379, %s381
      %p385 = scmp.eq.s32.totalorder %s30, 0
      %p386 = por %p384, %p385
      %p387 = scmp.ne.s32.totalorder %s379, %s381
      %p388 = scmp.eq.s32.totalorder %s35, 1
      %p389 = por %p387, %p388
      %p390 = scmp.ne.s32.totalorder %s381, %s382
      %p391 = scmp.eq.s32.totalorder %s35, 0
      %p392 = por %p390, %p391
      %p393 = scmp.ne.s32.totalorder %s381, %s382
      %p394 = scmp.eq.s32.totalorder %s36, 1
      %p395 = por %p393, %p394
      %p397 = scmp.ne.s32.totalorder %s382, %s396
      %p398 = scmp.eq.s32.totalorder %s36, 0
      %p399 = por %p397, %p398
      %s401 = sadd.s32 %s400, 1
      %p404 = scmp.eq.s32.totalorder %s30, 1
      %p405 = scmp.ne.s32.totalorder %s400, %s402
      %p406 = scmp.eq.s32.totalorder %s30, 0
      %p407 = por %p405, %p406
      %p408 = scmp.ne.s32.totalorder %s400, %s402
      %p409 = scmp.eq.s32.totalorder %s35, 1
      %p410 = por %p408, %p409
      %p411 = scmp.ne.s32.totalorder %s402, %s403
      %p412 = scmp.eq.s32.totalorder %s35, 0
      %p413 = por %p411, %p412
      %p414 = scmp.ne.s32.totalorder %s402, %s403
      %p415 = scmp.eq.s32.totalorder %s36, 1
      %p416 = por %p414, %p415
      %p418 = scmp.ne.s32.totalorder %s403, %s417
      %p419 = scmp.eq.s32.totalorder %s36, 0
      %p420 = por %p418, %p419
      %s422 = sadd.s32 %s421, 1
      %p425 = scmp.eq.s32.totalorder %s30, 1
      %p426 = scmp.ne.s32.totalorder %s421, %s423
      %p427 = scmp.eq.s32.totalorder %s30, 0
      %p428 = por %p426, %p427
      %p429 = scmp.ne.s32.totalorder %s421, %s423
      %p430 = scmp.eq.s32.totalorder %s35, 1
      %p431 = por %p429, %p430
      %p432 = scmp.ne.s32.totalorder %s423, %s424
      %p433 = scmp.eq.s32.totalorder %s35, 0
      %p434 = por %p432, %p433
      %p435 = scmp.ne.s32.totalorder %s423, %s424
      %p436 = scmp.eq.s32.totalorder %s36, 1
      %p437 = por %p435, %p436
      %p439 = scmp.ne.s32.totalorder %s424, %s438
      %p440 = scmp.eq.s32.totalorder %s36, 0
      %p441 = por %p439, %p440
      %s443 = sadd.s32 %s442, 1
      %p446 = scmp.eq.s32.totalorder %s30, 1
      %p447 = scmp.ne.s32.totalorder %s442, %s444
      %p448 = scmp.eq.s32.totalorder %s30, 0
      %p449 = por %p447, %p448
      %p450 = scmp.ne.s32.totalorder %s442, %s444
      %p451 = scmp.eq.s32.totalorder %s35, 1
      %p452 = por %p450, %p451
      %p453 = scmp.ne.s32.totalorder %s444, %s445
      %p454 = scmp.eq.s32.totalorder %s35, 0
      %p455 = por %p453, %p454
      %p456 = scmp.ne.s32.totalorder %s444, %s445
      %p457 = scmp.eq.s32.totalorder %s36, 1
      %p458 = por %p456, %p457
      %p460 = scmp.ne.s32.totalorder %s445, %s459
      %p461 = scmp.eq.s32.totalorder %s36, 0
      %p462 = por %p460, %p461
      %s464 = sadd.s32 %s463, 1
      %p467 = scmp.eq.s32.totalorder %s30, 1
      %p468 = scmp.ne.s32.totalorder %s463, %s465
      %p469 = scmp.eq.s32.totalorder %s30, 0
      %p470 = por %p468, %p469
      %p471 = scmp.ne.s32.totalorder %s463, %s465
      %p472 = scmp.eq.s32.totalorder %s35, 1
      %p473 = por %p471, %p472
      %p474 = scmp.ne.s32.totalorder %s465, %s466
      %p475 = scmp.eq.s32.totalorder %s35, 0
      %p476 = por %p474, %p475
      %p477 = scmp.ne.s32.totalorder %s465, %s466
      %p478 = scmp.eq.s32.totalorder %s36, 1
      %p479 = por %p477, %p478
      %p481 = scmp.ne.s32.totalorder %s466, %s480
      %p482 = scmp.eq.s32.totalorder %s36, 0
      %p483 = por %p481, %p482
      %s484 = ssub.s32 %s30, %s37
      %p485 = scmp.eq.s32.totalorder %s484, 0
      %s487 = sadd.s32 %s486, 1
      %s488 = scalar_select %p485, %s486, %s487
      %p491 = pneg %p485
      %p492 = scmp.eq.s32.totalorder %s30, 1
      %p493 = por %p491, %p492
      %p494 = scmp.ne.s32.totalorder %s486, %s489
      %p495 = scmp.eq.s32.totalorder %s30, 0
      %p496 = por %p494, %p495
      %p497 = scmp.ne.s32.totalorder %s486, %s489
      %p498 = scmp.eq.s32.totalorder %s35, 1
      %p499 = por %p497, %p498
      %p500 = scmp.ne.s32.totalorder %s489, %s490
      %p501 = scmp.eq.s32.totalorder %s35, 0
      %p502 = por %p500, %p501
      %p503 = scmp.ne.s32.totalorder %s489, %s490
      %p504 = scmp.eq.s32.totalorder %s36, 1
      %p505 = por %p503, %p504
      %p507 = scmp.ne.s32.totalorder %s490, %s506
      %p508 = scmp.eq.s32.totalorder %s36, 0
      %p509 = por %p507, %p508
      %p510 = scmp.le.s32.totalorder 1, %s30
      %p511 = scmp.lt.s32.totalorder %s30, 3
      %p512 = pnand %p510, %p511
      %p513 = pneg %p512
      // Predicated region
      $region9: #{transformer_block_pallas.5} parent=5 // pred_check
        _
      $region10: #{transformer_block_pallas.5} parent=5 // pred_check_branch
        %515 = sbr.rel (%p512) target = $region12
      $region11: #{transformer_block_pallas.5} parent=5 // pred_region
        %s516 = ssub.s32 %s30, 1
        // Predicated region
        $region13: #{transformer_block_pallas.5} parent=11 // pred_check
          %p517 = pneg %p77
        $region14: #{transformer_block_pallas.5} parent=11 // pred_check_branch
          %519 = sbr.rel (%p517) target = $region16
        $region15: #{transformer_block_pallas.5} parent=11 // pred_region
          _
        $region16: #{transformer_block_pallas.5} parent=11 // pred_fallthru
          _
        // Predicated region
        $region17: #{transformer_block_pallas.5} parent=11 // pred_check
          %p520 = pneg %p98
        $region18: #{transformer_block_pallas.5} parent=11 // pred_check_branch
          %522 = sbr.rel (%p520) target = $region20
        $region19: #{transformer_block_pallas.5} parent=11 // pred_region
          _
        $region20: #{transformer_block_pallas.5} parent=11 // pred_fallthru
          _
        // Predicated region
        $region21: #{transformer_block_pallas.5} parent=11 // pred_check
          %p523 = pneg %p119
        $region22: #{transformer_block_pallas.5} parent=11 // pred_check_branch
          %525 = sbr.rel (%p523) target = $region24
        $region23: #{transformer_block_pallas.5} parent=11 // pred_region
          _
        $region24: #{transformer_block_pallas.5} parent=11 // pred_fallthru
          _
        // Predicated region
        $region25: #{transformer_block_pallas.5} parent=11 // pred_check
          %p526 = pneg %p140
        $region26: #{transformer_block_pallas.5} parent=11 // pred_check_branch
          %528 = sbr.rel (%p526) target = $region28
        $region27: #{transformer_block_pallas.5} parent=11 // pred_region
          _
        $region28: #{transformer_block_pallas.5} parent=11 // pred_fallthru
          _
        // Predicated region
        $region29: #{transformer_block_pallas.5} parent=11 // pred_check
          %p529 = pneg %p161
        $region30: #{transformer_block_pallas.5} parent=11 // pred_check_branch
          %531 = sbr.rel (%p529) target = $region32
        $region31: #{transformer_block_pallas.5} parent=11 // pred_region
          _
        $region32: #{transformer_block_pallas.5} parent=11 // pred_fallthru
          _
        // Predicated region
        $region33: #{transformer_block_pallas.5} parent=11 // pred_check
          %p532 = pneg %p182
        $region34: #{transformer_block_pallas.5} parent=11 // pred_check_branch
          %534 = sbr.rel (%p532) target = $region36
        $region35: #{transformer_block_pallas.5} parent=11 // pred_region
          _
        $region36: #{transformer_block_pallas.5} parent=11 // pred_fallthru
          _
        // Predicated region
        $region37: #{transformer_block_pallas.5} parent=11 // pred_check
          %p535 = pneg %p203
        $region38: #{transformer_block_pallas.5} parent=11 // pred_check_branch
          %537 = sbr.rel (%p535) target = $region40
        $region39: #{transformer_block_pallas.5} parent=11 // pred_region
          _
        $region40: #{transformer_block_pallas.5} parent=11 // pred_fallthru
          _
        // Predicated region
        $region41: #{transformer_block_pallas.5} parent=11 // pred_check
          %p538 = pneg %p224
        $region42: #{transformer_block_pallas.5} parent=11 // pred_check_branch
          %540 = sbr.rel (%p538) target = $region44
        $region43: #{transformer_block_pallas.5} parent=11 // pred_region
          _
        $region44: #{transformer_block_pallas.5} parent=11 // pred_fallthru
          _
        // Predicated region
        $region45: #{transformer_block_pallas.5} parent=11 // pred_check
          %p541 = pneg %p245
        $region46: #{transformer_block_pallas.5} parent=11 // pred_check_branch
          %543 = sbr.rel (%p541) target = $region48
        $region47: #{transformer_block_pallas.5} parent=11 // pred_region
          _
        $region48: #{transformer_block_pallas.5} parent=11 // pred_fallthru
          _
        // Predicated region
        $region49: #{transformer_block_pallas.5} parent=11 // pred_check
          %p544 = pneg %p266
        $region50: #{transformer_block_pallas.5} parent=11 // pred_check_branch
          %546 = sbr.rel (%p544) target = $region52
        $region51: #{transformer_block_pallas.5} parent=11 // pred_region
          _
        $region52: #{transformer_block_pallas.5} parent=11 // pred_fallthru
          _
        // Predicated region
        $region53: #{transformer_block_pallas.5} parent=11 // pred_check
          %p547 = pneg %p287
        $region54: #{transformer_block_pallas.5} parent=11 // pred_check_branch
          %549 = sbr.rel (%p547) target = $region56
        $region55: #{transformer_block_pallas.5} parent=11 // pred_region
          _
        $region56: #{transformer_block_pallas.5} parent=11 // pred_fallthru
          _
        // Predicated region
        $region57: #{transformer_block_pallas.5} parent=11 // pred_check
          %p550 = pneg %p308
        $region58: #{transformer_block_pallas.5} parent=11 // pred_check_branch
          %552 = sbr.rel (%p550) target = $region60
        $region59: #{transformer_block_pallas.5} parent=11 // pred_region
          _
        $region60: #{transformer_block_pallas.5} parent=11 // pred_fallthru
          _
        // Predicated region
        $region61: #{transformer_block_pallas.5} parent=11 // pred_check
          %p553 = pneg %p329
        $region62: #{transformer_block_pallas.5} parent=11 // pred_check_branch
          %555 = sbr.rel (%p553) target = $region64
        $region63: #{transformer_block_pallas.5} parent=11 // pred_region
          _
        $region64: #{transformer_block_pallas.5} parent=11 // pred_fallthru
          _
        // Predicated region
        $region65: #{transformer_block_pallas.5} parent=11 // pred_check
          %p556 = pneg %p350
        $region66: #{transformer_block_pallas.5} parent=11 // pred_check_branch
          %558 = sbr.rel (%p556) target = $region68
        $region67: #{transformer_block_pallas.5} parent=11 // pred_region
          _
        $region68: #{transformer_block_pallas.5} parent=11 // pred_fallthru
          _
        // Predicated region
        $region69: #{transformer_block_pallas.5} parent=11 // pred_check
          %p559 = pneg %p371
        $region70: #{transformer_block_pallas.5} parent=11 // pred_check_branch
          %561 = sbr.rel (%p559) target = $region72
        $region71: #{transformer_block_pallas.5} parent=11 // pred_region
          _
        $region72: #{transformer_block_pallas.5} parent=11 // pred_fallthru
          _
        // Predicated region
        $region73: #{transformer_block_pallas.5} parent=11 // pred_check
          %p562 = pneg %p392
        $region74: #{transformer_block_pallas.5} parent=11 // pred_check_branch
          %564 = sbr.rel (%p562) target = $region76
        $region75: #{transformer_block_pallas.5} parent=11 // pred_region
          _
        $region76: #{transformer_block_pallas.5} parent=11 // pred_fallthru
          _
        // Predicated region
        $region77: #{transformer_block_pallas.5} parent=11 // pred_check
          %p565 = pneg %p413
        $region78: #{transformer_block_pallas.5} parent=11 // pred_check_branch
          %567 = sbr.rel (%p565) target = $region80
        $region79: #{transformer_block_pallas.5} parent=11 // pred_region
          _
        $region80: #{transformer_block_pallas.5} parent=11 // pred_fallthru
          _
        // Predicated region
        $region81: #{transformer_block_pallas.5} parent=11 // pred_check
          %p568 = pneg %p434
        $region82: #{transformer_block_pallas.5} parent=11 // pred_check_branch
          %570 = sbr.rel (%p568) target = $region84
        $region83: #{transformer_block_pallas.5} parent=11 // pred_region
          _
        $region84: #{transformer_block_pallas.5} parent=11 // pred_fallthru
          _
        // Predicated region
        $region85: #{transformer_block_pallas.5} parent=11 // pred_check
          %p571 = pneg %p455
        $region86: #{transformer_block_pallas.5} parent=11 // pred_check_branch
          %573 = sbr.rel (%p571) target = $region88
        $region87: #{transformer_block_pallas.5} parent=11 // pred_region
          _
        $region88: #{transformer_block_pallas.5} parent=11 // pred_fallthru
          _
        // Predicated region
        $region89: #{transformer_block_pallas.5} parent=11 // pred_check
          %p574 = pneg %p476
        $region90: #{transformer_block_pallas.5} parent=11 // pred_check_branch
          %576 = sbr.rel (%p574) target = $region92
        $region91: #{transformer_block_pallas.5} parent=11 // pred_region
          _
        $region92: #{transformer_block_pallas.5} parent=11 // pred_fallthru
          _
      $region12: #{transformer_block_pallas.5} parent=5 // pred_fallthru
        _
      %p577 = scmp.lt.s32.totalorder %s30, 2
      // Predicated region
      $region93: #{transformer_block_pallas.5} parent=5 // pred_check
        %p578 = pneg %p577
      $region94: #{transformer_block_pallas.5} parent=5 // pred_check_branch
        %580 = sbr.rel (%p578) target = $region96
      $region95: #{transformer_block_pallas.5} parent=5 // pred_region
        // Predicated region
        $region97: #{transformer_block_pallas.5} parent=95 // pred_check
          %p581 = pneg %p50
        $region98: #{transformer_block_pallas.5} parent=95 // pred_check_branch
          %583 = sbr.rel (%p581) target = $region100
        $region99: #{transformer_block_pallas.5} parent=95 // pred_region
          %p584 = scmp.lt.s32.totalorder %s30, 1
          %s585 = scalar_select %p584, %s30, 1
          %s586 = smul.addr %s585, 8
          %s587 = scalar_lea.vmem %s0, %s586
        $region100: #{transformer_block_pallas.5} parent=95 // pred_fallthru
          _
      $region96: #{transformer_block_pallas.5} parent=5 // pred_fallthru
        _
      %p588 = scmp.le.s32.totalorder 1, %s30
      %p589 = scmp.lt.s32.totalorder %s30, 3
      %p590 = pnand %p588, %p589
      %p591 = pneg %p590
      // Predicated region
      $region101: #{transformer_block_pallas.5} parent=5 // pred_check
        _
      $region102: #{transformer_block_pallas.5} parent=5 // pred_check_branch
        %593 = sbr.rel (%p590) target = $region104
      $region103: #{transformer_block_pallas.5} parent=5 // pred_region
        %s594 = ssub.s32 %s30, 1
        %p595 = scmp.lt.s32.totalorder %s35, 1
        %s596 = scalar_select %p595, %s35, 1
        %s597 = smul.addr %s596, 8
        %s598 = scalar_lea.vmem %s0, %s597
        %p599 = pneg %p56
        %p600 = pneg %p53
        %p601 = pneg %p77
        %p602 = pneg %p74
        %p603 = pneg %p98
        %p604 = pneg %p95
        %p605 = pneg %p119
        %p606 = pneg %p116
        %p607 = pneg %p140
        %p608 = pneg %p137
        %p609 = pneg %p161
        %p610 = pneg %p158
        %p611 = pneg %p182
        %p612 = pneg %p179
        %p613 = pneg %p203
        %p614 = pneg %p200
        %p615 = pneg %p224
        %p616 = pneg %p221
        %p617 = pneg %p245
        %p618 = pneg %p242
        %p619 = pneg %p266
        %p620 = pneg %p263
        %p621 = pneg %p287
        %p622 = pneg %p284
        %p623 = pneg %p308
        %p624 = pneg %p305
        %p625 = pneg %p329
        %p626 = pneg %p326
        %p627 = pneg %p350
        %p628 = pneg %p347
        %p629 = pneg %p371
        %p630 = pneg %p368
        %p631 = pneg %p392
        %p632 = pneg %p389
        %p633 = pneg %p413
        %p634 = pneg %p410
        %p635 = pneg %p434
        %p636 = pneg %p431
        %p637 = pneg %p455
        %p638 = pneg %p452
        %p639 = pneg %p476
        %p640 = pneg %p473
        %p641 = pneg %p502
        %p642 = pneg %p499
        %s643 = sand.u32 %s489, 1
        %s644 = scalar_lea.sflag [#allocation3], %s643
        %s645 = sand.u32 %s489, 1
        %s646 = smul.addr %s645, 8
        %s647 = scalar_lea.vmem [#allocation2], %s646
        %p648 = scmp.lt.s32.totalorder %s35, 1
        %s649 = scalar_select %p648, %s35, 1
        %s650 = smul.addr %s649, 8
        %s651 = scalar_lea.vmem %s0, %s650
        %v652 = vld [vmem:[%s651] sm:$0xff]
        %v653 = vld [vmem:[%s1] sm:$0x1]
        %v654 = vld [vmem:[%s2] sm:$0x1]
        %vm655 = vcmask 261120
        %v656 = vsel %vm655, %v652, 0.0
        %657 = vadd.xlane.f32.xlu0 %v656
        %v658 = vpop.xlane.xlu0 %657
        %v659 = vrcp.pop 32.0
        %v660 = vmul.f32 %v658, %v659
        %v661 = vsub.f32 %v652, %v660
        %v662 = vmul.f32 %v661, %v661
        %v663 = vsel %vm655, %v662, 0.0
        %664 = vadd.xlane.f32.xlu0 %v663
        %v665 = vpop.xlane.xlu0 %664
        %v666 = vmul.f32 %v665, %v659
        %v667 = vadd.f32 %v666, 1e-05
        %v668 = vrsqrt.pop %v667
        %v669 = vmul.f32 %v661, %v668
        %v671 = vlaneseq
        %v672 = vshrl.u32 %v671, 7
        %v673 = vsub.s32 0, %v672
        %v674 = vrot.slane %v653, %v673
        %v676 = vmul.f32 %v669, %v674
        %v678 = vlaneseq
        %v679 = vshrl.u32 %v678, 7
        %v680 = vsub.s32 0, %v679
        %v681 = vrot.slane %v654, %v680
        %v683 = vadd.f32 %v676, %v681
        %v684 = vld [vmem:[%s3] sm:$0xff]
        %v685 = vld [vmem:[%s3 + $0x8] sm:$0xff]
        %v686 = vld [vmem:[%s3 + $0x10] sm:$0xff]
        %v687 = vld [vmem:[%s3 + $0x18] sm:$0xff]
        %v689 = vsel %vm655, %v683, 0
        %691 = vmatprep.subr.mxu0 0.0
        %692 = vmatpush1.msra.mxu0 %v684
        %693 = vmatprep.subr.mxu0 0.0
        %694 = vmatpush1.msra.mxu0 %v685
        %695 = vmatprep.subr.mxu0 0.0
        %696 = vmatpush1.msra.mxu0 %v686
        %697 = vmatprep.subr.mxu0 0.0
        %698 = vmatpush1.msra.mxu0 %v687
        %699 = vmatprep.subr.mxu0 0.0
        %700 = vmatpush1.msra.mxu0 0.0
        %701 = vmatprep.subr.mxu0 0.0
        %702 = vmatpush1.msra.mxu0 0.0
        %703 = vmatprep.subr.mxu0 0.0
        %704 = vmatpush1.msra.mxu0 0.0
        %705 = vmatprep.subr.mxu0 0.0
        %706 = vmatpush1.msra.mxu0 0.0
        %707 = vmatprep.subr.mxu0 0.0
        %708 = vmatpush1.msra.mxu0 0.0
        %709 = vmatprep.subr.mxu0 0.0
        %710 = vmatpush1.msra.mxu0 0.0
        %711 = vmatprep.subr.mxu0 0.0
        %712 = vmatpush1.msra.mxu0 0.0
        %713 = vmatprep.subr.mxu0 0.0
        %714 = vmatpush1.msra.mxu0 0.0
        %715 = vmatprep.subr.mxu0 0.0
        %716 = vmatpush1.msra.mxu0 0.0
        %717 = vmatprep.subr.mxu0 0.0
        %718 = vmatpush1.msra.mxu0 0.0
        %719 = vmatprep.subr.mxu0 0.0
        %720 = vmatpush1.msra.mxu0 0.0
        %721 = vmatprep.subr.mxu0 0.0
        %722 = vmatpush1.msra.mxu0 0.0
        %723 = vmatprep.subr.mxu0 0.0
        %724 = vmatpush1.msra.mxu0 0.0
        %725 = vmatprep.subr.mxu0 0.0
        %726 = vmatpush1.msra.mxu0 0.0
        %727 = vmatprep.subr.mxu0 0.0
        %728 = vmatpush1.msra.mxu0 0.0
        %729 = vmatprep.subr.mxu0 0.0
        %730 = vmatpush1.msra.mxu0 0.0
        %731 = vmatprep.subr.mxu0 0.0
        %732 = vmatpush1.msra.mxu0 0.0
        %733 = vmatprep.subr.mxu0 0.0
        %734 = vmatpush1.msra.mxu0 0.0
        %735 = vmatprep.subr.mxu0 0.0
        %736 = vmatpush1.msra.mxu0 0.0
        %737 = vmatprep.subr.mxu0 0.0
        %738 = vmatpush1.msra.mxu0 0.0
        %739 = vmatprep.subr.mxu0 0.0
        %740 = vmatpush1.msra.mxu0 0.0
        %741 = vmatprep.subr.mxu0 0.0
        %742 = vmatpush1.msra.mxu0 0.0
        %743 = vmatprep.subr.mxu0 0.0
        %744 = vmatpush1.msra.mxu0 0.0
        %745 = vmatprep.subr.mxu0 0.0
        %746 = vmatpush1.msra.mxu0 0.0
        %747 = vmatprep.subr.mxu0 0.0
        %748 = vmatpush1.msra.mxu0 0.0
        %749 = vmatprep.subr.mxu0 0.0
        %750 = vmatpush1.msra.mxu0 0.0
        %751 = vmatprep.subr.mxu0 0.0
        %752 = vmatpush1.msra.mxu0 0.0
        %753 = vmatprep.subr.mxu0 0.0
        %754 = vmatpush1.msra.mxu0 0.0
        %755 = vmatprep.mubr.f32.mxu0 0.0
        %756 = vmatmul.mubr.f32.gmra.mrb[0].mxu0 %v689
        %v757 = vpop.f32.mrb[0].mxu0
        %v758 = vadd.f32 0.0, %v757
        %v759 = vpop.f32.mrb[0].mxu0
        %760 = vdwg.mxu0
        %v761 = vld [vmem:[%s6] sm:$0x1]
        %v762 = vld [vmem:[%s7] sm:$0x1]
        %v763 = vsel %vm655, %v758, 0.0
        %764 = vadd.xlane.f32.xlu0 %v763
        %v765 = vpop.xlane.xlu0 %764
        %v766 = vmul.f32 %v765, %v659
        %v767 = vsub.f32 %v758, %v766
        %v768 = vmul.f32 %v767, %v767
        %v769 = vsel %vm655, %v768, 0.0
        %770 = vadd.xlane.f32.xlu0 %v769
        %v771 = vpop.xlane.xlu0 %770
        %v772 = vmul.f32 %v771, %v659
        %v773 = vadd.f32 %v772, 1e-05
        %v774 = vrsqrt.pop %v773
        %v775 = vmul.f32 %v767, %v774
        %v777 = vlaneseq
        %v778 = vshrl.u32 %v777, 7
        %v779 = vsub.s32 0, %v778
        %v780 = vrot.slane %v761, %v779
        %v782 = vmul.f32 %v775, %v780
        %v784 = vlaneseq
        %v785 = vshrl.u32 %v784, 7
        %v786 = vsub.s32 0, %v785
        %v787 = vrot.slane %v762, %v786
        %v789 = vadd.f32 %v782, %v787
        %v790 = vld [vmem:[%s4] sm:$0xff]
        %v791 = vld [vmem:[%s4 + $0x8] sm:$0xff]
        %v792 = vld [vmem:[%s4 + $0x10] sm:$0xff]
        %v793 = vld [vmem:[%s4 + $0x18] sm:$0xff]
        %794 = vmatprep.subr.mxu0 0.0
        %795 = vmatpush1.msra.mxu0 %v790
        %796 = vmatprep.subr.mxu0 0.0
        %797 = vmatpush1.msra.mxu0 %v791
        %798 = vmatprep.subr.mxu0 0.0
        %799 = vmatpush1.msra.mxu0 %v792
        %800 = vmatprep.subr.mxu0 0.0
        %801 = vmatpush1.msra.mxu0 %v793
        %802 = vmatprep.subr.mxu0 0.0
        %803 = vmatpush1.msra.mxu0 0.0
        %804 = vmatprep.subr.mxu0 0.0
        %805 = vmatpush1.msra.mxu0 0.0
        %806 = vmatprep.subr.mxu0 0.0
        %807 = vmatpush1.msra.mxu0 0.0
        %808 = vmatprep.subr.mxu0 0.0
        %809 = vmatpush1.msra.mxu0 0.0
        %810 = vmatprep.subr.mxu0 0.0
        %811 = vmatpush1.msra.mxu0 0.0
        %812 = vmatprep.subr.mxu0 0.0
        %813 = vmatpush1.msra.mxu0 0.0
        %814 = vmatprep.subr.mxu0 0.0
        %815 = vmatpush1.msra.mxu0 0.0
        %816 = vmatprep.subr.mxu0 0.0
        %817 = vmatpush1.msra.mxu0 0.0
        %818 = vmatprep.subr.mxu0 0.0
        %819 = vmatpush1.msra.mxu0 0.0
        %820 = vmatprep.subr.mxu0 0.0
        %821 = vmatpush1.msra.mxu0 0.0
        %822 = vmatprep.subr.mxu0 0.0
        %823 = vmatpush1.msra.mxu0 0.0
        %824 = vmatprep.subr.mxu0 0.0
        %825 = vmatpush1.msra.mxu0 0.0
        %826 = vmatprep.subr.mxu0 0.0
        %827 = vmatpush1.msra.mxu0 0.0
        %828 = vmatprep.subr.mxu0 0.0
        %829 = vmatpush1.msra.mxu0 0.0
        %830 = vmatprep.subr.mxu0 0.0
        %831 = vmatpush1.msra.mxu0 0.0
        %832 = vmatprep.subr.mxu0 0.0
        %833 = vmatpush1.msra.mxu0 0.0
        %834 = vmatprep.subr.mxu0 0.0
        %835 = vmatpush1.msra.mxu0 0.0
        %836 = vmatprep.subr.mxu0 0.0
        %837 = vmatpush1.msra.mxu0 0.0
        %838 = vmatprep.subr.mxu0 0.0
        %839 = vmatpush1.msra.mxu0 0.0
        %840 = vmatprep.subr.mxu0 0.0
        %841 = vmatpush1.msra.mxu0 0.0
        %842 = vmatprep.subr.mxu0 0.0
        %843 = vmatpush1.msra.mxu0 0.0
        %844 = vmatprep.subr.mxu0 0.0
        %845 = vmatpush1.msra.mxu0 0.0
        %846 = vmatprep.subr.mxu0 0.0
        %847 = vmatpush1.msra.mxu0 0.0
        %848 = vmatprep.subr.mxu0 0.0
        %849 = vmatpush1.msra.mxu0 0.0
        %850 = vmatprep.subr.mxu0 0.0
        %851 = vmatpush1.msra.mxu0 0.0
        %852 = vmatprep.subr.mxu0 0.0
        %853 = vmatpush1.msra.mxu0 0.0
        %854 = vmatprep.subr.mxu0 0.0
        %855 = vmatpush1.msra.mxu0 0.0
        %856 = vmatprep.subr.mxu0 0.0
        %857 = vmatpush1.msra.mxu0 0.0
        %858 = vmatprep.mubr.f32.mxu0 0.0
        %859 = vmatmul.mubr.f32.gmra.mrb[0].mxu0 %v689
        %v860 = vpop.f32.mrb[0].mxu0
        %v861 = vadd.f32 0.0, %v860
        %v862 = vpop.f32.mrb[0].mxu0
        %863 = vdwg.mxu0
        %v864 = vld [vmem:[%s8] sm:$0x1]
        %v865 = vld [vmem:[%s9] sm:$0x1]
        %v866 = vsel %vm655, %v861, 0.0
        %867 = vadd.xlane.f32.xlu0 %v866
        %v868 = vpop.xlane.xlu0 %867
        %v869 = vmul.f32 %v868, %v659
        %v870 = vsub.f32 %v861, %v869
        %v871 = vmul.f32 %v870, %v870
        %v872 = vsel %vm655, %v871, 0.0
        %873 = vadd.xlane.f32.xlu0 %v872
        %v874 = vpop.xlane.xlu0 %873
        %v875 = vmul.f32 %v874, %v659
        %v876 = vadd.f32 %v875, 1e-05
        %v877 = vrsqrt.pop %v876
        %v878 = vmul.f32 %v870, %v877
        %v880 = vlaneseq
        %v881 = vshrl.u32 %v880, 7
        %v882 = vsub.s32 0, %v881
        %v883 = vrot.slane %v864, %v882
        %v885 = vmul.f32 %v878, %v883
        %v887 = vlaneseq
        %v888 = vshrl.u32 %v887, 7
        %v889 = vsub.s32 0, %v888
        %v890 = vrot.slane %v865, %v889
        %v892 = vadd.f32 %v885, %v890
        %v893 = vld [vmem:[%s5] sm:$0xff]
        %v894 = vld [vmem:[%s5 + $0x8] sm:$0xff]
        %v895 = vld [vmem:[%s5 + $0x10] sm:$0xff]
        %v896 = vld [vmem:[%s5 + $0x18] sm:$0xff]
        %897 = vmatprep.subr.mxu0 0.0
        %898 = vmatpush1.msra.mxu0 %v893
        %899 = vmatprep.subr.mxu0 0.0
        %900 = vmatpush1.msra.mxu0 %v894
        %901 = vmatprep.subr.mxu0 0.0
        %902 = vmatpush1.msra.mxu0 %v895
        %903 = vmatprep.subr.mxu0 0.0
        %904 = vmatpush1.msra.mxu0 %v896
        %905 = vmatprep.subr.mxu0 0.0
        %906 = vmatpush1.msra.mxu0 0.0
        %907 = vmatprep.subr.mxu0 0.0
        %908 = vmatpush1.msra.mxu0 0.0
        %909 = vmatprep.subr.mxu0 0.0
        %910 = vmatpush1.msra.mxu0 0.0
        %911 = vmatprep.subr.mxu0 0.0
        %912 = vmatpush1.msra.mxu0 0.0
        %913 = vmatprep.subr.mxu0 0.0
        %914 = vmatpush1.msra.mxu0 0.0
        %915 = vmatprep.subr.mxu0 0.0
        %916 = vmatpush1.msra.mxu0 0.0
        %917 = vmatprep.subr.mxu0 0.0
        %918 = vmatpush1.msra.mxu0 0.0
        %919 = vmatprep.subr.mxu0 0.0
        %920 = vmatpush1.msra.mxu0 0.0
        %921 = vmatprep.subr.mxu0 0.0
        %922 = vmatpush1.msra.mxu0 0.0
        %923 = vmatprep.subr.mxu0 0.0
        %924 = vmatpush1.msra.mxu0 0.0
        %925 = vmatprep.subr.mxu0 0.0
        %926 = vmatpush1.msra.mxu0 0.0
        %927 = vmatprep.subr.mxu0 0.0
        %928 = vmatpush1.msra.mxu0 0.0
        %929 = vmatprep.subr.mxu0 0.0
        %930 = vmatpush1.msra.mxu0 0.0
        %931 = vmatprep.subr.mxu0 0.0
        %932 = vmatpush1.msra.mxu0 0.0
        %933 = vmatprep.subr.mxu0 0.0
        %934 = vmatpush1.msra.mxu0 0.0
        %935 = vmatprep.subr.mxu0 0.0
        %936 = vmatpush1.msra.mxu0 0.0
        %937 = vmatprep.subr.mxu0 0.0
        %938 = vmatpush1.msra.mxu0 0.0
        %939 = vmatprep.subr.mxu0 0.0
        %940 = vmatpush1.msra.mxu0 0.0
        %941 = vmatprep.subr.mxu0 0.0
        %942 = vmatpush1.msra.mxu0 0.0
        %943 = vmatprep.subr.mxu0 0.0
        %944 = vmatpush1.msra.mxu0 0.0
        %945 = vmatprep.subr.mxu0 0.0
        %946 = vmatpush1.msra.mxu0 0.0
        %947 = vmatprep.subr.mxu0 0.0
        %948 = vmatpush1.msra.mxu0 0.0
        %949 = vmatprep.subr.mxu0 0.0
        %950 = vmatpush1.msra.mxu0 0.0
        %951 = vmatprep.subr.mxu0 0.0
        %952 = vmatpush1.msra.mxu0 0.0
        %953 = vmatprep.subr.mxu0 0.0
        %954 = vmatpush1.msra.mxu0 0.0
        %955 = vmatprep.subr.mxu0 0.0
        %956 = vmatpush1.msra.mxu0 0.0
        %957 = vmatprep.subr.mxu0 0.0
        %958 = vmatpush1.msra.mxu0 0.0
        %959 = vmatprep.subr.mxu0 0.0
        %960 = vmatpush1.msra.mxu0 0.0
        %961 = vmatprep.mubr.f32.mxu0 0.0
        %962 = vmatmul.mubr.f32.gmra.mrb[0].mxu0 %v689
        %v963 = vpop.f32.mrb[0].mxu0
        %v964 = vadd.f32 0.0, %v963
        %v965 = vpop.f32.mrb[0].mxu0
        %966 = vdwg.mxu0
        %v967 = vld [vmem:[%s10] sm:$0x1]
        %v968 = vld [vmem:[%s11] sm:$0x1]
        %v969 = vsel %vm655, %v964, 0.0
        %970 = vadd.xlane.f32.xlu0 %v969
        %v971 = vpop.xlane.xlu0 %970
        %v972 = vmul.f32 %v971, %v659
        %v973 = vsub.f32 %v964, %v972
        %v974 = vmul.f32 %v973, %v973
        %v975 = vsel %vm655, %v974, 0.0
        %976 = vadd.xlane.f32.xlu0 %v975
        %v977 = vpop.xlane.xlu0 %976
        %v978 = vmul.f32 %v977, %v659
        %v979 = vadd.f32 %v978, 1e-05
        %v980 = vrsqrt.pop %v979
        %v981 = vmul.f32 %v973, %v980
        %v983 = vlaneseq
        %v984 = vshrl.u32 %v983, 7
        %v985 = vsub.s32 0, %v984
        %v986 = vrot.slane %v967, %v985
        %v988 = vmul.f32 %v981, %v986
        %v990 = vlaneseq
        %v991 = vshrl.u32 %v990, 7
        %v992 = vsub.s32 0, %v991
        %v993 = vrot.slane %v968, %v992
        %v995 = vadd.f32 %v988, %v993
        %v996 = vld [vmem:[%s12] sm:$0xff]
        %v997 = vld [vmem:[%s12 + $0x8] sm:$0xff]
        %v998 = vld [vmem:[%s12 + $0x10] sm:$0xff]
        %v999 = vld [vmem:[%s12 + $0x18] sm:$0xff]
        %vm1000 = vcmask 130048
        %v1002 = vsel %vm1000, %v789, 0
        %v1005 = vsel %vm1000, %v892, 0
        %1007 = vmatprep.subr.mxu0 0.0
        %1008 = vmatpush1.xpose.msra.mxu0 %v1005
        %1009 = vmatprep.subr.mxu0 0.0
        %1010 = vmatpush1.xpose.msra.mxu0 0.0
        %1011 = vmatprep.subr.mxu0 0.0
        %1012 = vmatpush1.xpose.msra.mxu0 0.0
        %1013 = vmatprep.subr.mxu0 0.0
        %1014 = vmatpush1.xpose.msra.mxu0 0.0
        %1015 = vmatprep.subr.mxu0 0.0
        %1016 = vmatpush1.xpose.msra.mxu0 0.0
        %1017 = vmatprep.subr.mxu0 0.0
        %1018 = vmatpush1.xpose.msra.mxu0 0.0
        %1019 = vmatprep.subr.mxu0 0.0
        %1020 = vmatpush1.xpose.msra.mxu0 0.0
        %1021 = vmatprep.subr.mxu0 0.0
        %1022 = vmatpush1.xpose.msra.mxu0 0.0
        %1023 = vmatprep.subr.mxu0 0.0
        %1024 = vmatpush1.xpose.msra.mxu0 0.0
        %1025 = vmatprep.subr.mxu0 0.0
        %1026 = vmatpush1.xpose.msra.mxu0 0.0
        %1027 = vmatprep.subr.mxu0 0.0
        %1028 = vmatpush1.xpose.msra.mxu0 0.0
        %1029 = vmatprep.subr.mxu0 0.0
        %1030 = vmatpush1.xpose.msra.mxu0 0.0
        %1031 = vmatprep.subr.mxu0 0.0
        %1032 = vmatpush1.xpose.msra.mxu0 0.0
        %1033 = vmatprep.subr.mxu0 0.0
        %1034 = vmatpush1.xpose.msra.mxu0 0.0
        %1035 = vmatprep.subr.mxu0 0.0
        %1036 = vmatpush1.xpose.msra.mxu0 0.0
        %1037 = vmatprep.subr.mxu0 0.0
        %1038 = vmatpush1.xpose.msra.mxu0 0.0
        %1039 = vmatprep.subr.mxu0 0.0
        %1040 = vmatpush1.xpose.msra.mxu0 0.0
        %1041 = vmatprep.subr.mxu0 0.0
        %1042 = vmatpush1.xpose.msra.mxu0 0.0
        %1043 = vmatprep.subr.mxu0 0.0
        %1044 = vmatpush1.xpose.msra.mxu0 0.0
        %1045 = vmatprep.subr.mxu0 0.0
        %1046 = vmatpush1.xpose.msra.mxu0 0.0
        %1047 = vmatprep.subr.mxu0 0.0
        %1048 = vmatpush1.xpose.msra.mxu0 0.0
        %1049 = vmatprep.subr.mxu0 0.0
        %1050 = vmatpush1.xpose.msra.mxu0 0.0
        %1051 = vmatprep.subr.mxu0 0.0
        %1052 = vmatpush1.xpose.msra.mxu0 0.0
        %1053 = vmatprep.subr.mxu0 0.0
        %1054 = vmatpush1.xpose.msra.mxu0 0.0
        %1055 = vmatprep.subr.mxu0 0.0
        %1056 = vmatpush1.xpose.msra.mxu0 0.0
        %1057 = vmatprep.subr.mxu0 0.0
        %1058 = vmatpush1.xpose.msra.mxu0 0.0
        %1059 = vmatprep.subr.mxu0 0.0
        %1060 = vmatpush1.xpose.msra.mxu0 0.0
        %1061 = vmatprep.subr.mxu0 0.0
        %1062 = vmatpush1.xpose.msra.mxu0 0.0
        %1063 = vmatprep.subr.mxu0 0.0
        %1064 = vmatpush1.xpose.msra.mxu0 0.0
        %1065 = vmatprep.subr.mxu0 0.0
        %1066 = vmatpush1.xpose.msra.mxu0 0.0
        %1067 = vmatprep.subr.mxu0 0.0
        %1068 = vmatpush1.xpose.msra.mxu0 0.0
        %1069 = vmatprep.subr.mxu0 0.0
        %1070 = vmatpush1.xpose.msra.mxu0 0.0
        %1071 = vmatprep.mubr.f32.mxu0 0.0
        %1072 = vmatmul.mubr.f32.gmra.mrb[0].mxu0 %v1002
        %v1073 = vpop.f32.mrb[0].mxu0
        %v1074 = vadd.f32 0.0, %v1073
        %v1075 = vpop.f32.mrb[0].mxu0
        %1076 = vdwg.mxu0
        %v1077 = vmul.f32 %v1074, 0.25
        %vm1078 = vcmask 64512
        %v1079 = vsel %vm1078, %v1077, -inf
        %1080 = vmax.xlane.f32.xlu0 %v1079
        %v1081 = vpop.xlane.xlu0 %1080
        %v1082 = vsub.f32 %v1077, %v1081
        %v1083 = vmul.f32 %v1082, 1.442695
        %v1084 = vpow.pop %v1083
        %v1085 = vsel %vm1078, %v1084, 0.0
        %1086 = vadd.xlane.f32.xlu0 %v1085
        %v1087 = vpop.xlane.xlu0 %1086
        %v1088 = vrcp.pop %v1087
        %v1089 = vmul.f32 %v1084, %v1088
        %v1091 = vsel %vm1078, %v1089, 0
        %1093 = vmatprep.subr.mxu0 0.0
        %1094 = vmatpush1.msra.mxu0 %v995
        %1095 = vmatprep.subr.mxu0 0.0
        %1096 = vmatpush1.msra.mxu0 0.0
        %1097 = vmatprep.subr.mxu0 0.0
        %1098 = vmatpush1.msra.mxu0 0.0
        %1099 = vmatprep.subr.mxu0 0.0
        %1100 = vmatpush1.msra.mxu0 0.0
        %1101 = vmatprep.subr.mxu0 0.0
        %1102 = vmatpush1.msra.mxu0 0.0
        %1103 = vmatprep.subr.mxu0 0.0
        %1104 = vmatpush1.msra.mxu0 0.0
        %1105 = vmatprep.subr.mxu0 0.0
        %1106 = vmatpush1.msra.mxu0 0.0
        %1107 = vmatprep.subr.mxu0 0.0
        %1108 = vmatpush1.msra.mxu0 0.0
        %1109 = vmatprep.subr.mxu0 0.0
        %1110 = vmatpush1.msra.mxu0 0.0
        %1111 = vmatprep.subr.mxu0 0.0
        %1112 = vmatpush1.msra.mxu0 0.0
        %1113 = vmatprep.subr.mxu0 0.0
        %1114 = vmatpush1.msra.mxu0 0.0
        %1115 = vmatprep.subr.mxu0 0.0
        %1116 = vmatpush1.msra.mxu0 0.0
        %1117 = vmatprep.subr.mxu0 0.0
        %1118 = vmatpush1.msra.mxu0 0.0
        %1119 = vmatprep.subr.mxu0 0.0
        %1120 = vmatpush1.msra.mxu0 0.0
        %1121 = vmatprep.subr.mxu0 0.0
        %1122 = vmatpush1.msra.mxu0 0.0
        %1123 = vmatprep.subr.mxu0 0.0
        %1124 = vmatpush1.msra.mxu0 0.0
        %1125 = vmatprep.subr.mxu0 0.0
        %1126 = vmatpush1.msra.mxu0 0.0
        %1127 = vmatprep.subr.mxu0 0.0
        %1128 = vmatpush1.msra.mxu0 0.0
        %1129 = vmatprep.subr.mxu0 0.0
        %1130 = vmatpush1.msra.mxu0 0.0
        %1131 = vmatprep.subr.mxu0 0.0
        %1132 = vmatpush1.msra.mxu0 0.0
        %1133 = vmatprep.subr.mxu0 0.0
        %1134 = vmatpush1.msra.mxu0 0.0
        %1135 = vmatprep.subr.mxu0 0.0
        %1136 = vmatpush1.msra.mxu0 0.0
        %1137 = vmatprep.subr.mxu0 0.0
        %1138 = vmatpush1.msra.mxu0 0.0
        %1139 = vmatprep.subr.mxu0 0.0
        %1140 = vmatpush1.msra.mxu0 0.0
        %1141 = vmatprep.subr.mxu0 0.0
        %1142 = vmatpush1.msra.mxu0 0.0
        %1143 = vmatprep.subr.mxu0 0.0
        %1144 = vmatpush1.msra.mxu0 0.0
        %1145 = vmatprep.subr.mxu0 0.0
        %1146 = vmatpush1.msra.mxu0 0.0
        %1147 = vmatprep.subr.mxu0 0.0
        %1148 = vmatpush1.msra.mxu0 0.0
        %1149 = vmatprep.subr.mxu0 0.0
        %1150 = vmatpush1.msra.mxu0 0.0
        %1151 = vmatprep.subr.mxu0 0.0
        %1152 = vmatpush1.msra.mxu0 0.0
        %1153 = vmatprep.subr.mxu0 0.0
        %1154 = vmatpush1.msra.mxu0 0.0
        %1155 = vmatprep.subr.mxu0 0.0
        %1156 = vmatpush1.msra.mxu0 0.0
        %1157 = vmatprep.mubr.f32.mxu0 0.0
        %1158 = vmatmul.mubr.f32.gmra.mrb[0].mxu0 %v1091
        %v1159 = vpop.f32.mrb[0].mxu0
        %v1160 = vadd.f32 0.0, %v1159
        %v1161 = vpop.f32.mrb[0].mxu0
        %1162 = vdwg.mxu0
        %1163 = vrot.lane.b32.xlu0 %v789, 112
        %v1164 = vpop.permute.xlu0 %1163
        %1165 = vrot.lane.b32.xlu0 %v892, 112
        %v1166 = vpop.permute.xlu0 %1165
        %v1167 = vsel %vm1000, %v1164, 0
        %v1169 = vsel %vm1000, %v1166, 0
        %1171 = vmatprep.subr.mxu0 0.0
        %1172 = vmatpush1.xpose.msra.mxu0 %v1169
        %1173 = vmatprep.subr.mxu0 0.0
        %1174 = vmatpush1.xpose.msra.mxu0 0.0
        %1175 = vmatprep.subr.mxu0 0.0
        %1176 = vmatpush1.xpose.msra.mxu0 0.0
        %1177 = vmatprep.subr.mxu0 0.0
        %1178 = vmatpush1.xpose.msra.mxu0 0.0
        %1179 = vmatprep.subr.mxu0 0.0
        %1180 = vmatpush1.xpose.msra.mxu0 0.0
        %1181 = vmatprep.subr.mxu0 0.0
        %1182 = vmatpush1.xpose.msra.mxu0 0.0
        %1183 = vmatprep.subr.mxu0 0.0
        %1184 = vmatpush1.xpose.msra.mxu0 0.0
        %1185 = vmatprep.subr.mxu0 0.0
        %1186 = vmatpush1.xpose.msra.mxu0 0.0
        %1187 = vmatprep.subr.mxu0 0.0
        %1188 = vmatpush1.xpose.msra.mxu0 0.0
        %1189 = vmatprep.subr.mxu0 0.0
        %1190 = vmatpush1.xpose.msra.mxu0 0.0
        %1191 = vmatprep.subr.mxu0 0.0
        %1192 = vmatpush1.xpose.msra.mxu0 0.0
        %1193 = vmatprep.subr.mxu0 0.0
        %1194 = vmatpush1.xpose.msra.mxu0 0.0
        %1195 = vmatprep.subr.mxu0 0.0
        %1196 = vmatpush1.xpose.msra.mxu0 0.0
        %1197 = vmatprep.subr.mxu0 0.0
        %1198 = vmatpush1.xpose.msra.mxu0 0.0
        %1199 = vmatprep.subr.mxu0 0.0
        %1200 = vmatpush1.xpose.msra.mxu0 0.0
        %1201 = vmatprep.subr.mxu0 0.0
        %1202 = vmatpush1.xpose.msra.mxu0 0.0
        %1203 = vmatprep.subr.mxu0 0.0
        %1204 = vmatpush1.xpose.msra.mxu0 0.0
        %1205 = vmatprep.subr.mxu0 0.0
        %1206 = vmatpush1.xpose.msra.mxu0 0.0
        %1207 = vmatprep.subr.mxu0 0.0
        %1208 = vmatpush1.xpose.msra.mxu0 0.0
        %1209 = vmatprep.subr.mxu0 0.0
        %1210 = vmatpush1.xpose.msra.mxu0 0.0
        %1211 = vmatprep.subr.mxu0 0.0
        %1212 = vmatpush1.xpose.msra.mxu0 0.0
        %1213 = vmatprep.subr.mxu0 0.0
        %1214 = vmatpush1.xpose.msra.mxu0 0.0
        %1215 = vmatprep.subr.mxu0 0.0
        %1216 = vmatpush1.xpose.msra.mxu0 0.0
        %1217 = vmatprep.subr.mxu0 0.0
        %1218 = vmatpush1.xpose.msra.mxu0 0.0
        %1219 = vmatprep.subr.mxu0 0.0
        %1220 = vmatpush1.xpose.msra.mxu0 0.0
        %1221 = vmatprep.subr.mxu0 0.0
        %1222 = vmatpush1.xpose.msra.mxu0 0.0
        %1223 = vmatprep.subr.mxu0 0.0
        %1224 = vmatpush1.xpose.msra.mxu0 0.0
        %1225 = vmatprep.subr.mxu0 0.0
        %1226 = vmatpush1.xpose.msra.mxu0 0.0
        %1227 = vmatprep.subr.mxu0 0.0
        %1228 = vmatpush1.xpose.msra.mxu0 0.0
        %1229 = vmatprep.subr.mxu0 0.0
        %1230 = vmatpush1.xpose.msra.mxu0 0.0
        %1231 = vmatprep.subr.mxu0 0.0
        %1232 = vmatpush1.xpose.msra.mxu0 0.0
        %1233 = vmatprep.subr.mxu0 0.0
        %1234 = vmatpush1.xpose.msra.mxu0 0.0
        %1235 = vmatprep.mubr.f32.mxu0 0.0
        %1236 = vmatmul.mubr.f32.gmra.mrb[0].mxu0 %v1167
        %v1237 = vpop.f32.mrb[0].mxu0
        %v1238 = vadd.f32 0.0, %v1237
        %v1239 = vpop.f32.mrb[0].mxu0
        %1240 = vdwg.mxu0
        %v1241 = vmul.f32 %v1238, 0.25
        %v1242 = vsel %vm1078, %v1241, -inf
        %1243 = vmax.xlane.f32.xlu0 %v1242
        %v1244 = vpop.xlane.xlu0 %1243
        %v1245 = vsub.f32 %v1241, %v1244
        %v1246 = vmul.f32 %v1245, 1.442695
        %v1247 = vpow.pop %v1246
        %v1248 = vsel %vm1078, %v1247, 0.0
        %1249 = vadd.xlane.f32.xlu0 %v1248
        %v1250 = vpop.xlane.xlu0 %1249
        %v1251 = vrcp.pop %v1250
        %v1252 = vmul.f32 %v1247, %v1251
        %1254 = vrot.lane.b32.xlu0 %v995, 112
        %v1255 = vpop.permute.xlu0 %1254
        %v1258 = vsel %vm1078, %v1252, 0
        %1260 = vmatprep.subr.mxu0 0.0
        %1261 = vmatpush1.msra.mxu0 %v1255
        %1262 = vmatprep.subr.mxu0 0.0
        %1263 = vmatpush1.msra.mxu0 0.0
        %1264 = vmatprep.subr.mxu0 0.0
        %1265 = vmatpush1.msra.mxu0 0.0
        %1266 = vmatprep.subr.mxu0 0.0
        %1267 = vmatpush1.msra.mxu0 0.0
        %1268 = vmatprep.subr.mxu0 0.0
        %1269 = vmatpush1.msra.mxu0 0.0
        %1270 = vmatprep.subr.mxu0 0.0
        %1271 = vmatpush1.msra.mxu0 0.0
        %1272 = vmatprep.subr.mxu0 0.0
        %1273 = vmatpush1.msra.mxu0 0.0
        %1274 = vmatprep.subr.mxu0 0.0
        %1275 = vmatpush1.msra.mxu0 0.0
        %1276 = vmatprep.subr.mxu0 0.0
        %1277 = vmatpush1.msra.mxu0 0.0
        %1278 = vmatprep.subr.mxu0 0.0
        %1279 = vmatpush1.msra.mxu0 0.0
        %1280 = vmatprep.subr.mxu0 0.0
        %1281 = vmatpush1.msra.mxu0 0.0
        %1282 = vmatprep.subr.mxu0 0.0
        %1283 = vmatpush1.msra.mxu0 0.0
        %1284 = vmatprep.subr.mxu0 0.0
        %1285 = vmatpush1.msra.mxu0 0.0
        %1286 = vmatprep.subr.mxu0 0.0
        %1287 = vmatpush1.msra.mxu0 0.0
        %1288 = vmatprep.subr.mxu0 0.0
        %1289 = vmatpush1.msra.mxu0 0.0
        %1290 = vmatprep.subr.mxu0 0.0
        %1291 = vmatpush1.msra.mxu0 0.0
        %1292 = vmatprep.subr.mxu0 0.0
        %1293 = vmatpush1.msra.mxu0 0.0
        %1294 = vmatprep.subr.mxu0 0.0
        %1295 = vmatpush1.msra.mxu0 0.0
        %1296 = vmatprep.subr.mxu0 0.0
        %1297 = vmatpush1.msra.mxu0 0.0
        %1298 = vmatprep.subr.mxu0 0.0
        %1299 = vmatpush1.msra.mxu0 0.0
        %1300 = vmatprep.subr.mxu0 0.0
        %1301 = vmatpush1.msra.mxu0 0.0
        %1302 = vmatprep.subr.mxu0 0.0
        %1303 = vmatpush1.msra.mxu0 0.0
        %1304 = vmatprep.subr.mxu0 0.0
        %1305 = vmatpush1.msra.mxu0 0.0
        %1306 = vmatprep.subr.mxu0 0.0
        %1307 = vmatpush1.msra.mxu0 0.0
        %1308 = vmatprep.subr.mxu0 0.0
        %1309 = vmatpush1.msra.mxu0 0.0
        %1310 = vmatprep.subr.mxu0 0.0
        %1311 = vmatpush1.msra.mxu0 0.0
        %1312 = vmatprep.subr.mxu0 0.0
        %1313 = vmatpush1.msra.mxu0 0.0
        %1314 = vmatprep.subr.mxu0 0.0
        %1315 = vmatpush1.msra.mxu0 0.0
        %1316 = vmatprep.subr.mxu0 0.0
        %1317 = vmatpush1.msra.mxu0 0.0
        %1318 = vmatprep.subr.mxu0 0.0
        %1319 = vmatpush1.msra.mxu0 0.0
        %1320 = vmatprep.subr.mxu0 0.0
        %1321 = vmatpush1.msra.mxu0 0.0
        %1322 = vmatprep.subr.mxu0 0.0
        %1323 = vmatpush1.msra.mxu0 0.0
        %1324 = vmatprep.mubr.f32.mxu0 0.0
        %1325 = vmatmul.mubr.f32.gmra.mrb[0].mxu0 %v1258
        %v1326 = vpop.f32.mrb[0].mxu0
        %v1327 = vadd.f32 0.0, %v1326
        %v1328 = vpop.f32.mrb[0].mxu0
        %1329 = vdwg.mxu0
        %v1331 = vsel %vm1000, %v1327, 0
        %1333 = vmatprep.subr.mxu0 0.0
        %1334 = vmatpush1.msra.mxu0 %v998
        %1335 = vmatprep.subr.mxu0 0.0
        %1336 = vmatpush1.msra.mxu0 %v999
        %1337 = vmatprep.subr.mxu0 0.0
        %1338 = vmatpush1.msra.mxu0 0.0
        %1339 = vmatprep.subr.mxu0 0.0
        %1340 = vmatpush1.msra.mxu0 0.0
        %1341 = vmatprep.subr.mxu0 0.0
        %1342 = vmatpush1.msra.mxu0 0.0
        %1343 = vmatprep.subr.mxu0 0.0
        %1344 = vmatpush1.msra.mxu0 0.0
        %1345 = vmatprep.subr.mxu0 0.0
        %1346 = vmatpush1.msra.mxu0 0.0
        %1347 = vmatprep.subr.mxu0 0.0
        %1348 = vmatpush1.msra.mxu0 0.0
        %1349 = vmatprep.subr.mxu0 0.0
        %1350 = vmatpush1.msra.mxu0 0.0
        %1351 = vmatprep.subr.mxu0 0.0
        %1352 = vmatpush1.msra.mxu0 0.0
        %1353 = vmatprep.subr.mxu0 0.0
        %1354 = vmatpush1.msra.mxu0 0.0
        %1355 = vmatprep.subr.mxu0 0.0
        %1356 = vmatpush1.msra.mxu0 0.0
        %1357 = vmatprep.subr.mxu0 0.0
        %1358 = vmatpush1.msra.mxu0 0.0
        %1359 = vmatprep.subr.mxu0 0.0
        %1360 = vmatpush1.msra.mxu0 0.0
        %1361 = vmatprep.subr.mxu0 0.0
        %1362 = vmatpush1.msra.mxu0 0.0
        %1363 = vmatprep.subr.mxu0 0.0
        %1364 = vmatpush1.msra.mxu0 0.0
        %1365 = vmatprep.subr.mxu0 0.0
        %1366 = vmatpush1.msra.mxu0 0.0
        %1367 = vmatprep.subr.mxu0 0.0
        %1368 = vmatpush1.msra.mxu0 0.0
        %1369 = vmatprep.subr.mxu0 0.0
        %1370 = vmatpush1.msra.mxu0 0.0
        %1371 = vmatprep.subr.mxu0 0.0
        %1372 = vmatpush1.msra.mxu0 0.0
        %1373 = vmatprep.subr.mxu0 0.0
        %1374 = vmatpush1.msra.mxu0 0.0
        %1375 = vmatprep.subr.mxu0 0.0
        %1376 = vmatpush1.msra.mxu0 0.0
        %1377 = vmatprep.subr.mxu0 0.0
        %1378 = vmatpush1.msra.mxu0 0.0
        %1379 = vmatprep.subr.mxu0 0.0
        %1380 = vmatpush1.msra.mxu0 0.0
        %1381 = vmatprep.subr.mxu0 0.0
        %1382 = vmatpush1.msra.mxu0 0.0
        %1383 = vmatprep.subr.mxu0 0.0
        %1384 = vmatpush1.msra.mxu0 0.0
        %1385 = vmatprep.subr.mxu0 0.0
        %1386 = vmatpush1.msra.mxu0 0.0
        %1387 = vmatprep.subr.mxu0 0.0
        %1388 = vmatpush1.msra.mxu0 0.0
        %1389 = vmatprep.subr.mxu0 0.0
        %1390 = vmatpush1.msra.mxu0 0.0
        %1391 = vmatprep.subr.mxu0 0.0
        %1392 = vmatpush1.msra.mxu0 0.0
        %1393 = vmatprep.subr.mxu0 0.0
        %1394 = vmatpush1.msra.mxu0 0.0
        %1395 = vmatprep.subr.mxu0 0.0
        %1396 = vmatpush1.msra.mxu0 0.0
        %1397 = vmatprep.mubr.f32.mxu0 0.0
        %1398 = vmatmul.mubr.f32.gmra.mrb[0].mxu0 %v1331
        %v1399 = vpop.f32.mrb[0].mxu0
        %v1400 = vadd.f32 0.0, %v1399
        %v1401 = vpop.f32.mrb[0].mxu0
        %1402 = vdwg.mxu0
        %v1404 = vsel %vm1000, %v1160, 0
        %1406 = vmatprep.subr.mxu0 0.0
        %1407 = vmatpush1.msra.mxu0 %v996
        %1408 = vmatprep.subr.mxu0 0.0
        %1409 = vmatpush1.msra.mxu0 %v997
        %1410 = vmatprep.subr.mxu0 0.0
        %1411 = vmatpush1.msra.mxu0 0.0
        %1412 = vmatprep.subr.mxu0 0.0
        %1413 = vmatpush1.msra.mxu0 0.0
        %1414 = vmatprep.subr.mxu0 0.0
        %1415 = vmatpush1.msra.mxu0 0.0
        %1416 = vmatprep.subr.mxu0 0.0
        %1417 = vmatpush1.msra.mxu0 0.0
        %1418 = vmatprep.subr.mxu0 0.0
        %1419 = vmatpush1.msra.mxu0 0.0
        %1420 = vmatprep.subr.mxu0 0.0
        %1421 = vmatpush1.msra.mxu0 0.0
        %1422 = vmatprep.subr.mxu0 0.0
        %1423 = vmatpush1.msra.mxu0 0.0
        %1424 = vmatprep.subr.mxu0 0.0
        %1425 = vmatpush1.msra.mxu0 0.0
        %1426 = vmatprep.subr.mxu0 0.0
        %1427 = vmatpush1.msra.mxu0 0.0
        %1428 = vmatprep.subr.mxu0 0.0
        %1429 = vmatpush1.msra.mxu0 0.0
        %1430 = vmatprep.subr.mxu0 0.0
        %1431 = vmatpush1.msra.mxu0 0.0
        %1432 = vmatprep.subr.mxu0 0.0
        %1433 = vmatpush1.msra.mxu0 0.0
        %1434 = vmatprep.subr.mxu0 0.0
        %1435 = vmatpush1.msra.mxu0 0.0
        %1436 = vmatprep.subr.mxu0 0.0
        %1437 = vmatpush1.msra.mxu0 0.0
        %1438 = vmatprep.subr.mxu0 0.0
        %1439 = vmatpush1.msra.mxu0 0.0
        %1440 = vmatprep.subr.mxu0 0.0
        %1441 = vmatpush1.msra.mxu0 0.0
        %1442 = vmatprep.subr.mxu0 0.0
        %1443 = vmatpush1.msra.mxu0 0.0
        %1444 = vmatprep.subr.mxu0 0.0
        %1445 = vmatpush1.msra.mxu0 0.0
        %1446 = vmatprep.subr.mxu0 0.0
        %1447 = vmatpush1.msra.mxu0 0.0
        %1448 = vmatprep.subr.mxu0 0.0
        %1449 = vmatpush1.msra.mxu0 0.0
        %1450 = vmatprep.subr.mxu0 0.0
        %1451 = vmatpush1.msra.mxu0 0.0
        %1452 = vmatprep.subr.mxu0 0.0
        %1453 = vmatpush1.msra.mxu0 0.0
        %1454 = vmatprep.subr.mxu0 0.0
        %1455 = vmatpush1.msra.mxu0 0.0
        %1456 = vmatprep.subr.mxu0 0.0
        %1457 = vmatpush1.msra.mxu0 0.0
        %1458 = vmatprep.subr.mxu0 0.0
        %1459 = vmatpush1.msra.mxu0 0.0
        %1460 = vmatprep.subr.mxu0 0.0
        %1461 = vmatpush1.msra.mxu0 0.0
        %1462 = vmatprep.subr.mxu0 0.0
        %1463 = vmatpush1.msra.mxu0 0.0
        %1464 = vmatprep.subr.mxu0 0.0
        %1465 = vmatpush1.msra.mxu0 0.0
        %1466 = vmatprep.subr.mxu0 0.0
        %1467 = vmatpush1.msra.mxu0 0.0
        %1468 = vmatprep.subr.mxu0 0.0
        %1469 = vmatpush1.msra.mxu0 0.0
        %1470 = vmatprep.mubr.f32.mxu0 0.0
        %1471 = vmatmul.mubr.f32.gmra.mrb[0].mxu0 %v1404
        %v1472 = vpop.f32.mrb[0].mxu0
        %v1473 = vadd.f32 %v1400, %v1472
        %v1474 = vpop.f32.mrb[0].mxu0
        %1475 = vdwg.mxu0
        %v1476 = vadd.f32 %v1473, %v652
        %v1477 = vld [vmem:[%s13] sm:$0x1]
        %v1478 = vld [vmem:[%s14] sm:$0x1]
        %v1479 = vsel %vm655, %v1476, 0.0
        %1480 = vadd.xlane.f32.xlu0 %v1479
        %v1481 = vpop.xlane.xlu0 %1480
        %v1482 = vmul.f32 %v1481, %v659
        %v1483 = vsub.f32 %v1476, %v1482
        %v1484 = vmul.f32 %v1483, %v1483
        %v1485 = vsel %vm655, %v1484, 0.0
        %1486 = vadd.xlane.f32.xlu0 %v1485
        %v1487 = vpop.xlane.xlu0 %1486
        %v1488 = vmul.f32 %v1487, %v659
        %v1489 = vadd.f32 %v1488, 1e-05
        %v1490 = vrsqrt.pop %v1489
        %v1491 = vmul.f32 %v1483, %v1490
        %v1493 = vlaneseq
        %v1494 = vshrl.u32 %v1493, 7
        %v1495 = vsub.s32 0, %v1494
        %v1496 = vrot.slane %v1477, %v1495
        %v1498 = vmul.f32 %v1491, %v1496
        %v1500 = vlaneseq
        %v1501 = vshrl.u32 %v1500, 7
        %v1502 = vsub.s32 0, %v1501
        %v1503 = vrot.slane %v1478, %v1502
        %v1505 = vadd.f32 %v1498, %v1503
        %v1506 = vld [vmem:[%s15] sm:$0xff]
        %v1507 = vld [vmem:[%s15 + $0x8] sm:$0xff]
        %v1508 = vld [vmem:[%s15 + $0x10] sm:$0xff]
        %v1509 = vld [vmem:[%s15 + $0x18] sm:$0xff]
        %v1510 = vld [vmem:[%s16] sm:$0x1]
        %v1512 = vlaneseq
        %v1513 = vshrl.u32 %v1512, 7
        %v1514 = vsub.s32 0, %v1513
        %v1515 = vrot.slane %v1510, %v1514
        %v1518 = vsel %vm655, %v1505, 0
        %1520 = vmatprep.subr.mxu0 0.0
        %1521 = vmatpush1.msra.mxu0 %v1506
        %1522 = vmatprep.subr.mxu0 0.0
        %1523 = vmatpush1.msra.mxu0 %v1507
        %1524 = vmatprep.subr.mxu0 0.0
        %1525 = vmatpush1.msra.mxu0 %v1508
        %1526 = vmatprep.subr.mxu0 0.0
        %1527 = vmatpush1.msra.mxu0 %v1509
        %1528 = vmatprep.subr.mxu0 0.0
        %1529 = vmatpush1.msra.mxu0 0.0
        %1530 = vmatprep.subr.mxu0 0.0
        %1531 = vmatpush1.msra.mxu0 0.0
        %1532 = vmatprep.subr.mxu0 0.0
        %1533 = vmatpush1.msra.mxu0 0.0
        %1534 = vmatprep.subr.mxu0 0.0
        %1535 = vmatpush1.msra.mxu0 0.0
        %1536 = vmatprep.subr.mxu0 0.0
        %1537 = vmatpush1.msra.mxu0 0.0
        %1538 = vmatprep.subr.mxu0 0.0
        %1539 = vmatpush1.msra.mxu0 0.0
        %1540 = vmatprep.subr.mxu0 0.0
        %1541 = vmatpush1.msra.mxu0 0.0
        %1542 = vmatprep.subr.mxu0 0.0
        %1543 = vmatpush1.msra.mxu0 0.0
        %1544 = vmatprep.subr.mxu0 0.0
        %1545 = vmatpush1.msra.mxu0 0.0
        %1546 = vmatprep.subr.mxu0 0.0
        %1547 = vmatpush1.msra.mxu0 0.0
        %1548 = vmatprep.subr.mxu0 0.0
        %1549 = vmatpush1.msra.mxu0 0.0
        %1550 = vmatprep.subr.mxu0 0.0
        %1551 = vmatpush1.msra.mxu0 0.0
        %1552 = vmatprep.subr.mxu0 0.0
        %1553 = vmatpush1.msra.mxu0 0.0
        %1554 = vmatprep.subr.mxu0 0.0
        %1555 = vmatpush1.msra.mxu0 0.0
        %1556 = vmatprep.subr.mxu0 0.0
        %1557 = vmatpush1.msra.mxu0 0.0
        %1558 = vmatprep.subr.mxu0 0.0
        %1559 = vmatpush1.msra.mxu0 0.0
        %1560 = vmatprep.subr.mxu0 0.0
        %1561 = vmatpush1.msra.mxu0 0.0
        %1562 = vmatprep.subr.mxu0 0.0
        %1563 = vmatpush1.msra.mxu0 0.0
        %1564 = vmatprep.subr.mxu0 0.0
        %1565 = vmatpush1.msra.mxu0 0.0
        %1566 = vmatprep.subr.mxu0 0.0
        %1567 = vmatpush1.msra.mxu0 0.0
        %1568 = vmatprep.subr.mxu0 0.0
        %1569 = vmatpush1.msra.mxu0 0.0
        %1570 = vmatprep.subr.mxu0 0.0
        %1571 = vmatpush1.msra.mxu0 0.0
        %1572 = vmatprep.subr.mxu0 0.0
        %1573 = vmatpush1.msra.mxu0 0.0
        %1574 = vmatprep.subr.mxu0 0.0
        %1575 = vmatpush1.msra.mxu0 0.0
        %1576 = vmatprep.subr.mxu0 0.0
        %1577 = vmatpush1.msra.mxu0 0.0
        %1578 = vmatprep.subr.mxu0 0.0
        %1579 = vmatpush1.msra.mxu0 0.0
        %1580 = vmatprep.subr.mxu0 0.0
        %1581 = vmatpush1.msra.mxu0 0.0
        %1582 = vmatprep.subr.mxu0 0.0
        %1583 = vmatpush1.msra.mxu0 0.0
        %1584 = vmatprep.mubr.f32.mxu0 0.0
        %1585 = vmatmul.mubr.f32.gmra.mrb[0].mxu0 %v1518
        %v1586 = vpop.f32.mrb[0].mxu0
        %v1587 = vadd.f32 %v1515, %v1586
        %v1588 = vpop.f32.mrb[0].mxu0
        %1589 = vdwg.mxu0
        %v1590 = vld [vmem:[%s17] sm:$0x1]
        %v1591 = vld [vmem:[%s17 + $0x1] sm:$0x1]
        %v1592 = vld [vmem:[%s17 + $0x2] sm:$0x1]
        %v1593 = vld [vmem:[%s17 + $0x3] sm:$0x1]
        %v1594 = vld [vmem:[%s17 + $0x4] sm:$0x1]
        %v1595 = vld [vmem:[%s17 + $0x5] sm:$0x1]
        %v1596 = vld [vmem:[%s18] sm:$0x1]
        %v1597 = vld [vmem:[%s18 + $0x1] sm:$0x1]
        %v1598 = vld [vmem:[%s19] sm:$0xff]
        %v1599 = vld [vmem:[%s19 + $0x8] sm:$0xff]
        %v1600 = vld [vmem:[%s19 + $0x10] sm:$0xff]
        %v1601 = vld [vmem:[%s19 + $0x18] sm:$0xff]
        %v1602 = vld [vmem:[%s19 + $0x20] sm:$0xff]
        %v1603 = vld [vmem:[%s19 + $0x28] sm:$0xff]
        %v1604 = vld [vmem:[%s19 + $0x30] sm:$0xff]
        %v1605 = vld [vmem:[%s19 + $0x38] sm:$0xff]
        %v1607 = vrot.slane %v1587, 7
        %vm1609 = vcmask 1040384
        %v1610 = vsel %vm1609, 0.0, %v1607
        %v1611 = vrot.slane %v1587, 1
        %vm1613 = vcmask 1046528
        %v1614 = vsel %vm1613, %v1611, 0.0
        %v1616 = vlaneseq
        %v1617 = vshrl.u32 %v1616, 7
        %v1618 = vsub.s32 0, %v1617
        %v1619 = vrot.slane %v1590, %v1618
        %v1621 = vmul.f32 %v1610, %v1619
        %v1623 = vlaneseq
        %v1624 = vshrl.u32 %v1623, 7
        %v1625 = vsub.s32 0, %v1624
        %v1626 = vrot.slane %v1596, %v1625
        %v1628 = vadd.f32 %v1626, %v1621
        %v1630 = vlaneseq
        %v1631 = vshrl.u32 %v1630, 7
        %v1632 = vsub.s32 0, %v1631
        %v1633 = vrot.slane %v1592, %v1632
        %v1635 = vmul.f32 %v1587, %v1633
        %v1636 = vadd.f32 %v1628, %v1635
        %v1638 = vlaneseq
        %v1639 = vshrl.u32 %v1638, 7
        %v1640 = vsub.s32 0, %v1639
        %v1641 = vrot.slane %v1594, %v1640
        %v1643 = vmul.f32 %v1614, %v1641
        %v1644 = vadd.f32 %v1636, %v1643
        %v1645 = vmul.f32 %v1644, 0.5
        %v1646 = vmul.f32 %v1644, 0.70710677
        %vm1647 = vcmp.lt.f32.partialorder %v1646, 0.0
        %v1648 = vsel %vm1647, -1.0, 1.0
        %v1649 = vand.u32 2147483647, %v1646
        %v1650 = vmul.f32 %v1649, 0.3275911
        %v1651 = vadd.f32 %v1650, 1.0
        %v1652 = vrcp.pop %v1651
        %v1653 = vmul.f32 1.0, %v1652
        %v1654 = vmul.f32 %v1653, 1.0614054
        %v1655 = vadd.f32 %v1654, -1.4531521
        %v1656 = vmul.f32 %v1655, %v1653
        %v1657 = vadd.f32 %v1656, 1.4214138
        %v1658 = vmul.f32 %v1657, %v1653
        %v1659 = vadd.f32 %v1658, -0.28449672
        %v1660 = vmul.f32 %v1659, %v1653
        %v1661 = vadd.f32 %v1660, 0.2548296
        %v1662 = vmul.f32 %v1661, %v1653
        %v1663 = vsub.f32 0.0, %v1649
        %v1664 = vmul.f32 %v1663, %v1649
        %v1665 = vmul.f32 %v1664, 1.442695
        %v1666 = vpow.pop %v1665
        %v1667 = vmul.f32 %v1662, %v1666
        %v1668 = vsub.f32 1.0, %v1667
        %v1669 = vmul.f32 %v1648, %v1668
        %v1670 = vadd.f32 %v1669, 1.0
        %v1671 = vmul.f32 %v1645, %v1670
        %v1673 = vlaneseq
        %v1674 = vshrl.u32 %v1673, 7
        %v1675 = vsub.s32 0, %v1674
        %v1676 = vrot.slane %v1591, %v1675
        %v1678 = vmul.f32 %v1610, %v1676
        %v1680 = vlaneseq
        %v1681 = vshrl.u32 %v1680, 7
        %v1682 = vsub.s32 0, %v1681
        %v1683 = vrot.slane %v1597, %v1682
        %v1685 = vadd.f32 %v1683, %v1678
        %v1687 = vlaneseq
        %v1688 = vshrl.u32 %v1687, 7
        %v1689 = vsub.s32 0, %v1688
        %v1690 = vrot.slane %v1593, %v1689
        %v1692 = vmul.f32 %v1587, %v1690
        %v1693 = vadd.f32 %v1685, %v1692
        %v1695 = vlaneseq
        %v1696 = vshrl.u32 %v1695, 7
        %v1697 = vsub.s32 0, %v1696
        %v1698 = vrot.slane %v1595, %v1697
        %v1700 = vmul.f32 %v1614, %v1698
        %v1701 = vadd.f32 %v1693, %v1700
        %v1702 = vmul.f32 %v1701, 0.5
        %v1703 = vmul.f32 %v1701, 0.70710677
        %vm1704 = vcmp.lt.f32.partialorder %v1703, 0.0
        %v1705 = vsel %vm1704, -1.0, 1.0
        %v1706 = vand.u32 2147483647, %v1703
        %v1707 = vmul.f32 %v1706, 0.3275911
        %v1708 = vadd.f32 %v1707, 1.0
        %v1709 = vrcp.pop %v1708
        %v1710 = vmul.f32 1.0, %v1709
        %v1711 = vmul.f32 %v1710, 1.0614054
        %v1712 = vadd.f32 %v1711, -1.4531521
        %v1713 = vmul.f32 %v1712, %v1710
        %v1714 = vadd.f32 %v1713, 1.4214138
        %v1715 = vmul.f32 %v1714, %v1710
        %v1716 = vadd.f32 %v1715, -0.28449672
        %v1717 = vmul.f32 %v1716, %v1710
        %v1718 = vadd.f32 %v1717, 0.2548296
        %v1719 = vmul.f32 %v1718, %v1710
        %v1720 = vsub.f32 0.0, %v1706
        %v1721 = vmul.f32 %v1720, %v1706
        %v1722 = vmul.f32 %v1721, 1.442695
        %v1723 = vpow.pop %v1722
        %v1724 = vmul.f32 %v1719, %v1723
        %v1725 = vsub.f32 1.0, %v1724
        %v1726 = vmul.f32 %v1705, %v1725
        %v1727 = vadd.f32 %v1726, 1.0
        %v1728 = vmul.f32 %v1702, %v1727
        %v1730 = vsel %vm655, %v1728, 0
        %1732 = vmatprep.subr.mxu0 0.0
        %1733 = vmatpush1.msra.mxu0 %v1602
        %1734 = vmatprep.subr.mxu0 0.0
        %1735 = vmatpush1.msra.mxu0 %v1603
        %1736 = vmatprep.subr.mxu0 0.0
        %1737 = vmatpush1.msra.mxu0 %v1604
        %1738 = vmatprep.subr.mxu0 0.0
        %1739 = vmatpush1.msra.mxu0 %v1605
        %1740 = vmatprep.subr.mxu0 0.0
        %1741 = vmatpush1.msra.mxu0 0.0
        %1742 = vmatprep.subr.mxu0 0.0
        %1743 = vmatpush1.msra.mxu0 0.0
        %1744 = vmatprep.subr.mxu0 0.0
        %1745 = vmatpush1.msra.mxu0 0.0
        %1746 = vmatprep.subr.mxu0 0.0
        %1747 = vmatpush1.msra.mxu0 0.0
        %1748 = vmatprep.subr.mxu0 0.0
        %1749 = vmatpush1.msra.mxu0 0.0
        %1750 = vmatprep.subr.mxu0 0.0
        %1751 = vmatpush1.msra.mxu0 0.0
        %1752 = vmatprep.subr.mxu0 0.0
        %1753 = vmatpush1.msra.mxu0 0.0
        %1754 = vmatprep.subr.mxu0 0.0
        %1755 = vmatpush1.msra.mxu0 0.0
        %1756 = vmatprep.subr.mxu0 0.0
        %1757 = vmatpush1.msra.mxu0 0.0
        %1758 = vmatprep.subr.mxu0 0.0
        %1759 = vmatpush1.msra.mxu0 0.0
        %1760 = vmatprep.subr.mxu0 0.0
        %1761 = vmatpush1.msra.mxu0 0.0
        %1762 = vmatprep.subr.mxu0 0.0
        %1763 = vmatpush1.msra.mxu0 0.0
        %1764 = vmatprep.subr.mxu0 0.0
        %1765 = vmatpush1.msra.mxu0 0.0
        %1766 = vmatprep.subr.mxu0 0.0
        %1767 = vmatpush1.msra.mxu0 0.0
        %1768 = vmatprep.subr.mxu0 0.0
        %1769 = vmatpush1.msra.mxu0 0.0
        %1770 = vmatprep.subr.mxu0 0.0
        %1771 = vmatpush1.msra.mxu0 0.0
        %1772 = vmatprep.subr.mxu0 0.0
        %1773 = vmatpush1.msra.mxu0 0.0
        %1774 = vmatprep.subr.mxu0 0.0
        %1775 = vmatpush1.msra.mxu0 0.0
        %1776 = vmatprep.subr.mxu0 0.0
        %1777 = vmatpush1.msra.mxu0 0.0
        %1778 = vmatprep.subr.mxu0 0.0
        %1779 = vmatpush1.msra.mxu0 0.0
        %1780 = vmatprep.subr.mxu0 0.0
        %1781 = vmatpush1.msra.mxu0 0.0
        %1782 = vmatprep.subr.mxu0 0.0
        %1783 = vmatpush1.msra.mxu0 0.0
        %1784 = vmatprep.subr.mxu0 0.0
        %1785 = vmatpush1.msra.mxu0 0.0
        %1786 = vmatprep.subr.mxu0 0.0
        %1787 = vmatpush1.msra.mxu0 0.0
        %1788 = vmatprep.subr.mxu0 0.0
        %1789 = vmatpush1.msra.mxu0 0.0
        %1790 = vmatprep.subr.mxu0 0.0
        %1791 = vmatpush1.msra.mxu0 0.0
        %1792 = vmatprep.subr.mxu0 0.0
        %1793 = vmatpush1.msra.mxu0 0.0
        %1794 = vmatprep.subr.mxu0 0.0
        %1795 = vmatpush1.msra.mxu0 0.0
        %1796 = vmatprep.mubr.f32.mxu0 0.0
        %1797 = vmatmul.mubr.f32.gmra.mrb[0].mxu0 %v1730
        %v1798 = vpop.f32.mrb[0].mxu0
        %v1799 = vadd.f32 0.0, %v1798
        %v1800 = vpop.f32.mrb[0].mxu0
        %1801 = vdwg.mxu0
        %v1803 = vsel %vm655, %v1671, 0
        %1805 = vmatprep.subr.mxu0 0.0
        %1806 = vmatpush1.msra.mxu0 %v1598
        %1807 = vmatprep.subr.mxu0 0.0
        %1808 = vmatpush1.msra.mxu0 %v1599
        %1809 = vmatprep.subr.mxu0 0.0
        %1810 = vmatpush1.msra.mxu0 %v1600
        %1811 = vmatprep.subr.mxu0 0.0
        %1812 = vmatpush1.msra.mxu0 %v1601
        %1813 = vmatprep.subr.mxu0 0.0
        %1814 = vmatpush1.msra.mxu0 0.0
        %1815 = vmatprep.subr.mxu0 0.0
        %1816 = vmatpush1.msra.mxu0 0.0
        %1817 = vmatprep.subr.mxu0 0.0
        %1818 = vmatpush1.msra.mxu0 0.0
        %1819 = vmatprep.subr.mxu0 0.0
        %1820 = vmatpush1.msra.mxu0 0.0
        %1821 = vmatprep.subr.mxu0 0.0
        %1822 = vmatpush1.msra.mxu0 0.0
        %1823 = vmatprep.subr.mxu0 0.0
        %1824 = vmatpush1.msra.mxu0 0.0
        %1825 = vmatprep.subr.mxu0 0.0
        %1826 = vmatpush1.msra.mxu0 0.0
        %1827 = vmatprep.subr.mxu0 0.0
        %1828 = vmatpush1.msra.mxu0 0.0
        %1829 = vmatprep.subr.mxu0 0.0
        %1830 = vmatpush1.msra.mxu0 0.0
        %1831 = vmatprep.subr.mxu0 0.0
        %1832 = vmatpush1.msra.mxu0 0.0
        %1833 = vmatprep.subr.mxu0 0.0
        %1834 = vmatpush1.msra.mxu0 0.0
        %1835 = vmatprep.subr.mxu0 0.0
        %1836 = vmatpush1.msra.mxu0 0.0
        %1837 = vmatprep.subr.mxu0 0.0
        %1838 = vmatpush1.msra.mxu0 0.0
        %1839 = vmatprep.subr.mxu0 0.0
        %1840 = vmatpush1.msra.mxu0 0.0
        %1841 = vmatprep.subr.mxu0 0.0
        %1842 = vmatpush1.msra.mxu0 0.0
        %1843 = vmatprep.subr.mxu0 0.0
        %1844 = vmatpush1.msra.mxu0 0.0
        %1845 = vmatprep.subr.mxu0 0.0
        %1846 = vmatpush1.msra.mxu0 0.0
        %1847 = vmatprep.subr.mxu0 0.0
        %1848 = vmatpush1.msra.mxu0 0.0
        %1849 = vmatprep.subr.mxu0 0.0
        %1850 = vmatpush1.msra.mxu0 0.0
        %1851 = vmatprep.subr.mxu0 0.0
        %1852 = vmatpush1.msra.mxu0 0.0
        %1853 = vmatprep.subr.mxu0 0.0
        %1854 = vmatpush1.msra.mxu0 0.0
        %1855 = vmatprep.subr.mxu0 0.0
        %1856 = vmatpush1.msra.mxu0 0.0
        %1857 = vmatprep.subr.mxu0 0.0
        %1858 = vmatpush1.msra.mxu0 0.0
        %1859 = vmatprep.subr.mxu0 0.0
        %1860 = vmatpush1.msra.mxu0 0.0
        %1861 = vmatprep.subr.mxu0 0.0
        %1862 = vmatpush1.msra.mxu0 0.0
        %1863 = vmatprep.subr.mxu0 0.0
        %1864 = vmatpush1.msra.mxu0 0.0
        %1865 = vmatprep.subr.mxu0 0.0
        %1866 = vmatpush1.msra.mxu0 0.0
        %1867 = vmatprep.subr.mxu0 0.0
        %1868 = vmatpush1.msra.mxu0 0.0
        %1869 = vmatprep.mubr.f32.mxu0 0.0
        %1870 = vmatmul.mubr.f32.gmra.mrb[0].mxu0 %v1803
        %v1871 = vpop.f32.mrb[0].mxu0
        %v1872 = vadd.f32 %v1799, %v1871
        %v1873 = vpop.f32.mrb[0].mxu0
        %1874 = vdwg.mxu0
        %v1875 = vld [vmem:[%s20] sm:$0x1]
        %v1877 = vlaneseq
        %v1878 = vshrl.u32 %v1877, 7
        %v1879 = vsub.s32 0, %v1878
        %v1880 = vrot.slane %v1875, %v1879
        %v1882 = vadd.f32 %v1872, %v1880
        %v1883 = vadd.f32 %v1882, %v1476
        %1884 = vst.msk [vmem:[%s647] sm:$0xff] %vm655, %v1883
        %s1885 = sand.u32 %s489, 1
        %s1886 = scalar_lea.sflag [#allocation3], %s1885
        %s1887 = sand.u32 %s489, 1
        %s1888 = smul.addr %s1887, 8
        %s1889 = scalar_lea.vmem [#allocation2], %s1888
        // Predicated region
        $region105: #{transformer_block_pallas.5} parent=103 // pred_check
          %p1890 = pneg %p499
        $region106: #{transformer_block_pallas.5} parent=103 // pred_check_branch
          %1892 = sbr.rel (%p1890) target = $region108
        $region107: #{transformer_block_pallas.5} parent=103 // pred_region
          %s1894 = ssub.s32 128, 128
          %1895 = vsyncadd %s1886, %s1894
          %s1896 = smul.addr %s35, 128
          %s1897 = scalar_lea.hbm %s21, %s1896
          %s1899 = sshll.u32 %s1889, 4
          %s1900 = int_to_ptr.vmem [resolvable:$true] %s1899
          %1902 = dma.vmem_to_hbm [thread:$0]  %s1900, 128, %s1897, %s1886
        $region108: #{transformer_block_pallas.5} parent=103 // pred_fallthru
          _
      $region104: #{transformer_block_pallas.5} parent=5 // pred_fallthru
        _
      %p1903 = scmp.le.s32.totalorder 2, %s30
      // Predicated region
      $region109: #{transformer_block_pallas.5} parent=5 // pred_check
        %p1904 = pneg %p1903
      $region110: #{transformer_block_pallas.5} parent=5 // pred_check_branch
        %1906 = sbr.rel (%p1904) target = $region112
      $region111: #{transformer_block_pallas.5} parent=5 // pred_region
        %s1907 = ssub.s32 %s30, 2
        // Predicated region
        $region113: #{transformer_block_pallas.5} parent=111 // pred_check
          %p1908 = pneg %p505
        $region114: #{transformer_block_pallas.5} parent=111 // pred_check_branch
          %1910 = sbr.rel (%p1908) target = $region116
        $region115: #{transformer_block_pallas.5} parent=111 // pred_region
          %s1911 = sand.u32 %s490, 1
          %s1912 = scalar_lea.sflag [#allocation3], %s1911
          %s1913 = sand.u32 %s490, 1
          %s1914 = smul.addr %s1913, 8
          %s1915 = scalar_lea.vmem [#allocation2], %s1914
          %1916 = dma.done %s1912, 128
        $region116: #{transformer_block_pallas.5} parent=111 // pred_fallthru
          _
      $region112: #{transformer_block_pallas.5} parent=5 // pred_fallthru
        _
    $region6: #{transformer_block_pallas.5} parent=1 // loop_footer
      %s34 = sadd.s32 1, %s30
    $region7: #{transformer_block_pallas.5} parent=1 // loop_footer_branch
      %29 = sbr.rel target = $region3
    $region8: #{transformer_block_pallas.5} parent=1 // loop_exit
      _
    %1917 = vsyncpa [#allocation3], 1
    %s1918 = scalar_lea.sflag [#allocation3], 1
    %1919 = vsyncpa %s1918, 1

// kernel: transformer_block_pallas.4
$region0: #{transformer_block_pallas.4}
  #allocation0 [shape = 'u32[]', space=smem, size = 0x4, offset = 0x4, fixed_abs, tag = 'smem constant byte address 0x4 - core index']
  #allocation1 [shape = 'u32[144,128]{1,0:T(1,128)}', space=vmem, size = 0x12000, scoped, tag = 'internal scratch']
  %s0 = inlined_call_operand.vmem [shape: f32[2,8,32], index: 0, kind: input, shape index: {}]
  %s1 = inlined_call_operand.vmem [shape: f32[1,32], index: 1, kind: input, shape index: {}]
  %s2 = inlined_call_operand.vmem [shape: f32[1,32], index: 2, kind: input, shape index: {}]
  %s3 = inlined_call_operand.vmem [shape: f32[32,32], index: 3, kind: input, shape index: {}]
  %s4 = inlined_call_operand.vmem [shape: f32[32,32], index: 4, kind: input, shape index: {}]
  %s5 = inlined_call_operand.vmem [shape: f32[32,32], index: 5, kind: input, shape index: {}]
  %s6 = inlined_call_operand.vmem [shape: f32[1,32], index: 6, kind: input, shape index: {}]
  %s7 = inlined_call_operand.vmem [shape: f32[1,32], index: 7, kind: input, shape index: {}]
  %s8 = inlined_call_operand.vmem [shape: f32[1,32], index: 8, kind: input, shape index: {}]
  %s9 = inlined_call_operand.vmem [shape: f32[1,32], index: 9, kind: input, shape index: {}]
  %s10 = inlined_call_operand.vmem [shape: f32[1,32], index: 10, kind: input, shape index: {}]
  %s11 = inlined_call_operand.vmem [shape: f32[1,32], index: 11, kind: input, shape index: {}]
  %s12 = inlined_call_operand.vmem [shape: f32[32,32], index: 12, kind: input, shape index: {}]
  %s13 = inlined_call_operand.vmem [shape: f32[1,32], index: 13, kind: input, shape index: {}]
  %s14 = inlined_call_operand.vmem [shape: f32[1,32], index: 14, kind: input, shape index: {}]
  %s15 = inlined_call_operand.vmem [shape: f32[32,32], index: 15, kind: input, shape index: {}]
  %s16 = inlined_call_operand.vmem [shape: f32[1,32], index: 16, kind: input, shape index: {}]
  %s17 = inlined_call_operand.vmem [shape: f32[3,2,1,32], index: 17, kind: input, shape index: {}]
  %s18 = inlined_call_operand.vmem [shape: f32[2,1,32], index: 18, kind: input, shape index: {}]
  %s19 = inlined_call_operand.vmem [shape: f32[2,32,32], index: 19, kind: input, shape index: {}]
  %s20 = inlined_call_operand.vmem [shape: f32[1,32], index: 20, kind: input, shape index: {}]
  %s21 = inlined_call_operand.vmem [shape: f32[2,8,32], index: 21, kind: output, shape index: {}]
  %s22 = sld [smem:[#allocation0]]
  $region117: #{transformer_block_pallas.4} parent=0
    _
  %s24 = ssub.s32 1, %s22
  %s25 = scalar_select 0, %s24, %s22
  loop: start=0, step=1, limit=4
  $region2: #{transformer_block_pallas.4} parent=0 // loop_pre_header
    _
  $region3: #{transformer_block_pallas.4} parent=0 // loop_header
    %s27 = sphi 0, %s31
    %p28 = scmp.ge.s32.totalorder %s27, 4
    %s37 = sphi 0, %s39
    %s40 = sphi 0, %s37
    %s41 = sphi 0, %s40
    %s57 = sphi 0, %s41
    %s61 = sphi 0, %s61
    %s63 = sphi 0, %s61
    %s64 = sphi 0, %s63
    %s78 = sphi 0, %s64
    %s82 = sphi 0, %s82
    %s84 = sphi 0, %s82
    %s85 = sphi 0, %s84
    %s99 = sphi 0, %s85
    %s103 = sphi 0, %s103
    %s105 = sphi 0, %s103
    %s106 = sphi 0, %s105
    %s120 = sphi 0, %s106
    %s124 = sphi 0, %s124
    %s126 = sphi 0, %s124
    %s127 = sphi 0, %s126
    %s141 = sphi 0, %s127
    %s145 = sphi 0, %s145
    %s147 = sphi 0, %s145
    %s148 = sphi 0, %s147
    %s162 = sphi 0, %s148
    %s166 = sphi 0, %s166
    %s168 = sphi 0, %s166
    %s169 = sphi 0, %s168
    %s183 = sphi 0, %s169
    %s187 = sphi 0, %s187
    %s189 = sphi 0, %s187
    %s190 = sphi 0, %s189
    %s204 = sphi 0, %s190
    %s208 = sphi 0, %s208
    %s210 = sphi 0, %s208
    %s211 = sphi 0, %s210
    %s225 = sphi 0, %s211
    %s229 = sphi 0, %s229
    %s231 = sphi 0, %s229
    %s232 = sphi 0, %s231
    %s246 = sphi 0, %s232
    %s250 = sphi 0, %s250
    %s252 = sphi 0, %s250
    %s253 = sphi 0, %s252
    %s267 = sphi 0, %s253
    %s271 = sphi 0, %s271
    %s273 = sphi 0, %s271
    %s274 = sphi 0, %s273
    %s288 = sphi 0, %s274
    %s292 = sphi 0, %s292
    %s294 = sphi 0, %s292
    %s295 = sphi 0, %s294
    %s309 = sphi 0, %s295
    %s313 = sphi 0, %s313
    %s315 = sphi 0, %s313
    %s316 = sphi 0, %s315
    %s330 = sphi 0, %s316
    %s334 = sphi 0, %s334
    %s336 = sphi 0, %s334
    %s337 = sphi 0, %s336
    %s351 = sphi 0, %s337
    %s355 = sphi 0, %s355
    %s357 = sphi 0, %s355
    %s358 = sphi 0, %s357
    %s372 = sphi 0, %s358
    %s376 = sphi 0, %s376
    %s378 = sphi 0, %s376
    %s379 = sphi 0, %s378
    %s393 = sphi 0, %s379
    %s397 = sphi 0, %s397
    %s399 = sphi 0, %s397
    %s400 = sphi 0, %s399
    %s414 = sphi 0, %s400
    %s418 = sphi 0, %s418
    %s420 = sphi 0, %s418
    %s421 = sphi 0, %s420
    %s435 = sphi 0, %s421
    %s439 = sphi 0, %s439
    %s441 = sphi 0, %s439
    %s442 = sphi 0, %s441
    %s456 = sphi 0, %s442
    %s460 = sphi 0, %s460
    %s462 = sphi 0, %s460
    %s463 = sphi 0, %s462
    %s477 = sphi 0, %s463
    %s483 = sphi 0, %s485
    %s486 = sphi 0, %s483
    %s487 = sphi 0, %s486
    %s503 = sphi 0, %s487
  $region4: #{transformer_block_pallas.4} parent=0 // loop_header_branch
    %30 = sbr.rel (%p28) target = $region8
  $region5: #{transformer_block_pallas.4} parent=0 // loop_body
    %s32 = ssub.s32 %s27, 1
    %s33 = ssub.s32 %s27, 2
    %s34 = sadd.s32 %s27, 1
    %s35 = ssub.s32 %s27, %s34
    %p36 = scmp.eq.s32.totalorder %s35, 0
    %s38 = sadd.s32 %s37, 1
    %s39 = scalar_select %p36, %s37, %s38
    %p42 = pneg %p36
    %p43 = scmp.eq.s32.totalorder %s27, 1
    %p44 = por %p42, %p43
    %p45 = scmp.ne.s32.totalorder %s37, %s40
    %p46 = scmp.eq.s32.totalorder %s27, 0
    %p47 = por %p45, %p46
    %p48 = scmp.ne.s32.totalorder %s37, %s40
    %p49 = scmp.eq.s32.totalorder %s32, 1
    %p50 = por %p48, %p49
    %p51 = scmp.ne.s32.totalorder %s40, %s41
    %p52 = scmp.eq.s32.totalorder %s32, 0
    %p53 = por %p51, %p52
    %p54 = scmp.ne.s32.totalorder %s40, %s41
    %p55 = scmp.eq.s32.totalorder %s33, 1
    %p56 = por %p54, %p55
    %p58 = scmp.ne.s32.totalorder %s41, %s57
    %p59 = scmp.eq.s32.totalorder %s33, 0
    %p60 = por %p58, %p59
    %s62 = sadd.s32 %s61, 1
    %p65 = scmp.eq.s32.totalorder %s27, 1
    %p66 = scmp.ne.s32.totalorder %s61, %s63
    %p67 = scmp.eq.s32.totalorder %s27, 0
    %p68 = por %p66, %p67
    %p69 = scmp.ne.s32.totalorder %s61, %s63
    %p70 = scmp.eq.s32.totalorder %s32, 1
    %p71 = por %p69, %p70
    %p72 = scmp.ne.s32.totalorder %s63, %s64
    %p73 = scmp.eq.s32.totalorder %s32, 0
    %p74 = por %p72, %p73
    %p75 = scmp.ne.s32.totalorder %s63, %s64
    %p76 = scmp.eq.s32.totalorder %s33, 1
    %p77 = por %p75, %p76
    %p79 = scmp.ne.s32.totalorder %s64, %s78
    %p80 = scmp.eq.s32.totalorder %s33, 0
    %p81 = por %p79, %p80
    %s83 = sadd.s32 %s82, 1
    %p86 = scmp.eq.s32.totalorder %s27, 1
    %p87 = scmp.ne.s32.totalorder %s82, %s84
    %p88 = scmp.eq.s32.totalorder %s27, 0
    %p89 = por %p87, %p88
    %p90 = scmp.ne.s32.totalorder %s82, %s84
    %p91 = scmp.eq.s32.totalorder %s32, 1
    %p92 = por %p90, %p91
    %p93 = scmp.ne.s32.totalorder %s84, %s85
    %p94 = scmp.eq.s32.totalorder %s32, 0
    %p95 = por %p93, %p94
    %p96 = scmp.ne.s32.totalorder %s84, %s85
    %p97 = scmp.eq.s32.totalorder %s33, 1
    %p98 = por %p96, %p97
    %p100 = scmp.ne.s32.totalorder %s85, %s99
    %p101 = scmp.eq.s32.totalorder %s33, 0
    %p102 = por %p100, %p101
    %s104 = sadd.s32 %s103, 1
    %p107 = scmp.eq.s32.totalorder %s27, 1
    %p108 = scmp.ne.s32.totalorder %s103, %s105
    %p109 = scmp.eq.s32.totalorder %s27, 0
    %p110 = por %p108, %p109
    %p111 = scmp.ne.s32.totalorder %s103, %s105
    %p112 = scmp.eq.s32.totalorder %s32, 1
    %p113 = por %p111, %p112
    %p114 = scmp.ne.s32.totalorder %s105, %s106
    %p115 = scmp.eq.s32.totalorder %s32, 0
    %p116 = por %p114, %p115
    %p117 = scmp.ne.s32.totalorder %s105, %s106
    %p118 = scmp.eq.s32.totalorder %s33, 1
    %p119 = por %p117, %p118
    %p121 = scmp.ne.s32.totalorder %s106, %s120
    %p122 = scmp.eq.s32.totalorder %s33, 0
    %p123 = por %p121, %p122
    %s125 = sadd.s32 %s124, 1
    %p128 = scmp.eq.s32.totalorder %s27, 1
    %p129 = scmp.ne.s32.totalorder %s124, %s126
    %p130 = scmp.eq.s32.totalorder %s27, 0
    %p131 = por %p129, %p130
    %p132 = scmp.ne.s32.totalorder %s124, %s126
    %p133 = scmp.eq.s32.totalorder %s32, 1
    %p134 = por %p132, %p133
    %p135 = scmp.ne.s32.totalorder %s126, %s127
    %p136 = scmp.eq.s32.totalorder %s32, 0
    %p137 = por %p135, %p136
    %p138 = scmp.ne.s32.totalorder %s126, %s127
    %p139 = scmp.eq.s32.totalorder %s33, 1
    %p140 = por %p138, %p139
    %p142 = scmp.ne.s32.totalorder %s127, %s141
    %p143 = scmp.eq.s32.totalorder %s33, 0
    %p144 = por %p142, %p143
    %s146 = sadd.s32 %s145, 1
    %p149 = scmp.eq.s32.totalorder %s27, 1
    %p150 = scmp.ne.s32.totalorder %s145, %s147
    %p151 = scmp.eq.s32.totalorder %s27, 0
    %p152 = por %p150, %p151
    %p153 = scmp.ne.s32.totalorder %s145, %s147
    %p154 = scmp.eq.s32.totalorder %s32, 1
    %p155 = por %p153, %p154
    %p156 = scmp.ne.s32.totalorder %s147, %s148
    %p157 = scmp.eq.s32.totalorder %s32, 0
    %p158 = por %p156, %p157
    %p159 = scmp.ne.s32.totalorder %s147, %s148
    %p160 = scmp.eq.s32.totalorder %s33, 1
    %p161 = por %p159, %p160
    %p163 = scmp.ne.s32.totalorder %s148, %s162
    %p164 = scmp.eq.s32.totalorder %s33, 0
    %p165 = por %p163, %p164
    %s167 = sadd.s32 %s166, 1
    %p170 = scmp.eq.s32.totalorder %s27, 1
    %p171 = scmp.ne.s32.totalorder %s166, %s168
    %p172 = scmp.eq.s32.totalorder %s27, 0
    %p173 = por %p171, %p172
    %p174 = scmp.ne.s32.totalorder %s166, %s168
    %p175 = scmp.eq.s32.totalorder %s32, 1
    %p176 = por %p174, %p175
    %p177 = scmp.ne.s32.totalorder %s168, %s169
    %p178 = scmp.eq.s32.totalorder %s32, 0
    %p179 = por %p177, %p178
    %p180 = scmp.ne.s32.totalorder %s168, %s169
    %p181 = scmp.eq.s32.totalorder %s33, 1
    %p182 = por %p180, %p181
    %p184 = scmp.ne.s32.totalorder %s169, %s183
    %p185 = scmp.eq.s32.totalorder %s33, 0
    %p186 = por %p184, %p185
    %s188 = sadd.s32 %s187, 1
    %p191 = scmp.eq.s32.totalorder %s27, 1
    %p192 = scmp.ne.s32.totalorder %s187, %s189
    %p193 = scmp.eq.s32.totalorder %s27, 0
    %p194 = por %p192, %p193
    %p195 = scmp.ne.s32.totalorder %s187, %s189
    %p196 = scmp.eq.s32.totalorder %s32, 1
    %p197 = por %p195, %p196
    %p198 = scmp.ne.s32.totalorder %s189, %s190
    %p199 = scmp.eq.s32.totalorder %s32, 0
    %p200 = por %p198, %p199
    %p201 = scmp.ne.s32.totalorder %s189, %s190
    %p202 = scmp.eq.s32.totalorder %s33, 1
    %p203 = por %p201, %p202
    %p205 = scmp.ne.s32.totalorder %s190, %s204
    %p206 = scmp.eq.s32.totalorder %s33, 0
    %p207 = por %p205, %p206
    %s209 = sadd.s32 %s208, 1
    %p212 = scmp.eq.s32.totalorder %s27, 1
    %p213 = scmp.ne.s32.totalorder %s208, %s210
    %p214 = scmp.eq.s32.totalorder %s27, 0
    %p215 = por %p213, %p214
    %p216 = scmp.ne.s32.totalorder %s208, %s210
    %p217 = scmp.eq.s32.totalorder %s32, 1
    %p218 = por %p216, %p217
    %p219 = scmp.ne.s32.totalorder %s210, %s211
    %p220 = scmp.eq.s32.totalorder %s32, 0
    %p221 = por %p219, %p220
    %p222 = scmp.ne.s32.totalorder %s210, %s211
    %p223 = scmp.eq.s32.totalorder %s33, 1
    %p224 = por %p222, %p223
    %p226 = scmp.ne.s32.totalorder %s211, %s225
    %p227 = scmp.eq.s32.totalorder %s33, 0
    %p228 = por %p226, %p227
    %s230 = sadd.s32 %s229, 1
    %p233 = scmp.eq.s32.totalorder %s27, 1
    %p234 = scmp.ne.s32.totalorder %s229, %s231
    %p235 = scmp.eq.s32.totalorder %s27, 0
    %p236 = por %p234, %p235
    %p237 = scmp.ne.s32.totalorder %s229, %s231
    %p238 = scmp.eq.s32.totalorder %s32, 1
    %p239 = por %p237, %p238
    %p240 = scmp.ne.s32.totalorder %s231, %s232
    %p241 = scmp.eq.s32.totalorder %s32, 0
    %p242 = por %p240, %p241
    %p243 = scmp.ne.s32.totalorder %s231, %s232
    %p244 = scmp.eq.s32.totalorder %s33, 1
    %p245 = por %p243, %p244
    %p247 = scmp.ne.s32.totalorder %s232, %s246
    %p248 = scmp.eq.s32.totalorder %s33, 0
    %p249 = por %p247, %p248
    %s251 = sadd.s32 %s250, 1
    %p254 = scmp.eq.s32.totalorder %s27, 1
    %p255 = scmp.ne.s32.totalorder %s250, %s252
    %p256 = scmp.eq.s32.totalorder %s27, 0
    %p257 = por %p255, %p256
    %p258 = scmp.ne.s32.totalorder %s250, %s252
    %p259 = scmp.eq.s32.totalorder %s32, 1
    %p260 = por %p258, %p259
    %p261 = scmp.ne.s32.totalorder %s252, %s253
    %p262 = scmp.eq.s32.totalorder %s32, 0
    %p263 = por %p261, %p262
    %p264 = scmp.ne.s32.totalorder %s252, %s253
    %p265 = scmp.eq.s32.totalorder %s33, 1
    %p266 = por %p264, %p265
    %p268 = scmp.ne.s32.totalorder %s253, %s267
    %p269 = scmp.eq.s32.totalorder %s33, 0
    %p270 = por %p268, %p269
    %s272 = sadd.s32 %s271, 1
    %p275 = scmp.eq.s32.totalorder %s27, 1
    %p276 = scmp.ne.s32.totalorder %s271, %s273
    %p277 = scmp.eq.s32.totalorder %s27, 0
    %p278 = por %p276, %p277
    %p279 = scmp.ne.s32.totalorder %s271, %s273
    %p280 = scmp.eq.s32.totalorder %s32, 1
    %p281 = por %p279, %p280
    %p282 = scmp.ne.s32.totalorder %s273, %s274
    %p283 = scmp.eq.s32.totalorder %s32, 0
    %p284 = por %p282, %p283
    %p285 = scmp.ne.s32.totalorder %s273, %s274
    %p286 = scmp.eq.s32.totalorder %s33, 1
    %p287 = por %p285, %p286
    %p289 = scmp.ne.s32.totalorder %s274, %s288
    %p290 = scmp.eq.s32.totalorder %s33, 0
    %p291 = por %p289, %p290
    %s293 = sadd.s32 %s292, 1
    %p296 = scmp.eq.s32.totalorder %s27, 1
    %p297 = scmp.ne.s32.totalorder %s292, %s294
    %p298 = scmp.eq.s32.totalorder %s27, 0
    %p299 = por %p297, %p298
    %p300 = scmp.ne.s32.totalorder %s292, %s294
    %p301 = scmp.eq.s32.totalorder %s32, 1
    %p302 = por %p300, %p301
    %p303 = scmp.ne.s32.totalorder %s294, %s295
    %p304 = scmp.eq.s32.totalorder %s32, 0
    %p305 = por %p303, %p304
    %p306 = scmp.ne.s32.totalorder %s294, %s295
    %p307 = scmp.eq.s32.totalorder %s33, 1
    %p308 = por %p306, %p307
    %p310 = scmp.ne.s32.totalorder %s295, %s309
    %p311 = scmp.eq.s32.totalorder %s33, 0
    %p312 = por %p310, %p311
    %s314 = sadd.s32 %s313, 1
    %p317 = scmp.eq.s32.totalorder %s27, 1
    %p318 = scmp.ne.s32.totalorder %s313, %s315
    %p319 = scmp.eq.s32.totalorder %s27, 0
    %p320 = por %p318, %p319
    %p321 = scmp.ne.s32.totalorder %s313, %s315
    %p322 = scmp.eq.s32.totalorder %s32, 1
    %p323 = por %p321, %p322
    %p324 = scmp.ne.s32.totalorder %s315, %s316
    %p325 = scmp.eq.s32.totalorder %s32, 0
    %p326 = por %p324, %p325
    %p327 = scmp.ne.s32.totalorder %s315, %s316
    %p328 = scmp.eq.s32.totalorder %s33, 1
    %p329 = por %p327, %p328
    %p331 = scmp.ne.s32.totalorder %s316, %s330
    %p332 = scmp.eq.s32.totalorder %s33, 0
    %p333 = por %p331, %p332
    %s335 = sadd.s32 %s334, 1
    %p338 = scmp.eq.s32.totalorder %s27, 1
    %p339 = scmp.ne.s32.totalorder %s334, %s336
    %p340 = scmp.eq.s32.totalorder %s27, 0
    %p341 = por %p339, %p340
    %p342 = scmp.ne.s32.totalorder %s334, %s336
    %p343 = scmp.eq.s32.totalorder %s32, 1
    %p344 = por %p342, %p343
    %p345 = scmp.ne.s32.totalorder %s336, %s337
    %p346 = scmp.eq.s32.totalorder %s32, 0
    %p347 = por %p345, %p346
    %p348 = scmp.ne.s32.totalorder %s336, %s337
    %p349 = scmp.eq.s32.totalorder %s33, 1
    %p350 = por %p348, %p349
    %p352 = scmp.ne.s32.totalorder %s337, %s351
    %p353 = scmp.eq.s32.totalorder %s33, 0
    %p354 = por %p352, %p353
    %s356 = sadd.s32 %s355, 1
    %p359 = scmp.eq.s32.totalorder %s27, 1
    %p360 = scmp.ne.s32.totalorder %s355, %s357
    %p361 = scmp.eq.s32.totalorder %s27, 0
    %p362 = por %p360, %p361
    %p363 = scmp.ne.s32.totalorder %s355, %s357
    %p364 = scmp.eq.s32.totalorder %s32, 1
    %p365 = por %p363, %p364
    %p366 = scmp.ne.s32.totalorder %s357, %s358
    %p367 = scmp.eq.s32.totalorder %s32, 0
    %p368 = por %p366, %p367
    %p369 = scmp.ne.s32.totalorder %s357, %s358
    %p370 = scmp.eq.s32.totalorder %s33, 1
    %p371 = por %p369, %p370
    %p373 = scmp.ne.s32.totalorder %s358, %s372
    %p374 = scmp.eq.s32.totalorder %s33, 0
    %p375 = por %p373, %p374
    %s377 = sadd.s32 %s376, 1
    %p380 = scmp.eq.s32.totalorder %s27, 1
    %p381 = scmp.ne.s32.totalorder %s376, %s378
    %p382 = scmp.eq.s32.totalorder %s27, 0
    %p383 = por %p381, %p382
    %p384 = scmp.ne.s32.totalorder %s376, %s378
    %p385 = scmp.eq.s32.totalorder %s32, 1
    %p386 = por %p384, %p385
    %p387 = scmp.ne.s32.totalorder %s378, %s379
    %p388 = scmp.eq.s32.totalorder %s32, 0
    %p389 = por %p387, %p388
    %p390 = scmp.ne.s32.totalorder %s378, %s379
    %p391 = scmp.eq.s32.totalorder %s33, 1
    %p392 = por %p390, %p391
    %p394 = scmp.ne.s32.totalorder %s379, %s393
    %p395 = scmp.eq.s32.totalorder %s33, 0
    %p396 = por %p394, %p395
    %s398 = sadd.s32 %s397, 1
    %p401 = scmp.eq.s32.totalorder %s27, 1
    %p402 = scmp.ne.s32.totalorder %s397, %s399
    %p403 = scmp.eq.s32.totalorder %s27, 0
    %p404 = por %p402, %p403
    %p405 = scmp.ne.s32.totalorder %s397, %s399
    %p406 = scmp.eq.s32.totalorder %s32, 1
    %p407 = por %p405, %p406
    %p408 = scmp.ne.s32.totalorder %s399, %s400
    %p409 = scmp.eq.s32.totalorder %s32, 0
    %p410 = por %p408, %p409
    %p411 = scmp.ne.s32.totalorder %s399, %s400
    %p412 = scmp.eq.s32.totalorder %s33, 1
    %p413 = por %p411, %p412
    %p415 = scmp.ne.s32.totalorder %s400, %s414
    %p416 = scmp.eq.s32.totalorder %s33, 0
    %p417 = por %p415, %p416
    %s419 = sadd.s32 %s418, 1
    %p422 = scmp.eq.s32.totalorder %s27, 1
    %p423 = scmp.ne.s32.totalorder %s418, %s420
    %p424 = scmp.eq.s32.totalorder %s27, 0
    %p425 = por %p423, %p424
    %p426 = scmp.ne.s32.totalorder %s418, %s420
    %p427 = scmp.eq.s32.totalorder %s32, 1
    %p428 = por %p426, %p427
    %p429 = scmp.ne.s32.totalorder %s420, %s421
    %p430 = scmp.eq.s32.totalorder %s32, 0
    %p431 = por %p429, %p430
    %p432 = scmp.ne.s32.totalorder %s420, %s421
    %p433 = scmp.eq.s32.totalorder %s33, 1
    %p434 = por %p432, %p433
    %p436 = scmp.ne.s32.totalorder %s421, %s435
    %p437 = scmp.eq.s32.totalorder %s33, 0
    %p438 = por %p436, %p437
    %s440 = sadd.s32 %s439, 1
    %p443 = scmp.eq.s32.totalorder %s27, 1
    %p444 = scmp.ne.s32.totalorder %s439, %s441
    %p445 = scmp.eq.s32.totalorder %s27, 0
    %p446 = por %p444, %p445
    %p447 = scmp.ne.s32.totalorder %s439, %s441
    %p448 = scmp.eq.s32.totalorder %s32, 1
    %p449 = por %p447, %p448
    %p450 = scmp.ne.s32.totalorder %s441, %s442
    %p451 = scmp.eq.s32.totalorder %s32, 0
    %p452 = por %p450, %p451
    %p453 = scmp.ne.s32.totalorder %s441, %s442
    %p454 = scmp.eq.s32.totalorder %s33, 1
    %p455 = por %p453, %p454
    %p457 = scmp.ne.s32.totalorder %s442, %s456
    %p458 = scmp.eq.s32.totalorder %s33, 0
    %p459 = por %p457, %p458
    %s461 = sadd.s32 %s460, 1
    %p464 = scmp.eq.s32.totalorder %s27, 1
    %p465 = scmp.ne.s32.totalorder %s460, %s462
    %p466 = scmp.eq.s32.totalorder %s27, 0
    %p467 = por %p465, %p466
    %p468 = scmp.ne.s32.totalorder %s460, %s462
    %p469 = scmp.eq.s32.totalorder %s32, 1
    %p470 = por %p468, %p469
    %p471 = scmp.ne.s32.totalorder %s462, %s463
    %p472 = scmp.eq.s32.totalorder %s32, 0
    %p473 = por %p471, %p472
    %p474 = scmp.ne.s32.totalorder %s462, %s463
    %p475 = scmp.eq.s32.totalorder %s33, 1
    %p476 = por %p474, %p475
    %p478 = scmp.ne.s32.totalorder %s463, %s477
    %p479 = scmp.eq.s32.totalorder %s33, 0
    %p480 = por %p478, %p479
    %s481 = ssub.s32 %s27, %s34
    %p482 = scmp.eq.s32.totalorder %s481, 0
    %s484 = sadd.s32 %s483, 1
    %s485 = scalar_select %p482, %s483, %s484
    %p488 = pneg %p482
    %p489 = scmp.eq.s32.totalorder %s27, 1
    %p490 = por %p488, %p489
    %p491 = scmp.ne.s32.totalorder %s483, %s486
    %p492 = scmp.eq.s32.totalorder %s27, 0
    %p493 = por %p491, %p492
    %p494 = scmp.ne.s32.totalorder %s483, %s486
    %p495 = scmp.eq.s32.totalorder %s32, 1
    %p496 = por %p494, %p495
    %p497 = scmp.ne.s32.totalorder %s486, %s487
    %p498 = scmp.eq.s32.totalorder %s32, 0
    %p499 = por %p497, %p498
    %p500 = scmp.ne.s32.totalorder %s486, %s487
    %p501 = scmp.eq.s32.totalorder %s33, 1
    %p502 = por %p500, %p501
    %p504 = scmp.ne.s32.totalorder %s487, %s503
    %p505 = scmp.eq.s32.totalorder %s33, 0
    %p506 = por %p504, %p505
    %p507 = scmp.le.s32.totalorder 1, %s27
    %p508 = scmp.lt.s32.totalorder %s27, 3
    %p509 = pnand %p507, %p508
    %p510 = pneg %p509
    // Predicated region
    $region9: #{transformer_block_pallas.4} parent=5 // pred_check
      _
    $region10: #{transformer_block_pallas.4} parent=5 // pred_check_branch
      %512 = sbr.rel (%p509) target = $region12
    $region11: #{transformer_block_pallas.4} parent=5 // pred_region
      %s513 = ssub.s32 %s27, 1
      // Predicated region
      $region13: #{transformer_block_pallas.4} parent=11 // pred_check
        %p514 = pneg %p74
      $region14: #{transformer_block_pallas.4} parent=11 // pred_check_branch
        %516 = sbr.rel (%p514) target = $region16
      $region15: #{transformer_block_pallas.4} parent=11 // pred_region
        _
      $region16: #{transformer_block_pallas.4} parent=11 // pred_fallthru
        _
      // Predicated region
      $region17: #{transformer_block_pallas.4} parent=11 // pred_check
        %p517 = pneg %p95
      $region18: #{transformer_block_pallas.4} parent=11 // pred_check_branch
        %519 = sbr.rel (%p517) target = $region20
      $region19: #{transformer_block_pallas.4} parent=11 // pred_region
        _
      $region20: #{transformer_block_pallas.4} parent=11 // pred_fallthru
        _
      // Predicated region
      $region21: #{transformer_block_pallas.4} parent=11 // pred_check
        %p520 = pneg %p116
      $region22: #{transformer_block_pallas.4} parent=11 // pred_check_branch
        %522 = sbr.rel (%p520) target = $region24
      $region23: #{transformer_block_pallas.4} parent=11 // pred_region
        _
      $region24: #{transformer_block_pallas.4} parent=11 // pred_fallthru
        _
      // Predicated region
      $region25: #{transformer_block_pallas.4} parent=11 // pred_check
        %p523 = pneg %p137
      $region26: #{transformer_block_pallas.4} parent=11 // pred_check_branch
        %525 = sbr.rel (%p523) target = $region28
      $region27: #{transformer_block_pallas.4} parent=11 // pred_region
        _
      $region28: #{transformer_block_pallas.4} parent=11 // pred_fallthru
        _
      // Predicated region
      $region29: #{transformer_block_pallas.4} parent=11 // pred_check
        %p526 = pneg %p158
      $region30: #{transformer_block_pallas.4} parent=11 // pred_check_branch
        %528 = sbr.rel (%p526) target = $region32
      $region31: #{transformer_block_pallas.4} parent=11 // pred_region
        _
      $region32: #{transformer_block_pallas.4} parent=11 // pred_fallthru
        _
      // Predicated region
      $region33: #{transformer_block_pallas.4} parent=11 // pred_check
        %p529 = pneg %p179
      $region34: #{transformer_block_pallas.4} parent=11 // pred_check_branch
        %531 = sbr.rel (%p529) target = $region36
      $region35: #{transformer_block_pallas.4} parent=11 // pred_region
        _
      $region36: #{transformer_block_pallas.4} parent=11 // pred_fallthru
        _
      // Predicated region
      $region37: #{transformer_block_pallas.4} parent=11 // pred_check
        %p532 = pneg %p200
      $region38: #{transformer_block_pallas.4} parent=11 // pred_check_branch
        %534 = sbr.rel (%p532) target = $region40
      $region39: #{transformer_block_pallas.4} parent=11 // pred_region
        _
      $region40: #{transformer_block_pallas.4} parent=11 // pred_fallthru
        _
      // Predicated region
      $region41: #{transformer_block_pallas.4} parent=11 // pred_check
        %p535 = pneg %p221
      $region42: #{transformer_block_pallas.4} parent=11 // pred_check_branch
        %537 = sbr.rel (%p535) target = $region44
      $region43: #{transformer_block_pallas.4} parent=11 // pred_region
        _
      $region44: #{transformer_block_pallas.4} parent=11 // pred_fallthru
        _
      // Predicated region
      $region45: #{transformer_block_pallas.4} parent=11 // pred_check
        %p538 = pneg %p242
      $region46: #{transformer_block_pallas.4} parent=11 // pred_check_branch
        %540 = sbr.rel (%p538) target = $region48
      $region47: #{transformer_block_pallas.4} parent=11 // pred_region
        _
      $region48: #{transformer_block_pallas.4} parent=11 // pred_fallthru
        _
      // Predicated region
      $region49: #{transformer_block_pallas.4} parent=11 // pred_check
        %p541 = pneg %p263
      $region50: #{transformer_block_pallas.4} parent=11 // pred_check_branch
        %543 = sbr.rel (%p541) target = $region52
      $region51: #{transformer_block_pallas.4} parent=11 // pred_region
        _
      $region52: #{transformer_block_pallas.4} parent=11 // pred_fallthru
        _
      // Predicated region
      $region53: #{transformer_block_pallas.4} parent=11 // pred_check
        %p544 = pneg %p284
      $region54: #{transformer_block_pallas.4} parent=11 // pred_check_branch
        %546 = sbr.rel (%p544) target = $region56
      $region55: #{transformer_block_pallas.4} parent=11 // pred_region
        _
      $region56: #{transformer_block_pallas.4} parent=11 // pred_fallthru
        _
      // Predicated region
      $region57: #{transformer_block_pallas.4} parent=11 // pred_check
        %p547 = pneg %p305
      $region58: #{transformer_block_pallas.4} parent=11 // pred_check_branch
        %549 = sbr.rel (%p547) target = $region60
      $region59: #{transformer_block_pallas.4} parent=11 // pred_region
        _
      $region60: #{transformer_block_pallas.4} parent=11 // pred_fallthru
        _
      // Predicated region
      $region61: #{transformer_block_pallas.4} parent=11 // pred_check
        %p550 = pneg %p326
      $region62: #{transformer_block_pallas.4} parent=11 // pred_check_branch
        %552 = sbr.rel (%p550) target = $region64
      $region63: #{transformer_block_pallas.4} parent=11 // pred_region
        _
      $region64: #{transformer_block_pallas.4} parent=11 // pred_fallthru
        _
      // Predicated region
      $region65: #{transformer_block_pallas.4} parent=11 // pred_check
        %p553 = pneg %p347
      $region66: #{transformer_block_pallas.4} parent=11 // pred_check_branch
        %555 = sbr.rel (%p553) target = $region68
      $region67: #{transformer_block_pallas.4} parent=11 // pred_region
        _
      $region68: #{transformer_block_pallas.4} parent=11 // pred_fallthru
        _
      // Predicated region
      $region69: #{transformer_block_pallas.4} parent=11 // pred_check
        %p556 = pneg %p368
      $region70: #{transformer_block_pallas.4} parent=11 // pred_check_branch
        %558 = sbr.rel (%p556) target = $region72
      $region71: #{transformer_block_pallas.4} parent=11 // pred_region
        _
      $region72: #{transformer_block_pallas.4} parent=11 // pred_fallthru
        _
      // Predicated region
      $region73: #{transformer_block_pallas.4} parent=11 // pred_check
        %p559 = pneg %p389
      $region74: #{transformer_block_pallas.4} parent=11 // pred_check_branch
        %561 = sbr.rel (%p559) target = $region76
      $region75: #{transformer_block_pallas.4} parent=11 // pred_region
        _
      $region76: #{transformer_block_pallas.4} parent=11 // pred_fallthru
        _
      // Predicated region
      $region77: #{transformer_block_pallas.4} parent=11 // pred_check
        %p562 = pneg %p410
      $region78: #{transformer_block_pallas.4} parent=11 // pred_check_branch
        %564 = sbr.rel (%p562) target = $region80
      $region79: #{transformer_block_pallas.4} parent=11 // pred_region
        _
      $region80: #{transformer_block_pallas.4} parent=11 // pred_fallthru
        _
      // Predicated region
      $region81: #{transformer_block_pallas.4} parent=11 // pred_check
        %p565 = pneg %p431
      $region82: #{transformer_block_pallas.4} parent=11 // pred_check_branch
        %567 = sbr.rel (%p565) target = $region84
      $region83: #{transformer_block_pallas.4} parent=11 // pred_region
        _
      $region84: #{transformer_block_pallas.4} parent=11 // pred_fallthru
        _
      // Predicated region
      $region85: #{transformer_block_pallas.4} parent=11 // pred_check
        %p568 = pneg %p452
      $region86: #{transformer_block_pallas.4} parent=11 // pred_check_branch
        %570 = sbr.rel (%p568) target = $region88
      $region87: #{transformer_block_pallas.4} parent=11 // pred_region
        _
      $region88: #{transformer_block_pallas.4} parent=11 // pred_fallthru
        _
      // Predicated region
      $region89: #{transformer_block_pallas.4} parent=11 // pred_check
        %p571 = pneg %p473
      $region90: #{transformer_block_pallas.4} parent=11 // pred_check_branch
        %573 = sbr.rel (%p571) target = $region92
      $region91: #{transformer_block_pallas.4} parent=11 // pred_region
        _
      $region92: #{transformer_block_pallas.4} parent=11 // pred_fallthru
        _
    $region12: #{transformer_block_pallas.4} parent=5 // pred_fallthru
      _
    %p574 = scmp.lt.s32.totalorder %s27, 2
    // Predicated region
    $region93: #{transformer_block_pallas.4} parent=5 // pred_check
      %p575 = pneg %p574
    $region94: #{transformer_block_pallas.4} parent=5 // pred_check_branch
      %577 = sbr.rel (%p575) target = $region96
    $region95: #{transformer_block_pallas.4} parent=5 // pred_region
      // Predicated region
      $region97: #{transformer_block_pallas.4} parent=95 // pred_check
        %p578 = pneg %p47
      $region98: #{transformer_block_pallas.4} parent=95 // pred_check_branch
        %580 = sbr.rel (%p578) target = $region100
      $region99: #{transformer_block_pallas.4} parent=95 // pred_region
        %p581 = scmp.lt.s32.totalorder %s27, 1
        %s582 = scalar_select %p581, %s27, 1
        %s583 = smul.addr %s582, 8
        %s584 = scalar_lea.vmem %s0, %s583
      $region100: #{transformer_block_pallas.4} parent=95 // pred_fallthru
        _
    $region96: #{transformer_block_pallas.4} parent=5 // pred_fallthru
      _
    %p585 = scmp.le.s32.totalorder 1, %s27
    %p586 = scmp.lt.s32.totalorder %s27, 3
    %p587 = pnand %p585, %p586
    %p588 = pneg %p587
    // Predicated region
    $region101: #{transformer_block_pallas.4} parent=5 // pred_check
      _
    $region102: #{transformer_block_pallas.4} parent=5 // pred_check_branch
      %590 = sbr.rel (%p587) target = $region104
    $region103: #{transformer_block_pallas.4} parent=5 // pred_region
      %s591 = ssub.s32 %s27, 1
      %p592 = scmp.lt.s32.totalorder %s32, 1
      %s593 = scalar_select %p592, %s32, 1
      %s594 = smul.addr %s593, 8
      %s595 = scalar_lea.vmem %s0, %s594
      %p596 = pneg %p53
      %p597 = pneg %p50
      %p598 = pneg %p74
      %p599 = pneg %p71
      %p600 = pneg %p95
      %p601 = pneg %p92
      %p602 = pneg %p116
      %p603 = pneg %p113
      %p604 = pneg %p137
      %p605 = pneg %p134
      %p606 = pneg %p158
      %p607 = pneg %p155
      %p608 = pneg %p179
      %p609 = pneg %p176
      %p610 = pneg %p200
      %p611 = pneg %p197
      %p612 = pneg %p221
      %p613 = pneg %p218
      %p614 = pneg %p242
      %p615 = pneg %p239
      %p616 = pneg %p263
      %p617 = pneg %p260
      %p618 = pneg %p284
      %p619 = pneg %p281
      %p620 = pneg %p305
      %p621 = pneg %p302
      %p622 = pneg %p326
      %p623 = pneg %p323
      %p624 = pneg %p347
      %p625 = pneg %p344
      %p626 = pneg %p368
      %p627 = pneg %p365
      %p628 = pneg %p389
      %p629 = pneg %p386
      %p630 = pneg %p410
      %p631 = pneg %p407
      %p632 = pneg %p431
      %p633 = pneg %p428
      %p634 = pneg %p452
      %p635 = pneg %p449
      %p636 = pneg %p473
      %p637 = pneg %p470
      %p638 = pneg %p499
      %p639 = pneg %p496
      %p640 = scmp.lt.s32.totalorder %s32, 1
      %s641 = scalar_select %p640, %s32, 1
      %s642 = smul.addr %s641, 8
      %s643 = scalar_lea.vmem %s21, %s642
      %p644 = scmp.lt.s32.totalorder %s32, 1
      %s645 = scalar_select %p644, %s32, 1
      %s646 = smul.addr %s645, 8
      %s647 = scalar_lea.vmem %s0, %s646
      %p648 = scmp.lt.s32.totalorder %s32, 1
      %s649 = scalar_select %p648, %s32, 1
      %s650 = smul.addr %s649, 8
      %s651 = scalar_lea.vmem %s21, %s650
      %v652 = vld [vmem:[%s647] sm:$0xff]
      %v653 = vld [vmem:[%s1] sm:$0x1]
      %v654 = vld [vmem:[%s2] sm:$0x1]
      %vm655 = vcmask 261120
      %v656 = vsel %vm655, %v652, 0.0
      %657 = vadd.xlane.f32.xlu0 %v656
      %v658 = vpop.xlane.xlu0 %657
      %v659 = vrcp.pop 32.0
      %v660 = vmul.f32 %v658, %v659
      %v661 = vsub.f32 %v652, %v660
      %v662 = vmul.f32 %v661, %v661
      %v663 = vsel %vm655, %v662, 0.0
      %664 = vadd.xlane.f32.xlu0 %v663
      %v665 = vpop.xlane.xlu0 %664
      %v666 = vmul.f32 %v665, %v659
      %v667 = vadd.f32 %v666, 1e-05
      %v668 = vrsqrt.pop %v667
      %v669 = vmul.f32 %v661, %v668
      %v671 = vlaneseq
      %v672 = vshrl.u32 %v671, 7
      %v673 = vsub.s32 0, %v672
      %v674 = vrot.slane %v653, %v673
      %v676 = vmul.f32 %v669, %v674
      %v678 = vlaneseq
      %v679 = vshrl.u32 %v678, 7
      %v680 = vsub.s32 0, %v679
      %v681 = vrot.slane %v654, %v680
      %v683 = vadd.f32 %v676, %v681
      %v684 = vld [vmem:[%s3] sm:$0xff]
      %v685 = vld [vmem:[%s3 + $0x8] sm:$0xff]
      %v686 = vld [vmem:[%s3 + $0x10] sm:$0xff]
      %v687 = vld [vmem:[%s3 + $0x18] sm:$0xff]
      %v689 = vsel %vm655, %v683, 0
      %691 = vmatprep.subr.mxu0 0.0
      %692 = vmatpush1.msra.mxu0 %v684
      %693 = vmatprep.subr.mxu0 0.0
      %694 = vmatpush1.msra.mxu0 %v685
      %695 = vmatprep.subr.mxu0 0.0
      %696 = vmatpush1.msra.mxu0 %v686
      %697 = vmatprep.subr.mxu0 0.0
      %698 = vmatpush1.msra.mxu0 %v687
      %699 = vmatprep.subr.mxu0 0.0
      %700 = vmatpush1.msra.mxu0 0.0
      %701 = vmatprep.subr.mxu0 0.0
      %702 = vmatpush1.msra.mxu0 0.0
      %703 = vmatprep.subr.mxu0 0.0
      %704 = vmatpush1.msra.mxu0 0.0
      %705 = vmatprep.subr.mxu0 0.0
      %706 = vmatpush1.msra.mxu0 0.0
      %707 = vmatprep.subr.mxu0 0.0
      %708 = vmatpush1.msra.mxu0 0.0
      %709 = vmatprep.subr.mxu0 0.0
      %710 = vmatpush1.msra.mxu0 0.0
      %711 = vmatprep.subr.mxu0 0.0
      %712 = vmatpush1.msra.mxu0 0.0
      %713 = vmatprep.subr.mxu0 0.0
      %714 = vmatpush1.msra.mxu0 0.0
      %715 = vmatprep.subr.mxu0 0.0
      %716 = vmatpush1.msra.mxu0 0.0
      %717 = vmatprep.subr.mxu0 0.0
      %718 = vmatpush1.msra.mxu0 0.0
      %719 = vmatprep.subr.mxu0 0.0
      %720 = vmatpush1.msra.mxu0 0.0
      %721 = vmatprep.subr.mxu0 0.0
      %722 = vmatpush1.msra.mxu0 0.0
      %723 = vmatprep.subr.mxu0 0.0
      %724 = vmatpush1.msra.mxu0 0.0
      %725 = vmatprep.subr.mxu0 0.0
      %726 = vmatpush1.msra.mxu0 0.0
      %727 = vmatprep.subr.mxu0 0.0
      %728 = vmatpush1.msra.mxu0 0.0
      %729 = vmatprep.subr.mxu0 0.0
      %730 = vmatpush1.msra.mxu0 0.0
      %731 = vmatprep.subr.mxu0 0.0
      %732 = vmatpush1.msra.mxu0 0.0
      %733 = vmatprep.subr.mxu0 0.0
      %734 = vmatpush1.msra.mxu0 0.0
      %735 = vmatprep.subr.mxu0 0.0
      %736 = vmatpush1.msra.mxu0 0.0
      %737 = vmatprep.subr.mxu0 0.0
      %738 = vmatpush1.msra.mxu0 0.0
      %739 = vmatprep.subr.mxu0 0.0
      %740 = vmatpush1.msra.mxu0 0.0
      %741 = vmatprep.subr.mxu0 0.0
      %742 = vmatpush1.msra.mxu0 0.0
      %743 = vmatprep.subr.mxu0 0.0
      %744 = vmatpush1.msra.mxu0 0.0
      %745 = vmatprep.subr.mxu0 0.0
      %746 = vmatpush1.msra.mxu0 0.0
      %747 = vmatprep.subr.mxu0 0.0
      %748 = vmatpush1.msra.mxu0 0.0
      %749 = vmatprep.subr.mxu0 0.0
      %750 = vmatpush1.msra.mxu0 0.0
      %751 = vmatprep.subr.mxu0 0.0
      %752 = vmatpush1.msra.mxu0 0.0
      %753 = vmatprep.subr.mxu0 0.0
      %754 = vmatpush1.msra.mxu0 0.0
      %755 = vmatprep.mubr.f32.mxu0 0.0
      %756 = vmatmul.mubr.f32.gmra.mrb[0].mxu0 %v689
      %v757 = vpop.f32.mrb[0].mxu0
      %v758 = vadd.f32 0.0, %v757
      %v759 = vpop.f32.mrb[0].mxu0
      %760 = vdwg.mxu0
      %v761 = vld [vmem:[%s6] sm:$0x1]
      %v762 = vld [vmem:[%s7] sm:$0x1]
      %v763 = vsel %vm655, %v758, 0.0
      %764 = vadd.xlane.f32.xlu0 %v763
      %v765 = vpop.xlane.xlu0 %764
      %v766 = vmul.f32 %v765, %v659
      %v767 = vsub.f32 %v758, %v766
      %v768 = vmul.f32 %v767, %v767
      %v769 = vsel %vm655, %v768, 0.0
      %770 = vadd.xlane.f32.xlu0 %v769
      %v771 = vpop.xlane.xlu0 %770
      %v772 = vmul.f32 %v771, %v659
      %v773 = vadd.f32 %v772, 1e-05
      %v774 = vrsqrt.pop %v773
      %v775 = vmul.f32 %v767, %v774
      %v777 = vlaneseq
      %v778 = vshrl.u32 %v777, 7
      %v779 = vsub.s32 0, %v778
      %v780 = vrot.slane %v761, %v779
      %v782 = vmul.f32 %v775, %v780
      %v784 = vlaneseq
      %v785 = vshrl.u32 %v784, 7
      %v786 = vsub.s32 0, %v785
      %v787 = vrot.slane %v762, %v786
      %v789 = vadd.f32 %v782, %v787
      %v790 = vld [vmem:[%s4] sm:$0xff]
      %v791 = vld [vmem:[%s4 + $0x8] sm:$0xff]
      %v792 = vld [vmem:[%s4 + $0x10] sm:$0xff]
      %v793 = vld [vmem:[%s4 + $0x18] sm:$0xff]
      %794 = vmatprep.subr.mxu0 0.0
      %795 = vmatpush1.msra.mxu0 %v790
      %796 = vmatprep.subr.mxu0 0.0
      %797 = vmatpush1.msra.mxu0 %v791
      %798 = vmatprep.subr.mxu0 0.0
      %799 = vmatpush1.msra.mxu0 %v792
      %800 = vmatprep.subr.mxu0 0.0
      %801 = vmatpush1.msra.mxu0 %v793
      %802 = vmatprep.subr.mxu0 0.0
      %803 = vmatpush1.msra.mxu0 0.0
      %804 = vmatprep.subr.mxu0 0.0
      %805 = vmatpush1.msra.mxu0 0.0
      %806 = vmatprep.subr.mxu0 0.0
      %807 = vmatpush1.msra.mxu0 0.0
      %808 = vmatprep.subr.mxu0 0.0
      %809 = vmatpush1.msra.mxu0 0.0
      %810 = vmatprep.subr.mxu0 0.0
      %811 = vmatpush1.msra.mxu0 0.0
      %812 = vmatprep.subr.mxu0 0.0
      %813 = vmatpush1.msra.mxu0 0.0
      %814 = vmatprep.subr.mxu0 0.0
      %815 = vmatpush1.msra.mxu0 0.0
      %816 = vmatprep.subr.mxu0 0.0
      %817 = vmatpush1.msra.mxu0 0.0
      %818 = vmatprep.subr.mxu0 0.0
      %819 = vmatpush1.msra.mxu0 0.0
      %820 = vmatprep.subr.mxu0 0.0
      %821 = vmatpush1.msra.mxu0 0.0
      %822 = vmatprep.subr.mxu0 0.0
      %823 = vmatpush1.msra.mxu0 0.0
      %824 = vmatprep.subr.mxu0 0.0
      %825 = vmatpush1.msra.mxu0 0.0
      %826 = vmatprep.subr.mxu0 0.0
      %827 = vmatpush1.msra.mxu0 0.0
      %828 = vmatprep.subr.mxu0 0.0
      %829 = vmatpush1.msra.mxu0 0.0
      %830 = vmatprep.subr.mxu0 0.0
      %831 = vmatpush1.msra.mxu0 0.0
      %832 = vmatprep.subr.mxu0 0.0
      %833 = vmatpush1.msra.mxu0 0.0
      %834 = vmatprep.subr.mxu0 0.0
      %835 = vmatpush1.msra.mxu0 0.0
      %836 = vmatprep.subr.mxu0 0.0
      %837 = vmatpush1.msra.mxu0 0.0
      %838 = vmatprep.subr.mxu0 0.0
      %839 = vmatpush1.msra.mxu0 0.0
      %840 = vmatprep.subr.mxu0 0.0
      %841 = vmatpush1.msra.mxu0 0.0
      %842 = vmatprep.subr.mxu0 0.0
      %843 = vmatpush1.msra.mxu0 0.0
      %844 = vmatprep.subr.mxu0 0.0
      %845 = vmatpush1.msra.mxu0 0.0
      %846 = vmatprep.subr.mxu0 0.0
      %847 = vmatpush1.msra.mxu0 0.0
      %848 = vmatprep.subr.mxu0 0.0
      %849 = vmatpush1.msra.mxu0 0.0
      %850 = vmatprep.subr.mxu0 0.0
      %851 = vmatpush1.msra.mxu0 0.0
      %852 = vmatprep.subr.mxu0 0.0
      %853 = vmatpush1.msra.mxu0 0.0
      %854 = vmatprep.subr.mxu0 0.0
      %855 = vmatpush1.msra.mxu0 0.0
      %856 = vmatprep.subr.mxu0 0.0
      %857 = vmatpush1.msra.mxu0 0.0
      %858 = vmatprep.mubr.f32.mxu0 0.0
      %859 = vmatmul.mubr.f32.gmra.mrb[0].mxu0 %v689
      %v860 = vpop.f32.mrb[0].mxu0
      %v861 = vadd.f32 0.0, %v860
      %v862 = vpop.f32.mrb[0].mxu0
      %863 = vdwg.mxu0
      %v864 = vld [vmem:[%s8] sm:$0x1]
      %v865 = vld [vmem:[%s9] sm:$0x1]
      %v866 = vsel %vm655, %v861, 0.0
      %867 = vadd.xlane.f32.xlu0 %v866
      %v868 = vpop.xlane.xlu0 %867
      %v869 = vmul.f32 %v868, %v659
      %v870 = vsub.f32 %v861, %v869
      %v871 = vmul.f32 %v870, %v870
      %v872 = vsel %vm655, %v871, 0.0
      %873 = vadd.xlane.f32.xlu0 %v872
      %v874 = vpop.xlane.xlu0 %873
      %v875 = vmul.f32 %v874, %v659
      %v876 = vadd.f32 %v875, 1e-05
      %v877 = vrsqrt.pop %v876
      %v878 = vmul.f32 %v870, %v877
      %v880 = vlaneseq
      %v881 = vshrl.u32 %v880, 7
      %v882 = vsub.s32 0, %v881
      %v883 = vrot.slane %v864, %v882
      %v885 = vmul.f32 %v878, %v883
      %v887 = vlaneseq
      %v888 = vshrl.u32 %v887, 7
      %v889 = vsub.s32 0, %v888
      %v890 = vrot.slane %v865, %v889
      %v892 = vadd.f32 %v885, %v890
      %v893 = vld [vmem:[%s5] sm:$0xff]
      %v894 = vld [vmem:[%s5 + $0x8] sm:$0xff]
      %v895 = vld [vmem:[%s5 + $0x10] sm:$0xff]
      %v896 = vld [vmem:[%s5 + $0x18] sm:$0xff]
      %897 = vmatprep.subr.mxu0 0.0
      %898 = vmatpush1.msra.mxu0 %v893
      %899 = vmatprep.subr.mxu0 0.0
      %900 = vmatpush1.msra.mxu0 %v894
      %901 = vmatprep.subr.mxu0 0.0
      %902 = vmatpush1.msra.mxu0 %v895
      %903 = vmatprep.subr.mxu0 0.0
      %904 = vmatpush1.msra.mxu0 %v896
      %905 = vmatprep.subr.mxu0 0.0
      %906 = vmatpush1.msra.mxu0 0.0
      %907 = vmatprep.subr.mxu0 0.0
      %908 = vmatpush1.msra.mxu0 0.0
      %909 = vmatprep.subr.mxu0 0.0
      %910 = vmatpush1.msra.mxu0 0.0
      %911 = vmatprep.subr.mxu0 0.0
      %912 = vmatpush1.msra.mxu0 0.0
      %913 = vmatprep.subr.mxu0 0.0
      %914 = vmatpush1.msra.mxu0 0.0
      %915 = vmatprep.subr.mxu0 0.0
      %916 = vmatpush1.msra.mxu0 0.0
      %917 = vmatprep.subr.mxu0 0.0
      %918 = vmatpush1.msra.mxu0 0.0
      %919 = vmatprep.subr.mxu0 0.0
      %920 = vmatpush1.msra.mxu0 0.0
      %921 = vmatprep.subr.mxu0 0.0
      %922 = vmatpush1.msra.mxu0 0.0
      %923 = vmatprep.subr.mxu0 0.0
      %924 = vmatpush1.msra.mxu0 0.0
      %925 = vmatprep.subr.mxu0 0.0
      %926 = vmatpush1.msra.mxu0 0.0
      %927 = vmatprep.subr.mxu0 0.0
      %928 = vmatpush1.msra.mxu0 0.0
      %929 = vmatprep.subr.mxu0 0.0
      %930 = vmatpush1.msra.mxu0 0.0
      %931 = vmatprep.subr.mxu0 0.0
      %932 = vmatpush1.msra.mxu0 0.0
      %933 = vmatprep.subr.mxu0 0.0
      %934 = vmatpush1.msra.mxu0 0.0
      %935 = vmatprep.subr.mxu0 0.0
      %936 = vmatpush1.msra.mxu0 0.0
      %937 = vmatprep.subr.mxu0 0.0
      %938 = vmatpush1.msra.mxu0 0.0
      %939 = vmatprep.subr.mxu0 0.0
      %940 = vmatpush1.msra.mxu0 0.0
      %941 = vmatprep.subr.mxu0 0.0
      %942 = vmatpush1.msra.mxu0 0.0
      %943 = vmatprep.subr.mxu0 0.0
      %944 = vmatpush1.msra.mxu0 0.0
      %945 = vmatprep.subr.mxu0 0.0
      %946 = vmatpush1.msra.mxu0 0.0
      %947 = vmatprep.subr.mxu0 0.0
      %948 = vmatpush1.msra.mxu0 0.0
      %949 = vmatprep.subr.mxu0 0.0
      %950 = vmatpush1.msra.mxu0 0.0
      %951 = vmatprep.subr.mxu0 0.0
      %952 = vmatpush1.msra.mxu0 0.0
      %953 = vmatprep.subr.mxu0 0.0
      %954 = vmatpush1.msra.mxu0 0.0
      %955 = vmatprep.subr.mxu0 0.0
      %956 = vmatpush1.msra.mxu0 0.0
      %957 = vmatprep.subr.mxu0 0.0
      %958 = vmatpush1.msra.mxu0 0.0
      %959 = vmatprep.subr.mxu0 0.0
      %960 = vmatpush1.msra.mxu0 0.0
      %961 = vmatprep.mubr.f32.mxu0 0.0
      %962 = vmatmul.mubr.f32.gmra.mrb[0].mxu0 %v689
      %v963 = vpop.f32.mrb[0].mxu0
      %v964 = vadd.f32 0.0, %v963
      %v965 = vpop.f32.mrb[0].mxu0
      %966 = vdwg.mxu0
      %v967 = vld [vmem:[%s10] sm:$0x1]
      %v968 = vld [vmem:[%s11] sm:$0x1]
      %v969 = vsel %vm655, %v964, 0.0
      %970 = vadd.xlane.f32.xlu0 %v969
      %v971 = vpop.xlane.xlu0 %970
      %v972 = vmul.f32 %v971, %v659
      %v973 = vsub.f32 %v964, %v972
      %v974 = vmul.f32 %v973, %v973
      %v975 = vsel %vm655, %v974, 0.0
      %976 = vadd.xlane.f32.xlu0 %v975
      %v977 = vpop.xlane.xlu0 %976
      %v978 = vmul.f32 %v977, %v659
      %v979 = vadd.f32 %v978, 1e-05
      %v980 = vrsqrt.pop %v979
      %v981 = vmul.f32 %v973, %v980
      %v983 = vlaneseq
      %v984 = vshrl.u32 %v983, 7
      %v985 = vsub.s32 0, %v984
      %v986 = vrot.slane %v967, %v985
      %v988 = vmul.f32 %v981, %v986
      %v990 = vlaneseq
      %v991 = vshrl.u32 %v990, 7
      %v992 = vsub.s32 0, %v991
      %v993 = vrot.slane %v968, %v992
      %v995 = vadd.f32 %v988, %v993
      %v996 = vld [vmem:[%s12] sm:$0xff]
      %v997 = vld [vmem:[%s12 + $0x8] sm:$0xff]
      %v998 = vld [vmem:[%s12 + $0x10] sm:$0xff]
      %v999 = vld [vmem:[%s12 + $0x18] sm:$0xff]
      %vm1000 = vcmask 130048
      %v1002 = vsel %vm1000, %v789, 0
      %v1005 = vsel %vm1000, %v892, 0
      %1007 = vmatprep.subr.mxu0 0.0
      %1008 = vmatpush1.xpose.msra.mxu0 %v1005
      %1009 = vmatprep.subr.mxu0 0.0
      %1010 = vmatpush1.xpose.msra.mxu0 0.0
      %1011 = vmatprep.subr.mxu0 0.0
      %1012 = vmatpush1.xpose.msra.mxu0 0.0
      %1013 = vmatprep.subr.mxu0 0.0
      %1014 = vmatpush1.xpose.msra.mxu0 0.0
      %1015 = vmatprep.subr.mxu0 0.0
      %1016 = vmatpush1.xpose.msra.mxu0 0.0
      %1017 = vmatprep.subr.mxu0 0.0
      %1018 = vmatpush1.xpose.msra.mxu0 0.0
      %1019 = vmatprep.subr.mxu0 0.0
      %1020 = vmatpush1.xpose.msra.mxu0 0.0
      %1021 = vmatprep.subr.mxu0 0.0
      %1022 = vmatpush1.xpose.msra.mxu0 0.0
      %1023 = vmatprep.subr.mxu0 0.0
      %1024 = vmatpush1.xpose.msra.mxu0 0.0
      %1025 = vmatprep.subr.mxu0 0.0
      %1026 = vmatpush1.xpose.msra.mxu0 0.0
      %1027 = vmatprep.subr.mxu0 0.0
      %1028 = vmatpush1.xpose.msra.mxu0 0.0
      %1029 = vmatprep.subr.mxu0 0.0
      %1030 = vmatpush1.xpose.msra.mxu0 0.0
      %1031 = vmatprep.subr.mxu0 0.0
      %1032 = vmatpush1.xpose.msra.mxu0 0.0
      %1033 = vmatprep.subr.mxu0 0.0
      %1034 = vmatpush1.xpose.msra.mxu0 0.0
      %1035 = vmatprep.subr.mxu0 0.0
      %1036 = vmatpush1.xpose.msra.mxu0 0.0
      %1037 = vmatprep.subr.mxu0 0.0
      %1038 = vmatpush1.xpose.msra.mxu0 0.0
      %1039 = vmatprep.subr.mxu0 0.0
      %1040 = vmatpush1.xpose.msra.mxu0 0.0
      %1041 = vmatprep.subr.mxu0 0.0
      %1042 = vmatpush1.xpose.msra.mxu0 0.0
      %1043 = vmatprep.subr.mxu0 0.0
      %1044 = vmatpush1.xpose.msra.mxu0 0.0
      %1045 = vmatprep.subr.mxu0 0.0
      %1046 = vmatpush1.xpose.msra.mxu0 0.0
      %1047 = vmatprep.subr.mxu0 0.0
      %1048 = vmatpush1.xpose.msra.mxu0 0.0
      %1049 = vmatprep.subr.mxu0 0.0
      %1050 = vmatpush1.xpose.msra.mxu0 0.0
      %1051 = vmatprep.subr.mxu0 0.0
      %1052 = vmatpush1.xpose.msra.mxu0 0.0
      %1053 = vmatprep.subr.mxu0 0.0
      %1054 = vmatpush1.xpose.msra.mxu0 0.0
      %1055 = vmatprep.subr.mxu0 0.0
      %1056 = vmatpush1.xpose.msra.mxu0 0.0
      %1057 = vmatprep.subr.mxu0 0.0
      %1058 = vmatpush1.xpose.msra.mxu0 0.0
      %1059 = vmatprep.subr.mxu0 0.0
      %1060 = vmatpush1.xpose.msra.mxu0 0.0
      %1061 = vmatprep.subr.mxu0 0.0
      %1062 = vmatpush1.xpose.msra.mxu0 0.0
      %1063 = vmatprep.subr.mxu0 0.0
      %1064 = vmatpush1.xpose.msra.mxu0 0.0
      %1065 = vmatprep.subr.mxu0 0.0
      %1066 = vmatpush1.xpose.msra.mxu0 0.0
      %1067 = vmatprep.subr.mxu0 0.0
      %1068 = vmatpush1.xpose.msra.mxu0 0.0
      %1069 = vmatprep.subr.mxu0 0.0
      %1070 = vmatpush1.xpose.msra.mxu0 0.0
      %1071 = vmatprep.mubr.f32.mxu0 0.0
      %1072 = vmatmul.mubr.f32.gmra.mrb[0].mxu0 %v1002
      %v1073 = vpop.f32.mrb[0].mxu0
      %v1074 = vadd.f32 0.0, %v1073
      %v1075 = vpop.f32.mrb[0].mxu0
      %1076 = vdwg.mxu0
      %v1077 = vmul.f32 %v1074, 0.25
      %vm1078 = vcmask 64512
      %v1079 = vsel %vm1078, %v1077, -inf
      %1080 = vmax.xlane.f32.xlu0 %v1079
      %v1081 = vpop.xlane.xlu0 %1080
      %v1082 = vsub.f32 %v1077, %v1081
      %v1083 = vmul.f32 %v1082, 1.442695
      %v1084 = vpow.pop %v1083
      %v1085 = vsel %vm1078, %v1084, 0.0
      %1086 = vadd.xlane.f32.xlu0 %v1085
      %v1087 = vpop.xlane.xlu0 %1086
      %v1088 = vrcp.pop %v1087
      %v1089 = vmul.f32 %v1084, %v1088
      %v1091 = vsel %vm1078, %v1089, 0
      %1093 = vmatprep.subr.mxu0 0.0
      %1094 = vmatpush1.msra.mxu0 %v995
      %1095 = vmatprep.subr.mxu0 0.0
      %1096 = vmatpush1.msra.mxu0 0.0
      %1097 = vmatprep.subr.mxu0 0.0
      %1098 = vmatpush1.msra.mxu0 0.0
      %1099 = vmatprep.subr.mxu0 0.0
      %1100 = vmatpush1.msra.mxu0 0.0
      %1101 = vmatprep.subr.mxu0 0.0
      %1102 = vmatpush1.msra.mxu0 0.0
      %1103 = vmatprep.subr.mxu0 0.0
      %1104 = vmatpush1.msra.mxu0 0.0
      %1105 = vmatprep.subr.mxu0 0.0
      %1106 = vmatpush1.msra.mxu0 0.0
      %1107 = vmatprep.subr.mxu0 0.0
      %1108 = vmatpush1.msra.mxu0 0.0
      %1109 = vmatprep.subr.mxu0 0.0
      %1110 = vmatpush1.msra.mxu0 0.0
      %1111 = vmatprep.subr.mxu0 0.0
      %1112 = vmatpush1.msra.mxu0 0.0
      %1113 = vmatprep.subr.mxu0 0.0
      %1114 = vmatpush1.msra.mxu0 0.0
      %1115 = vmatprep.subr.mxu0 0.0
      %1116 = vmatpush1.msra.mxu0 0.0
      %1117 = vmatprep.subr.mxu0 0.0
      %1118 = vmatpush1.msra.mxu0 0.0
      %1119 = vmatprep.subr.mxu0 0.0
      %1120 = vmatpush1.msra.mxu0 0.0
      %1121 = vmatprep.subr.mxu0 0.0
      %1122 = vmatpush1.msra.mxu0 0.0
      %1123 = vmatprep.subr.mxu0 0.0
      %1124 = vmatpush1.msra.mxu0 0.0
      %1125 = vmatprep.subr.mxu0 0.0
      %1126 = vmatpush1.msra.mxu0 0.0
      %1127 = vmatprep.subr.mxu0 0.0
      %1128 = vmatpush1.msra.mxu0 0.0
      %1129 = vmatprep.subr.mxu0 0.0
      %1130 = vmatpush1.msra.mxu0 0.0
      %1131 = vmatprep.subr.mxu0 0.0
      %1132 = vmatpush1.msra.mxu0 0.0
      %1133 = vmatprep.subr.mxu0 0.0
      %1134 = vmatpush1.msra.mxu0 0.0
      %1135 = vmatprep.subr.mxu0 0.0
      %1136 = vmatpush1.msra.mxu0 0.0
      %1137 = vmatprep.subr.mxu0 0.0
      %1138 = vmatpush1.msra.mxu0 0.0
      %1139 = vmatprep.subr.mxu0 0.0
      %1140 = vmatpush1.msra.mxu0 0.0
      %1141 = vmatprep.subr.mxu0 0.0
      %1142 = vmatpush1.msra.mxu0 0.0
      %1143 = vmatprep.subr.mxu0 0.0
      %1144 = vmatpush1.msra.mxu0 0.0
      %1145 = vmatprep.subr.mxu0 0.0
      %1146 = vmatpush1.msra.mxu0 0.0
      %1147 = vmatprep.subr.mxu0 0.0
      %1148 = vmatpush1.msra.mxu0 0.0
      %1149 = vmatprep.subr.mxu0 0.0
      %1150 = vmatpush1.msra.mxu0 0.0
      %1151 = vmatprep.subr.mxu0 0.0
      %1152 = vmatpush1.msra.mxu0 0.0
      %1153 = vmatprep.subr.mxu0 0.0
      %1154 = vmatpush1.msra.mxu0 0.0
      %1155 = vmatprep.subr.mxu0 0.0
      %1156 = vmatpush1.msra.mxu0 0.0
      %1157 = vmatprep.mubr.f32.mxu0 0.0
      %1158 = vmatmul.mubr.f32.gmra.mrb[0].mxu0 %v1091
      %v1159 = vpop.f32.mrb[0].mxu0
      %v1160 = vadd.f32 0.0, %v1159
      %v1161 = vpop.f32.mrb[0].mxu0
      %1162 = vdwg.mxu0
      %1163 = vrot.lane.b32.xlu0 %v789, 112
      %v1164 = vpop.permute.xlu0 %1163
      %1165 = vrot.lane.b32.xlu0 %v892, 112
      %v1166 = vpop.permute.xlu0 %1165
      %v1167 = vsel %vm1000, %v1164, 0
      %v1169 = vsel %vm1000, %v1166, 0
      %1171 = vmatprep.subr.mxu0 0.0
      %1172 = vmatpush1.xpose.msra.mxu0 %v1169
      %1173 = vmatprep.subr.mxu0 0.0
      %1174 = vmatpush1.xpose.msra.mxu0 0.0
      %1175 = vmatprep.subr.mxu0 0.0
      %1176 = vmatpush1.xpose.msra.mxu0 0.0
      %1177 = vmatprep.subr.mxu0 0.0
      %1178 = vmatpush1.xpose.msra.mxu0 0.0
      %1179 = vmatprep.subr.mxu0 0.0
      %1180 = vmatpush1.xpose.msra.mxu0 0.0
      %1181 = vmatprep.subr.mxu0 0.0
      %1182 = vmatpush1.xpose.msra.mxu0 0.0
      %1183 = vmatprep.subr.mxu0 0.0
      %1184 = vmatpush1.xpose.msra.mxu0 0.0
      %1185 = vmatprep.subr.mxu0 0.0
      %1186 = vmatpush1.xpose.msra.mxu0 0.0
      %1187 = vmatprep.subr.mxu0 0.0
      %1188 = vmatpush1.xpose.msra.mxu0 0.0
      %1189 = vmatprep.subr.mxu0 0.0
      %1190 = vmatpush1.xpose.msra.mxu0 0.0
      %1191 = vmatprep.subr.mxu0 0.0
      %1192 = vmatpush1.xpose.msra.mxu0 0.0
      %1193 = vmatprep.subr.mxu0 0.0
      %1194 = vmatpush1.xpose.msra.mxu0 0.0
      %1195 = vmatprep.subr.mxu0 0.0
      %1196 = vmatpush1.xpose.msra.mxu0 0.0
      %1197 = vmatprep.subr.mxu0 0.0
      %1198 = vmatpush1.xpose.msra.mxu0 0.0
      %1199 = vmatprep.subr.mxu0 0.0
      %1200 = vmatpush1.xpose.msra.mxu0 0.0
      %1201 = vmatprep.subr.mxu0 0.0
      %1202 = vmatpush1.xpose.msra.mxu0 0.0
      %1203 = vmatprep.subr.mxu0 0.0
      %1204 = vmatpush1.xpose.msra.mxu0 0.0
      %1205 = vmatprep.subr.mxu0 0.0
      %1206 = vmatpush1.xpose.msra.mxu0 0.0
      %1207 = vmatprep.subr.mxu0 0.0
      %1208 = vmatpush1.xpose.msra.mxu0 0.0
      %1209 = vmatprep.subr.mxu0 0.0
      %1210 = vmatpush1.xpose.msra.mxu0 0.0
      %1211 = vmatprep.subr.mxu0 0.0
      %1212 = vmatpush1.xpose.msra.mxu0 0.0
      %1213 = vmatprep.subr.mxu0 0.0
      %1214 = vmatpush1.xpose.msra.mxu0 0.0
      %1215 = vmatprep.subr.mxu0 0.0
      %1216 = vmatpush1.xpose.msra.mxu0 0.0
      %1217 = vmatprep.subr.mxu0 0.0
      %1218 = vmatpush1.xpose.msra.mxu0 0.0
      %1219 = vmatprep.subr.mxu0 0.0
      %1220 = vmatpush1.xpose.msra.mxu0 0.0
      %1221 = vmatprep.subr.mxu0 0.0
      %1222 = vmatpush1.xpose.msra.mxu0 0.0
      %1223 = vmatprep.subr.mxu0 0.0
      %1224 = vmatpush1.xpose.msra.mxu0 0.0
      %1225 = vmatprep.subr.mxu0 0.0
      %1226 = vmatpush1.xpose.msra.mxu0 0.0
      %1227 = vmatprep.subr.mxu0 0.0
      %1228 = vmatpush1.xpose.msra.mxu0 0.0
      %1229 = vmatprep.subr.mxu0 0.0
      %1230 = vmatpush1.xpose.msra.mxu0 0.0
      %1231 = vmatprep.subr.mxu0 0.0
      %1232 = vmatpush1.xpose.msra.mxu0 0.0
      %1233 = vmatprep.subr.mxu0 0.0
      %1234 = vmatpush1.xpose.msra.mxu0 0.0
      %1235 = vmatprep.mubr.f32.mxu0 0.0
      %1236 = vmatmul.mubr.f32.gmra.mrb[0].mxu0 %v1167
      %v1237 = vpop.f32.mrb[0].mxu0
      %v1238 = vadd.f32 0.0, %v1237
      %v1239 = vpop.f32.mrb[0].mxu0
      %1240 = vdwg.mxu0
      %v1241 = vmul.f32 %v1238, 0.25
      %v1242 = vsel %vm1078, %v1241, -inf
      %1243 = vmax.xlane.f32.xlu0 %v1242
      %v1244 = vpop.xlane.xlu0 %1243
      %v1245 = vsub.f32 %v1241, %v1244
      %v1246 = vmul.f32 %v1245, 1.442695
      %v1247 = vpow.pop %v1246
      %v1248 = vsel %vm1078, %v1247, 0.0
      %1249 = vadd.xlane.f32.xlu0 %v1248
      %v1250 = vpop.xlane.xlu0 %1249
      %v1251 = vrcp.pop %v1250
      %v1252 = vmul.f32 %v1247, %v1251
      %1254 = vrot.lane.b32.xlu0 %v995, 112
      %v1255 = vpop.permute.xlu0 %1254
      %v1258 = vsel %vm1078, %v1252, 0
      %1260 = vmatprep.subr.mxu0 0.0
      %1261 = vmatpush1.msra.mxu0 %v1255
      %1262 = vmatprep.subr.mxu0 0.0
      %1263 = vmatpush1.msra.mxu0 0.0
      %1264 = vmatprep.subr.mxu0 0.0
      %1265 = vmatpush1.msra.mxu0 0.0
      %1266 = vmatprep.subr.mxu0 0.0
      %1267 = vmatpush1.msra.mxu0 0.0
      %1268 = vmatprep.subr.mxu0 0.0
      %1269 = vmatpush1.msra.mxu0 0.0
      %1270 = vmatprep.subr.mxu0 0.0
      %1271 = vmatpush1.msra.mxu0 0.0
      %1272 = vmatprep.subr.mxu0 0.0
      %1273 = vmatpush1.msra.mxu0 0.0
      %1274 = vmatprep.subr.mxu0 0.0
      %1275 = vmatpush1.msra.mxu0 0.0
      %1276 = vmatprep.subr.mxu0 0.0
      %1277 = vmatpush1.msra.mxu0 0.0
      %1278 = vmatprep.subr.mxu0 0.0
      %1279 = vmatpush1.msra.mxu0 0.0
      %1280 = vmatprep.subr.mxu0 0.0
      %1281 = vmatpush1.msra.mxu0 0.0
      %1282 = vmatprep.subr.mxu0 0.0
      %1283 = vmatpush1.msra.mxu0 0.0
      %1284 = vmatprep.subr.mxu0 0.0
      %1285 = vmatpush1.msra.mxu0 0.0
      %1286 = vmatprep.subr.mxu0 0.0
      %1287 = vmatpush1.msra.mxu0 0.0
      %1288 = vmatprep.subr.mxu0 0.0
      %1289 = vmatpush1.msra.mxu0 0.0
      %1290 = vmatprep.subr.mxu0 0.0
      %1291 = vmatpush1.msra.mxu0 0.0
      %1292 = vmatprep.subr.mxu0 0.0
      %1293 = vmatpush1.msra.mxu0 0.0
      %1294 = vmatprep.subr.mxu0 0.0
      %1295 = vmatpush1.msra.mxu0 0.0
      %1296 = vmatprep.subr.mxu0 0.0
      %1297 = vmatpush1.msra.mxu0 0.0
      %1298 = vmatprep.subr.mxu0 0.0
      %1299 = vmatpush1.msra.mxu0 0.0
      %1300 = vmatprep.subr.mxu0 0.0
      %1301 = vmatpush1.msra.mxu0 0.0
      %1302 = vmatprep.subr.mxu0 0.0
      %1303 = vmatpush1.msra.mxu0 0.0
      %1304 = vmatprep.subr.mxu0 0.0
      %1305 = vmatpush1.msra.mxu0 0.0
      %1306 = vmatprep.subr.mxu0 0.0
      %1307 = vmatpush1.msra.mxu0 0.0
      %1308 = vmatprep.subr.mxu0 0.0
      %1309 = vmatpush1.msra.mxu0 0.0
      %1310 = vmatprep.subr.mxu0 0.0
      %1311 = vmatpush1.msra.mxu0 0.0
      %1312 = vmatprep.subr.mxu0 0.0
      %1313 = vmatpush1.msra.mxu0 0.0
      %1314 = vmatprep.subr.mxu0 0.0
      %1315 = vmatpush1.msra.mxu0 0.0
      %1316 = vmatprep.subr.mxu0 0.0
      %1317 = vmatpush1.msra.mxu0 0.0
      %1318 = vmatprep.subr.mxu0 0.0
      %1319 = vmatpush1.msra.mxu0 0.0
      %1320 = vmatprep.subr.mxu0 0.0
      %1321 = vmatpush1.msra.mxu0 0.0
      %1322 = vmatprep.subr.mxu0 0.0
      %1323 = vmatpush1.msra.mxu0 0.0
      %1324 = vmatprep.mubr.f32.mxu0 0.0
      %1325 = vmatmul.mubr.f32.gmra.mrb[0].mxu0 %v1258
      %v1326 = vpop.f32.mrb[0].mxu0
      %v1327 = vadd.f32 0.0, %v1326
      %v1328 = vpop.f32.mrb[0].mxu0
      %1329 = vdwg.mxu0
      %v1331 = vsel %vm1000, %v1327, 0
      %1333 = vmatprep.subr.mxu0 0.0
      %1334 = vmatpush1.msra.mxu0 %v998
      %1335 = vmatprep.subr.mxu0 0.0
      %1336 = vmatpush1.msra.mxu0 %v999
      %1337 = vmatprep.subr.mxu0 0.0
      %1338 = vmatpush1.msra.mxu0 0.0
      %1339 = vmatprep.subr.mxu0 0.0
      %1340 = vmatpush1.msra.mxu0 0.0
      %1341 = vmatprep.subr.mxu0 0.0
      %1342 = vmatpush1.msra.mxu0 0.0
      %1343 = vmatprep.subr.mxu0 0.0
      %1344 = vmatpush1.msra.mxu0 0.0
      %1345 = vmatprep.subr.mxu0 0.0
      %1346 = vmatpush1.msra.mxu0 0.0
      %1347 = vmatprep.subr.mxu0 0.0
      %1348 = vmatpush1.msra.mxu0 0.0
      %1349 = vmatprep.subr.mxu0 0.0
      %1350 = vmatpush1.msra.mxu0 0.0
      %1351 = vmatprep.subr.mxu0 0.0
      %1352 = vmatpush1.msra.mxu0 0.0
      %1353 = vmatprep.subr.mxu0 0.0
      %1354 = vmatpush1.msra.mxu0 0.0
      %1355 = vmatprep.subr.mxu0 0.0
      %1356 = vmatpush1.msra.mxu0 0.0
      %1357 = vmatprep.subr.mxu0 0.0
      %1358 = vmatpush1.msra.mxu0 0.0
      %1359 = vmatprep.subr.mxu0 0.0
      %1360 = vmatpush1.msra.mxu0 0.0
      %1361 = vmatprep.subr.mxu0 0.0
      %1362 = vmatpush1.msra.mxu0 0.0
      %1363 = vmatprep.subr.mxu0 0.0
      %1364 = vmatpush1.msra.mxu0 0.0
      %1365 = vmatprep.subr.mxu0 0.0
      %1366 = vmatpush1.msra.mxu0 0.0
      %1367 = vmatprep.subr.mxu0 0.0
      %1368 = vmatpush1.msra.mxu0 0.0
      %1369 = vmatprep.subr.mxu0 0.0
      %1370 = vmatpush1.msra.mxu0 0.0
      %1371 = vmatprep.subr.mxu0 0.0
      %1372 = vmatpush1.msra.mxu0 0.0
      %1373 = vmatprep.subr.mxu0 0.0
      %1374 = vmatpush1.msra.mxu0 0.0
      %1375 = vmatprep.subr.mxu0 0.0
      %1376 = vmatpush1.msra.mxu0 0.0
      %1377 = vmatprep.subr.mxu0 0.0
      %1378 = vmatpush1.msra.mxu0 0.0
      %1379 = vmatprep.subr.mxu0 0.0
      %1380 = vmatpush1.msra.mxu0 0.0
      %1381 = vmatprep.subr.mxu0 0.0
      %1382 = vmatpush1.msra.mxu0 0.0
      %1383 = vmatprep.subr.mxu0 0.0
      %1384 = vmatpush1.msra.mxu0 0.0
      %1385 = vmatprep.subr.mxu0 0.0
      %1386 = vmatpush1.msra.mxu0 0.0
      %1387 = vmatprep.subr.mxu0 0.0
      %1388 = vmatpush1.msra.mxu0 0.0
      %1389 = vmatprep.subr.mxu0 0.0
      %1390 = vmatpush1.msra.mxu0 0.0
      %1391 = vmatprep.subr.mxu0 0.0
      %1392 = vmatpush1.msra.mxu0 0.0
      %1393 = vmatprep.subr.mxu0 0.0
      %1394 = vmatpush1.msra.mxu0 0.0
      %1395 = vmatprep.subr.mxu0 0.0
      %1396 = vmatpush1.msra.mxu0 0.0
      %1397 = vmatprep.mubr.f32.mxu0 0.0
      %1398 = vmatmul.mubr.f32.gmra.mrb[0].mxu0 %v1331
      %v1399 = vpop.f32.mrb[0].mxu0
      %v1400 = vadd.f32 0.0, %v1399
      %v1401 = vpop.f32.mrb[0].mxu0
      %1402 = vdwg.mxu0
      %v1404 = vsel %vm1000, %v1160, 0
      %1406 = vmatprep.subr.mxu0 0.0
      %1407 = vmatpush1.msra.mxu0 %v996
      %1408 = vmatprep.subr.mxu0 0.0
      %1409 = vmatpush1.msra.mxu0 %v997
      %1410 = vmatprep.subr.mxu0 0.0
      %1411 = vmatpush1.msra.mxu0 0.0
      %1412 = vmatprep.subr.mxu0 0.0
      %1413 = vmatpush1.msra.mxu0 0.0
      %1414 = vmatprep.subr.mxu0 0.0
      %1415 = vmatpush1.msra.mxu0 0.0
      %1416 = vmatprep.subr.mxu0 0.0
      %1417 = vmatpush1.msra.mxu0 0.0
      %1418 = vmatprep.subr.mxu0 0.0
      %1419 = vmatpush1.msra.mxu0 0.0
      %1420 = vmatprep.subr.mxu0 0.0
      %1421 = vmatpush1.msra.mxu0 0.0
      %1422 = vmatprep.subr.mxu0 0.0
      %1423 = vmatpush1.msra.mxu0 0.0
      %1424 = vmatprep.subr.mxu0 0.0
      %1425 = vmatpush1.msra.mxu0 0.0
      %1426 = vmatprep.subr.mxu0 0.0
      %1427 = vmatpush1.msra.mxu0 0.0
      %1428 = vmatprep.subr.mxu0 0.0
      %1429 = vmatpush1.msra.mxu0 0.0
      %1430 = vmatprep.subr.mxu0 0.0
      %1431 = vmatpush1.msra.mxu0 0.0
      %1432 = vmatprep.subr.mxu0 0.0
      %1433 = vmatpush1.msra.mxu0 0.0
      %1434 = vmatprep.subr.mxu0 0.0
      %1435 = vmatpush1.msra.mxu0 0.0
      %1436 = vmatprep.subr.mxu0 0.0
      %1437 = vmatpush1.msra.mxu0 0.0
      %1438 = vmatprep.subr.mxu0 0.0
      %1439 = vmatpush1.msra.mxu0 0.0
      %1440 = vmatprep.subr.mxu0 0.0
      %1441 = vmatpush1.msra.mxu0 0.0
      %1442 = vmatprep.subr.mxu0 0.0
      %1443 = vmatpush1.msra.mxu0 0.0
      %1444 = vmatprep.subr.mxu0 0.0
      %1445 = vmatpush1.msra.mxu0 0.0
      %1446 = vmatprep.subr.mxu0 0.0
      %1447 = vmatpush1.msra.mxu0 0.0
      %1448 = vmatprep.subr.mxu0 0.0
      %1449 = vmatpush1.msra.mxu0 0.0
      %1450 = vmatprep.subr.mxu0 0.0
      %1451 = vmatpush1.msra.mxu0 0.0
      %1452 = vmatprep.subr.mxu0 0.0
      %1453 = vmatpush1.msra.mxu0 0.0
      %1454 = vmatprep.subr.mxu0 0.0
      %1455 = vmatpush1.msra.mxu0 0.0
      %1456 = vmatprep.subr.mxu0 0.0
      %1457 = vmatpush1.msra.mxu0 0.0
      %1458 = vmatprep.subr.mxu0 0.0
      %1459 = vmatpush1.msra.mxu0 0.0
      %1460 = vmatprep.subr.mxu0 0.0
      %1461 = vmatpush1.msra.mxu0 0.0
      %1462 = vmatprep.subr.mxu0 0.0
      %1463 = vmatpush1.msra.mxu0 0.0
      %1464 = vmatprep.subr.mxu0 0.0
      %1465 = vmatpush1.msra.mxu0 0.0
      %1466 = vmatprep.subr.mxu0 0.0
      %1467 = vmatpush1.msra.mxu0 0.0
      %1468 = vmatprep.subr.mxu0 0.0
      %1469 = vmatpush1.msra.mxu0 0.0
      %1470 = vmatprep.mubr.f32.mxu0 0.0
      %1471 = vmatmul.mubr.f32.gmra.mrb[0].mxu0 %v1404
      %v1472 = vpop.f32.mrb[0].mxu0
      %v1473 = vadd.f32 %v1400, %v1472
      %v1474 = vpop.f32.mrb[0].mxu0
      %1475 = vdwg.mxu0
      %v1476 = vadd.f32 %v1473, %v652
      %v1477 = vld [vmem:[%s13] sm:$0x1]
      %v1478 = vld [vmem:[%s14] sm:$0x1]
      %v1479 = vsel %vm655, %v1476, 0.0
      %1480 = vadd.xlane.f32.xlu0 %v1479
      %v1481 = vpop.xlane.xlu0 %1480
      %v1482 = vmul.f32 %v1481, %v659
      %v1483 = vsub.f32 %v1476, %v1482
      %v1484 = vmul.f32 %v1483, %v1483
      %v1485 = vsel %vm655, %v1484, 0.0
      %1486 = vadd.xlane.f32.xlu0 %v1485
      %v1487 = vpop.xlane.xlu0 %1486
      %v1488 = vmul.f32 %v1487, %v659
      %v1489 = vadd.f32 %v1488, 1e-05
      %v1490 = vrsqrt.pop %v1489
      %v1491 = vmul.f32 %v1483, %v1490
      %v1493 = vlaneseq
      %v1494 = vshrl.u32 %v1493, 7
      %v1495 = vsub.s32 0, %v1494
      %v1496 = vrot.slane %v1477, %v1495
      %v1498 = vmul.f32 %v1491, %v1496
      %v1500 = vlaneseq
      %v1501 = vshrl.u32 %v1500, 7
      %v1502 = vsub.s32 0, %v1501
      %v1503 = vrot.slane %v1478, %v1502
      %v1505 = vadd.f32 %v1498, %v1503
      %v1506 = vld [vmem:[%s15] sm:$0xff]
      %v1507 = vld [vmem:[%s15 + $0x8] sm:$0xff]
      %v1508 = vld [vmem:[%s15 + $0x10] sm:$0xff]
      %v1509 = vld [vmem:[%s15 + $0x18] sm:$0xff]
      %v1510 = vld [vmem:[%s16] sm:$0x1]
      %v1512 = vlaneseq
      %v1513 = vshrl.u32 %v1512, 7
      %v1514 = vsub.s32 0, %v1513
      %v1515 = vrot.slane %v1510, %v1514
      %v1518 = vsel %vm655, %v1505, 0
      %1520 = vmatprep.subr.mxu0 0.0
      %1521 = vmatpush1.msra.mxu0 %v1506
      %1522 = vmatprep.subr.mxu0 0.0
      %1523 = vmatpush1.msra.mxu0 %v1507
      %1524 = vmatprep.subr.mxu0 0.0
      %1525 = vmatpush1.msra.mxu0 %v1508
      %1526 = vmatprep.subr.mxu0 0.0
      %1527 = vmatpush1.msra.mxu0 %v1509
      %1528 = vmatprep.subr.mxu0 0.0
      %1529 = vmatpush1.msra.mxu0 0.0
      %1530 = vmatprep.subr.mxu0 0.0
      %1531 = vmatpush1.msra.mxu0 0.0
      %1532 = vmatprep.subr.mxu0 0.0
      %1533 = vmatpush1.msra.mxu0 0.0
      %1534 = vmatprep.subr.mxu0 0.0
      %1535 = vmatpush1.msra.mxu0 0.0
      %1536 = vmatprep.subr.mxu0 0.0
      %1537 = vmatpush1.msra.mxu0 0.0
      %1538 = vmatprep.subr.mxu0 0.0
      %1539 = vmatpush1.msra.mxu0 0.0
      %1540 = vmatprep.subr.mxu0 0.0
      %1541 = vmatpush1.msra.mxu0 0.0
      %1542 = vmatprep.subr.mxu0 0.0
      %1543 = vmatpush1.msra.mxu0 0.0
      %1544 = vmatprep.subr.mxu0 0.0
      %1545 = vmatpush1.msra.mxu0 0.0
      %1546 = vmatprep.subr.mxu0 0.0
      %1547 = vmatpush1.msra.mxu0 0.0
      %1548 = vmatprep.subr.mxu0 0.0
      %1549 = vmatpush1.msra.mxu0 0.0
      %1550 = vmatprep.subr.mxu0 0.0
      %1551 = vmatpush1.msra.mxu0 0.0
      %1552 = vmatprep.subr.mxu0 0.0
      %1553 = vmatpush1.msra.mxu0 0.0
      %1554 = vmatprep.subr.mxu0 0.0
      %1555 = vmatpush1.msra.mxu0 0.0
      %1556 = vmatprep.subr.mxu0 0.0
      %1557 = vmatpush1.msra.mxu0 0.0
      %1558 = vmatprep.subr.mxu0 0.0
      %1559 = vmatpush1.msra.mxu0 0.0
      %1560 = vmatprep.subr.mxu0 0.0
      %1561 = vmatpush1.msra.mxu0 0.0
      %1562 = vmatprep.subr.mxu0 0.0
      %1563 = vmatpush1.msra.mxu0 0.0
      %1564 = vmatprep.subr.mxu0 0.0
      %1565 = vmatpush1.msra.mxu0 0.0
      %1566 = vmatprep.subr.mxu0 0.0
      %1567 = vmatpush1.msra.mxu0 0.0
      %1568 = vmatprep.subr.mxu0 0.0
      %1569 = vmatpush1.msra.mxu0 0.0
      %1570 = vmatprep.subr.mxu0 0.0
      %1571 = vmatpush1.msra.mxu0 0.0
      %1572 = vmatprep.subr.mxu0 0.0
      %1573 = vmatpush1.msra.mxu0 0.0
      %1574 = vmatprep.subr.mxu0 0.0
      %1575 = vmatpush1.msra.mxu0 0.0
      %1576 = vmatprep.subr.mxu0 0.0
      %1577 = vmatpush1.msra.mxu0 0.0
      %1578 = vmatprep.subr.mxu0 0.0
      %1579 = vmatpush1.msra.mxu0 0.0
      %1580 = vmatprep.subr.mxu0 0.0
      %1581 = vmatpush1.msra.mxu0 0.0
      %1582 = vmatprep.subr.mxu0 0.0
      %1583 = vmatpush1.msra.mxu0 0.0
      %1584 = vmatprep.mubr.f32.mxu0 0.0
      %1585 = vmatmul.mubr.f32.gmra.mrb[0].mxu0 %v1518
      %v1586 = vpop.f32.mrb[0].mxu0
      %v1587 = vadd.f32 %v1515, %v1586
      %v1588 = vpop.f32.mrb[0].mxu0
      %1589 = vdwg.mxu0
      %v1590 = vld [vmem:[%s17] sm:$0x1]
      %v1591 = vld [vmem:[%s17 + $0x1] sm:$0x1]
      %v1592 = vld [vmem:[%s17 + $0x2] sm:$0x1]
      %v1593 = vld [vmem:[%s17 + $0x3] sm:$0x1]
      %v1594 = vld [vmem:[%s17 + $0x4] sm:$0x1]
      %v1595 = vld [vmem:[%s17 + $0x5] sm:$0x1]
      %v1596 = vld [vmem:[%s18] sm:$0x1]
      %v1597 = vld [vmem:[%s18 + $0x1] sm:$0x1]
      %v1598 = vld [vmem:[%s19] sm:$0xff]
      %v1599 = vld [vmem:[%s19 + $0x8] sm:$0xff]
      %v1600 = vld [vmem:[%s19 + $0x10] sm:$0xff]
      %v1601 = vld [vmem:[%s19 + $0x18] sm:$0xff]
      %v1602 = vld [vmem:[%s19 + $0x20] sm:$0xff]
      %v1603 = vld [vmem:[%s19 + $0x28] sm:$0xff]
      %v1604 = vld [vmem:[%s19 + $0x30] sm:$0xff]
      %v1605 = vld [vmem:[%s19 + $0x38] sm:$0xff]
      %v1607 = vrot.slane %v1587, 7
      %vm1609 = vcmask 1040384
      %v1610 = vsel %vm1609, 0.0, %v1607
      %v1611 = vrot.slane %v1587, 1
      %vm1613 = vcmask 1046528
      %v1614 = vsel %vm1613, %v1611, 0.0
      %v1616 = vlaneseq
      %v1617 = vshrl.u32 %v1616, 7
      %v1618 = vsub.s32 0, %v1617
      %v1619 = vrot.slane %v1590, %v1618
      %v1621 = vmul.f32 %v1610, %v1619
      %v1623 = vlaneseq
      %v1624 = vshrl.u32 %v1623, 7
      %v1625 = vsub.s32 0, %v1624
      %v1626 = vrot.slane %v1596, %v1625
      %v1628 = vadd.f32 %v1626, %v1621
      %v1630 = vlaneseq
      %v1631 = vshrl.u32 %v1630, 7
      %v1632 = vsub.s32 0, %v1631
      %v1633 = vrot.slane %v1592, %v1632
      %v1635 = vmul.f32 %v1587, %v1633
      %v1636 = vadd.f32 %v1628, %v1635
      %v1638 = vlaneseq
      %v1639 = vshrl.u32 %v1638, 7
      %v1640 = vsub.s32 0, %v1639
      %v1641 = vrot.slane %v1594, %v1640
      %v1643 = vmul.f32 %v1614, %v1641
      %v1644 = vadd.f32 %v1636, %v1643
      %v1645 = vmul.f32 %v1644, 0.5
      %v1646 = vmul.f32 %v1644, 0.70710677
      %vm1647 = vcmp.lt.f32.partialorder %v1646, 0.0
      %v1648 = vsel %vm1647, -1.0, 1.0
      %v1649 = vand.u32 2147483647, %v1646
      %v1650 = vmul.f32 %v1649, 0.3275911
      %v1651 = vadd.f32 %v1650, 1.0
      %v1652 = vrcp.pop %v1651
      %v1653 = vmul.f32 1.0, %v1652
      %v1654 = vmul.f32 %v1653, 1.0614054
      %v1655 = vadd.f32 %v1654, -1.4531521
      %v1656 = vmul.f32 %v1655, %v1653
      %v1657 = vadd.f32 %v1656, 1.4214138
      %v1658 = vmul.f32 %v1657, %v1653
      %v1659 = vadd.f32 %v1658, -0.28449672
      %v1660 = vmul.f32 %v1659, %v1653
      %v1661 = vadd.f32 %v1660, 0.2548296
      %v1662 = vmul.f32 %v1661, %v1653
      %v1663 = vsub.f32 0.0, %v1649
      %v1664 = vmul.f32 %v1663, %v1649
      %v1665 = vmul.f32 %v1664, 1.442695
      %v1666 = vpow.pop %v1665
      %v1667 = vmul.f32 %v1662, %v1666
      %v1668 = vsub.f32 1.0, %v1667
      %v1669 = vmul.f32 %v1648, %v1668
      %v1670 = vadd.f32 %v1669, 1.0
      %v1671 = vmul.f32 %v1645, %v1670
      %v1673 = vlaneseq
      %v1674 = vshrl.u32 %v1673, 7
      %v1675 = vsub.s32 0, %v1674
      %v1676 = vrot.slane %v1591, %v1675
      %v1678 = vmul.f32 %v1610, %v1676
      %v1680 = vlaneseq
      %v1681 = vshrl.u32 %v1680, 7
      %v1682 = vsub.s32 0, %v1681
      %v1683 = vrot.slane %v1597, %v1682
      %v1685 = vadd.f32 %v1683, %v1678
      %v1687 = vlaneseq
      %v1688 = vshrl.u32 %v1687, 7
      %v1689 = vsub.s32 0, %v1688
      %v1690 = vrot.slane %v1593, %v1689
      %v1692 = vmul.f32 %v1587, %v1690
      %v1693 = vadd.f32 %v1685, %v1692
      %v1695 = vlaneseq
      %v1696 = vshrl.u32 %v1695, 7
      %v1697 = vsub.s32 0, %v1696
      %v1698 = vrot.slane %v1595, %v1697
      %v1700 = vmul.f32 %v1614, %v1698
      %v1701 = vadd.f32 %v1693, %v1700
      %v1702 = vmul.f32 %v1701, 0.5
      %v1703 = vmul.f32 %v1701, 0.70710677
      %vm1704 = vcmp.lt.f32.partialorder %v1703, 0.0
      %v1705 = vsel %vm1704, -1.0, 1.0
      %v1706 = vand.u32 2147483647, %v1703
      %v1707 = vmul.f32 %v1706, 0.3275911
      %v1708 = vadd.f32 %v1707, 1.0
      %v1709 = vrcp.pop %v1708
      %v1710 = vmul.f32 1.0, %v1709
      %v1711 = vmul.f32 %v1710, 1.0614054
      %v1712 = vadd.f32 %v1711, -1.4531521
      %v1713 = vmul.f32 %v1712, %v1710
      %v1714 = vadd.f32 %v1713, 1.4214138
      %v1715 = vmul.f32 %v1714, %v1710
      %v1716 = vadd.f32 %v1715, -0.28449672
      %v1717 = vmul.f32 %v1716, %v1710
      %v1718 = vadd.f32 %v1717, 0.2548296
      %v1719 = vmul.f32 %v1718, %v1710
      %v1720 = vsub.f32 0.0, %v1706
      %v1721 = vmul.f32 %v1720, %v1706
      %v1722 = vmul.f32 %v1721, 1.442695
      %v1723 = vpow.pop %v1722
      %v1724 = vmul.f32 %v1719, %v1723
      %v1725 = vsub.f32 1.0, %v1724
      %v1726 = vmul.f32 %v1705, %v1725
      %v1727 = vadd.f32 %v1726, 1.0
      %v1728 = vmul.f32 %v1702, %v1727
      %v1730 = vsel %vm655, %v1728, 0
      %1732 = vmatprep.subr.mxu0 0.0
      %1733 = vmatpush1.msra.mxu0 %v1602
      %1734 = vmatprep.subr.mxu0 0.0
      %1735 = vmatpush1.msra.mxu0 %v1603
      %1736 = vmatprep.subr.mxu0 0.0
      %1737 = vmatpush1.msra.mxu0 %v1604
      %1738 = vmatprep.subr.mxu0 0.0
      %1739 = vmatpush1.msra.mxu0 %v1605
      %1740 = vmatprep.subr.mxu0 0.0
      %1741 = vmatpush1.msra.mxu0 0.0
      %1742 = vmatprep.subr.mxu0 0.0
      %1743 = vmatpush1.msra.mxu0 0.0
      %1744 = vmatprep.subr.mxu0 0.0
      %1745 = vmatpush1.msra.mxu0 0.0
      %1746 = vmatprep.subr.mxu0 0.0
      %1747 = vmatpush1.msra.mxu0 0.0
      %1748 = vmatprep.subr.mxu0 0.0
      %1749 = vmatpush1.msra.mxu0 0.0
      %1750 = vmatprep.subr.mxu0 0.0
      %1751 = vmatpush1.msra.mxu0 0.0
      %1752 = vmatprep.subr.mxu0 0.0
      %1753 = vmatpush1.msra.mxu0 0.0
      %1754 = vmatprep.subr.mxu0 0.0
      %1755 = vmatpush1.msra.mxu0 0.0
      %1756 = vmatprep.subr.mxu0 0.0
      %1757 = vmatpush1.msra.mxu0 0.0
      %1758 = vmatprep.subr.mxu0 0.0
      %1759 = vmatpush1.msra.mxu0 0.0
      %1760 = vmatprep.subr.mxu0 0.0
      %1761 = vmatpush1.msra.mxu0 0.0
      %1762 = vmatprep.subr.mxu0 0.0
      %1763 = vmatpush1.msra.mxu0 0.0
      %1764 = vmatprep.subr.mxu0 0.0
      %1765 = vmatpush1.msra.mxu0 0.0
      %1766 = vmatprep.subr.mxu0 0.0
      %1767 = vmatpush1.msra.mxu0 0.0
      %1768 = vmatprep.subr.mxu0 0.0
      %1769 = vmatpush1.msra.mxu0 0.0
      %1770 = vmatprep.subr.mxu0 0.0
      %1771 = vmatpush1.msra.mxu0 0.0
      %1772 = vmatprep.subr.mxu0 0.0
      %1773 = vmatpush1.msra.mxu0 0.0
      %1774 = vmatprep.subr.mxu0 0.0
      %1775 = vmatpush1.msra.mxu0 0.0
      %1776 = vmatprep.subr.mxu0 0.0
      %1777 = vmatpush1.msra.mxu0 0.0
      %1778 = vmatprep.subr.mxu0 0.0
      %1779 = vmatpush1.msra.mxu0 0.0
      %1780 = vmatprep.subr.mxu0 0.0
      %1781 = vmatpush1.msra.mxu0 0.0
      %1782 = vmatprep.subr.mxu0 0.0
      %1783 = vmatpush1.msra.mxu0 0.0
      %1784 = vmatprep.subr.mxu0 0.0
      %1785 = vmatpush1.msra.mxu0 0.0
      %1786 = vmatprep.subr.mxu0 0.0
      %1787 = vmatpush1.msra.mxu0 0.0
      %1788 = vmatprep.subr.mxu0 0.0
      %1789 = vmatpush1.msra.mxu0 0.0
      %1790 = vmatprep.subr.mxu0 0.0
      %1791 = vmatpush1.msra.mxu0 0.0
      %1792 = vmatprep.subr.mxu0 0.0
      %1793 = vmatpush1.msra.mxu0 0.0
      %1794 = vmatprep.subr.mxu0 0.0
      %1795 = vmatpush1.msra.mxu0 0.0
      %1796 = vmatprep.mubr.f32.mxu0 0.0
      %1797 = vmatmul.mubr.f32.gmra.mrb[0].mxu0 %v1730
      %v1798 = vpop.f32.mrb[0].mxu0
      %v1799 = vadd.f32 0.0, %v1798
      %v1800 = vpop.f32.mrb[0].mxu0
      %1801 = vdwg.mxu0
      %v1803 = vsel %vm655, %v1671, 0
      %1805 = vmatprep.subr.mxu0 0.0
      %1806 = vmatpush1.msra.mxu0 %v1598
      %1807 = vmatprep.subr.mxu0 0.0
      %1808 = vmatpush1.msra.mxu0 %v1599
      %1809 = vmatprep.subr.mxu0 0.0
      %1810 = vmatpush1.msra.mxu0 %v1600
      %1811 = vmatprep.subr.mxu0 0.0
      %1812 = vmatpush1.msra.mxu0 %v1601
      %1813 = vmatprep.subr.mxu0 0.0
      %1814 = vmatpush1.msra.mxu0 0.0
      %1815 = vmatprep.subr.mxu0 0.0
      %1816 = vmatpush1.msra.mxu0 0.0
      %1817 = vmatprep.subr.mxu0 0.0
      %1818 = vmatpush1.msra.mxu0 0.0
      %1819 = vmatprep.subr.mxu0 0.0
      %1820 = vmatpush1.msra.mxu0 0.0
      %1821 = vmatprep.subr.mxu0 0.0
      %1822 = vmatpush1.msra.mxu0 0.0
      %1823 = vmatprep.subr.mxu0 0.0
      %1824 = vmatpush1.msra.mxu0 0.0
      %1825 = vmatprep.subr.mxu0 0.0
      %1826 = vmatpush1.msra.mxu0 0.0
      %1827 = vmatprep.subr.mxu0 0.0
      %1828 = vmatpush1.msra.mxu0 0.0
      %1829 = vmatprep.subr.mxu0 0.0
      %1830 = vmatpush1.msra.mxu0 0.0
      %1831 = vmatprep.subr.mxu0 0.0
      %1832 = vmatpush1.msra.mxu0 0.0
      %1833 = vmatprep.subr.mxu0 0.0
      %1834 = vmatpush1.msra.mxu0 0.0
      %1835 = vmatprep.subr.mxu0 0.0
      %1836 = vmatpush1.msra.mxu0 0.0
      %1837 = vmatprep.subr.mxu0 0.0
      %1838 = vmatpush1.msra.mxu0 0.0
      %1839 = vmatprep.subr.mxu0 0.0
      %1840 = vmatpush1.msra.mxu0 0.0
      %1841 = vmatprep.subr.mxu0 0.0
      %1842 = vmatpush1.msra.mxu0 0.0
      %1843 = vmatprep.subr.mxu0 0.0
      %1844 = vmatpush1.msra.mxu0 0.0
      %1845 = vmatprep.subr.mxu0 0.0
      %1846 = vmatpush1.msra.mxu0 0.0
      %1847 = vmatprep.subr.mxu0 0.0
      %1848 = vmatpush1.msra.mxu0 0.0
      %1849 = vmatprep.subr.mxu0 0.0
      %1850 = vmatpush1.msra.mxu0 0.0
      %1851 = vmatprep.subr.mxu0 0.0
      %1852 = vmatpush1.msra.mxu0 0.0
      %1853 = vmatprep.subr.mxu0 0.0
      %1854 = vmatpush1.msra.mxu0 0.0
      %1855 = vmatprep.subr.mxu0 0.0
      %1856 = vmatpush1.msra.mxu0 0.0
      %1857 = vmatprep.subr.mxu0 0.0
      %1858 = vmatpush1.msra.mxu0 0.0
      %1859 = vmatprep.subr.mxu0 0.0
      %1860 = vmatpush1.msra.mxu0 0.0
      %1861 = vmatprep.subr.mxu0 0.0
      %1862 = vmatpush1.msra.mxu0 0.0
      %1863 = vmatprep.subr.mxu0 0.0
      %1864 = vmatpush1.msra.mxu0 0.0
      %1865 = vmatprep.subr.mxu0 0.0
      %1866 = vmatpush1.msra.mxu0 0.0
      %1867 = vmatprep.subr.mxu0 0.0
      %1868 = vmatpush1.msra.mxu0 0.0
      %1869 = vmatprep.mubr.f32.mxu0 0.0
      %1870 = vmatmul.mubr.f32.gmra.mrb[0].mxu0 %v1803
      %v1871 = vpop.f32.mrb[0].mxu0
      %v1872 = vadd.f32 %v1799, %v1871
      %v1873 = vpop.f32.mrb[0].mxu0
      %1874 = vdwg.mxu0
      %v1875 = vld [vmem:[%s20] sm:$0x1]
      %v1877 = vlaneseq
      %v1878 = vshrl.u32 %v1877, 7
      %v1879 = vsub.s32 0, %v1878
      %v1880 = vrot.slane %v1875, %v1879
      %v1882 = vadd.f32 %v1872, %v1880
      %v1883 = vadd.f32 %v1882, %v1476
      %1884 = vst.msk [vmem:[%s651] sm:$0xff] %vm655, %v1883
      %p1885 = scmp.lt.s32.totalorder %s32, 1
      %s1886 = scalar_select %p1885, %s32, 1
      %s1887 = smul.addr %s1886, 8
      %s1888 = scalar_lea.vmem %s21, %s1887
      // Predicated region
      $region105: #{transformer_block_pallas.4} parent=103 // pred_check
        %p1889 = pneg %p496
      $region106: #{transformer_block_pallas.4} parent=103 // pred_check_branch
        %1891 = sbr.rel (%p1889) target = $region108
      $region107: #{transformer_block_pallas.4} parent=103 // pred_region
        _
      $region108: #{transformer_block_pallas.4} parent=103 // pred_fallthru
        _
    $region104: #{transformer_block_pallas.4} parent=5 // pred_fallthru
      _
    %p1892 = scmp.le.s32.totalorder 2, %s27
    // Predicated region
    $region109: #{transformer_block_pallas.4} parent=5 // pred_check
      %p1893 = pneg %p1892
    $region110: #{transformer_block_pallas.4} parent=5 // pred_check_branch
      %1895 = sbr.rel (%p1893) target = $region112
    $region111: #{transformer_block_pallas.4} parent=5 // pred_region
      %s1896 = ssub.s32 %s27, 2
      // Predicated region
      $region113: #{transformer_block_pallas.4} parent=111 // pred_check
        %p1897 = pneg %p502
      $region114: #{transformer_block_pallas.4} parent=111 // pred_check_branch
        %1899 = sbr.rel (%p1897) target = $region116
      $region115: #{transformer_block_pallas.4} parent=111 // pred_region
        %p1900 = scmp.lt.s32.totalorder %s33, 1
        %s1901 = scalar_select %p1900, %s33, 1
        %s1902 = smul.addr %s1901, 8
        %s1903 = scalar_lea.vmem %s21, %s1902
      $region116: #{transformer_block_pallas.4} parent=111 // pred_fallthru
        _
    $region112: #{transformer_block_pallas.4} parent=5 // pred_fallthru
      _
  $region6: #{transformer_block_pallas.4} parent=0 // loop_footer
    %s31 = sadd.s32 1, %s27
  $region7: #{transformer_block_pallas.4} parent=0 // loop_footer_branch
    %26 = sbr.rel target = $region3
  $region8: #{transformer_block_pallas.4} parent=0 // loop_exit
    _

</llo_original>
